<compile_context>
chip_gen: v7x
topology: tpu7x:2x2x1
jax: 0.10.0
libtpu: 0.0.40
codegen_flags: <defaults>
</compile_context>

<pallas_src>
import functools

import jax
import jax.numpy as jnp
from jax import lax
from jax.experimental import pallas as pl
from jax.experimental.pallas import tpu as pltpu

C_RGLRU = 8.0          # RGLRU.c
EPS = 1e-5             # norm_eps

# Tile defaults: 256/512-wide tiles feed the v6e/v7x 256x256 MXU; _pick_tile
# clamps them to the array dims (-> 128 on small dims, also right for v5e).
TM_DEF = 256           # rows (B*S) per block
TN_DEF = 256           # output-feature lanes per block
TK_DEF = 512           # contraction chunk
TS_DEF = 128           # scan timesteps per grid step
TC_DEF = 512           # scan channels per block
VMEM_LIMIT = 48 * 1024 * 1024   # explicit budget, fits v7x's 64 MiB VMEM


def _pick_tile(n, pref, align):
    """Largest multiple of `align` dividing n and <= pref (else n itself)."""
    if n <= pref:
        return n
    t = (pref // align) * align
    while t >= align:
        if n % t == 0:
            return t
        t -= align
    return n


def _cparams(sem):
    return pltpu.CompilerParams(dimension_semantics=sem,
                                vmem_limit_bytes=VMEM_LIMIT)


# ----------------------------------------------------------------------------
# Kernels
# ----------------------------------------------------------------------------
def _norm_dual_mm_kernel(x_ref, g_ref, wx_ref, wy_ref,
                         ox_ref, oy_ref, oxn_ref, *, eps):
    # xn = rmsnorm(x) ; ox = xn @ wx ; oy = silu(xn @ wy) ; oxn = xn (residual)
    x = x_ref[...]
    xn = x * lax.rsqrt(jnp.mean(x * x, axis=-1, keepdims=True) + eps) * g_ref[...]

    @pl.when(pl.program_id(1) == 0)
    def _():
        oxn_ref[...] = xn            # block index (i, 0): written once per i

    xb = xn.astype(jnp.bfloat16)
    ox_ref[...] = jnp.dot(xb, wx_ref[...], preferred_element_type=jnp.float32)
    wy = jnp.dot(xb, wy_ref[...], preferred_element_type=jnp.float32)
    oy_ref[...] = wy * jax.nn.sigmoid(wy)     # silu precomputed off the scan path


def _gates_kernel(xk_ref, wig_ref, wag_ref, xcol_ref, aneg_ref, a_ref, b_ref):
    # Accumulate input_gate / a_gate logits in the (resident) output blocks,
    # then on the last K step turn them into the RG-LRU decay a_t and input b_t.
    k = pl.program_id(2)

    @pl.when(k == 0)
    def _():
        a_ref[...] = jnp.zeros_like(a_ref)
        b_ref[...] = jnp.zeros_like(b_ref)

    xb = xk_ref[...].astype(jnp.bfloat16)
    a_ref[...] += jnp.dot(xb, wig_ref[...], preferred_element_type=jnp.float32)
    b_ref[...] += jnp.dot(xb, wag_ref[...], preferred_element_type=jnp.float32)

    @pl.when(k == pl.num_programs(2) - 1)
    def _():
        gate_x = jax.nn.sigmoid(a_ref[...])
        gate_a = jax.nn.sigmoid(b_ref[...])
        log_a = gate_a * aneg_ref[...]          # aneg = -c * softplus(a)
        a_t = jnp.exp(log_a)
        mult = jnp.sqrt(1.0 - a_t * a_t)        # == sqrt(1 - exp(2*log_a))
        a_ref[...] = a_t
        b_ref[...] = mult * gate_x * xcol_ref[...]


def _scan_gate_kernel(a_ref, b_ref, wys_ref, h_ref, state_ref):
    # h_t = a_t * h_{t-1} + b_t ; output h_t * silu(wy(x))_t.
    # Block refs: (Ts, Tc); state carried across seq-chunks in VMEM scratch.
    @pl.when(pl.program_id(2) == 0)
    def _():
        state_ref[...] = jnp.zeros_like(state_ref)

    def body(t, state):
        st = a_ref[pl.ds(t, 1), :] * state + b_ref[pl.ds(t, 1), :]
        h_ref[pl.ds(t, 1), :] = st * wys_ref[pl.ds(t, 1), :]
        return st

    state_ref[...] = lax.fori_loop(0, a_ref.shape[0], body, state_ref[...])


def _mm_res_kernel(x_ref, w_ref, r_ref, o_ref):
    @pl.when(pl.program_id(2) == 0)
    def _():
        o_ref[...] = r_ref[...]
    o_ref[...] += jnp.dot(x_ref[...].astype(jnp.bfloat16), w_ref[...],
                          preferred_element_type=jnp.float32)


def _mm_res2_kernel(x_ref, w_ref, r1_ref, r2_ref, o_ref):
    @pl.when(pl.program_id(2) == 0)
    def _():
        o_ref[...] = r1_ref[...] + r2_ref[...]
    o_ref[...] += jnp.dot(x_ref[...].astype(jnp.bfloat16), w_ref[...],
                          preferred_element_type=jnp.float32)


def _norm_swiglu_kernel(x_ref, g_ref, w1_ref, w3_ref, o_ref, *, eps):
    x = x_ref[...]
    xn = x * lax.rsqrt(jnp.mean(x * x, axis=-1, keepdims=True) + eps) * g_ref[...]
    xb = xn.astype(jnp.bfloat16)
    d1 = jnp.dot(xb, w1_ref[...], preferred_element_type=jnp.float32)
    d3 = jnp.dot(xb, w3_ref[...], preferred_element_type=jnp.float32)
    o_ref[...] = d1 * jax.nn.sigmoid(d1) * d3


# ----------------------------------------------------------------------------
# Wrappers
# ----------------------------------------------------------------------------
def norm_dual_mm(x, g, wx, wy):
    M, D = x.shape
    N = wx.shape[1]
    tm = _pick_tile(M, TM_DEF, 8)
    tn = _pick_tile(N, TN_DEF, 128)
    grid = (M // tm, N // tn)
    return pl.pallas_call(
        functools.partial(_norm_dual_mm_kernel, eps=EPS),
        out_shape=(jax.ShapeDtypeStruct((M, N), jnp.float32),
                   jax.ShapeDtypeStruct((M, N), jnp.float32),
                   jax.ShapeDtypeStruct((M, D), jnp.float32)),
        grid=grid,
        in_specs=[pl.BlockSpec((tm, D), lambda i, j: (i, 0)),
                  pl.BlockSpec((1, D), lambda i, j: (0, 0)),
                  pl.BlockSpec((D, tn), lambda i, j: (0, j)),
                  pl.BlockSpec((D, tn), lambda i, j: (0, j))],
        out_specs=(pl.BlockSpec((tm, tn), lambda i, j: (i, j)),
                   pl.BlockSpec((tm, tn), lambda i, j: (i, j)),
                   pl.BlockSpec((tm, D), lambda i, j: (i, 0))),
        compiler_params=_cparams(("parallel", "arbitrary")),
    )(x, g.reshape(1, D), wx, wy)


def rglru_gates(x, wig, wag, a_neg):
    M, H = x.shape
    tm = _pick_tile(M, TM_DEF, 8)
    tn = _pick_tile(H, TN_DEF, 128)
    tk = _pick_tile(H, TK_DEF, 128)
    grid = (M // tm, H // tn, H // tk)
    return pl.pallas_call(
        _gates_kernel,
        out_shape=(jax.ShapeDtypeStruct((M, H), jnp.float32),
                   jax.ShapeDtypeStruct((M, H), jnp.float32)),
        grid=grid,
        in_specs=[pl.BlockSpec((tm, tk), lambda i, j, k: (i, k)),
                  pl.BlockSpec((tk, tn), lambda i, j, k: (k, j)),
                  pl.BlockSpec((tk, tn), lambda i, j, k: (k, j)),
                  pl.BlockSpec((tm, tn), lambda i, j, k: (i, j)),
                  pl.BlockSpec((1, tn), lambda i, j, k: (0, j))],
        out_specs=(pl.BlockSpec((tm, tn), lambda i, j, k: (i, j)),
                   pl.BlockSpec((tm, tn), lambda i, j, k: (i, j))),
        compiler_params=_cparams(("parallel", "parallel", "arbitrary")),
    )(x, wig, wag, x, a_neg.reshape(1, H))


def rglru_scan(a, b, wy_silu, B, S):
    M, H = a.shape
    ts = _pick_tile(S, TS_DEF, 8)
    tc = _pick_tile(H, TC_DEF, 128)
    grid = (B, H // tc, S // ts)
    spec = pl.BlockSpec((pl.Squeezed(), ts, tc), lambda bb, j, s: (bb, s, j))
    h = pl.pallas_call(
        _scan_gate_kernel,
        out_shape=jax.ShapeDtypeStruct((B, S, H), jnp.float32),
        grid=grid,
        in_specs=[spec, spec, spec],
        out_specs=spec,
        scratch_shapes=[pltpu.VMEM((1, tc), jnp.float32)],
        compiler_params=_cparams(("parallel", "parallel", "arbitrary")),
    )(a.reshape(B, S, H), b.reshape(B, S, H), wy_silu.reshape(B, S, H))
    return h.reshape(M, H)


def matmul_residual(x, w, *residuals):
    M, K = x.shape
    _, N = w.shape
    tm = _pick_tile(M, TM_DEF, 8)
    tn = _pick_tile(N, TN_DEF, 128)
    tk = _pick_tile(K, TK_DEF, 128)
    grid = (M // tm, N // tn, K // tk)
    res_spec = pl.BlockSpec((tm, tn), lambda i, j, k: (i, j))
    kern = _mm_res_kernel if len(residuals) == 1 else _mm_res2_kernel
    return pl.pallas_call(
        kern,
        out_shape=jax.ShapeDtypeStruct((M, N), jnp.float32),
        grid=grid,
        in_specs=[pl.BlockSpec((tm, tk), lambda i, j, k: (i, k)),
                  pl.BlockSpec((tk, tn), lambda i, j, k: (k, j))]
                 + [res_spec] * len(residuals),
        out_specs=pl.BlockSpec((tm, tn), lambda i, j, k: (i, j)),
        compiler_params=_cparams(("parallel", "parallel", "arbitrary")),
    )(x, w, *residuals)


def norm_swiglu(x, g, w1, w3):
    M, D = x.shape
    N = w1.shape[1]
    tm = _pick_tile(M, TM_DEF, 8)
    tn = _pick_tile(N, TN_DEF, 128)
    grid = (M // tm, N // tn)
    return pl.pallas_call(
        functools.partial(_norm_swiglu_kernel, eps=EPS),
        out_shape=jax.ShapeDtypeStruct((M, N), jnp.float32),
        grid=grid,
        in_specs=[pl.BlockSpec((tm, D), lambda i, j: (i, 0)),
                  pl.BlockSpec((1, D), lambda i, j: (0, 0)),
                  pl.BlockSpec((D, tn), lambda i, j: (0, j)),
                  pl.BlockSpec((D, tn), lambda i, j: (0, j))],
        out_specs=pl.BlockSpec((tm, tn), lambda i, j: (i, j)),
        compiler_params=_cparams(("parallel", "parallel")),
    )(x, g.reshape(1, D), w1, w3)


# ----------------------------------------------------------------------------
# BaseHawk forward (n_layers x HawkBlock)
# ----------------------------------------------------------------------------
def hawk_forward(x, tok_idx, cu_seqlens, params):
    # TODO(synk): packed-document resets (cu_seqlens/tok_idx) and the optional
    # causal conv1d path are not implemented (conv_size=None in BaseHawkArgs).
    del tok_idx, cu_seqlens
    B, S, D = x.shape
    h = x.reshape(B * S, D)
    for lp in params["layers"]:
        # ---- RGLRUBlock: x = x + [ norm1(x) + wo( scan * silu(wy(norm1 x)) ) ]
        wx_x, wy_silu, xn = norm_dual_mm(h, lp["rms1_w"], lp["wx"], lp["wy"])
        a_t, b_t = rglru_gates(wx_x, lp["ig"], lp["ag"], lp["a_neg"])
        hg = rglru_scan(a_t, b_t, wy_silu, B, S)
        h = matmul_residual(hg, lp["wo"], h, xn)        # h + xn + hg @ wo
        # ---- FeedForward (SwiGLU): x = x + w2( silu(w1(norm2 x)) * w3(norm2 x) )
        g = norm_swiglu(h, lp["rms2_w"], lp["w1"], lp["w3"])
        h = matmul_residual(g, lp["w2"], h)             # h + g @ w2
    return h.reshape(B, S, D)


# ----------------------------------------------------------------------------
# Deterministic parameter construction (shapes follow the module __init__)
# ----------------------------------------------------------------------------
def _round_up(v, m):
    return m * ((v + m - 1) // m)


def init_params(key, dim, n_layers, n_heads, multiple_of):
    h1 = _round_up(int(4 / 3 * dim), multiple_of)          # RGLRUBlock hidden_dim
    head_dim = h1 // n_heads
    hf = _round_up(int(2 * (4 * dim) / 3), multiple_of)    # FeedForward hidden_dim
    layers = []
    for _ in range(n_layers):
        key, kwx, kwy, kig, kag, ka, kwo, kw1, kw2, kw3 = jax.random.split(key, 10)
        s_in, s_h1, s_hf = dim ** -0.5, h1 ** -0.5, hf ** -0.5
        # a init: uniform(0.9^2, 0.999^2) -> log -> *0.5 ; store -c*softplus(a)
        a_raw = 0.5 * jnp.log(jax.random.uniform(
            ka, (head_dim,), jnp.float32, 0.9 ** 2 + 1e-8, 0.999 ** 2 + 1e-8))
        a_neg = jnp.tile(-C_RGLRU * jax.nn.softplus(a_raw), (n_heads,))
        layers.append(dict(
            rms1_w=jnp.ones((dim,), jnp.float32),
            wx=(jax.random.normal(kwx, (dim, h1)) * s_in).astype(jnp.bfloat16),
            wy=(jax.random.normal(kwy, (dim, h1)) * s_in).astype(jnp.bfloat16),
            ig=(jax.random.normal(kig, (h1, h1)) * s_h1).astype(jnp.bfloat16),
            ag=(jax.random.normal(kag, (h1, h1)) * s_h1).astype(jnp.bfloat16),
            a_neg=a_neg.astype(jnp.float32),
            wo=(jax.random.normal(kwo, (h1, dim)) * s_h1).astype(jnp.bfloat16),
            rms2_w=jnp.ones((dim,), jnp.float32),
            w1=(jax.random.normal(kw1, (dim, hf)) * s_in).astype(jnp.bfloat16),
            w3=(jax.random.normal(kw3, (dim, hf)) * s_in).astype(jnp.bfloat16),
            w2=(jax.random.normal(kw2, (hf, dim)) * s_hf).astype(jnp.bfloat16),
        ))
    return dict(layers=layers)


# ----------------------------------------------------------------------------
# Pure-JAX reference (mirrors the bf16-input / f32-accumulate matmuls)
# ----------------------------------------------------------------------------
def _rms_ref(x, w, eps=EPS):
    return x * lax.rsqrt(jnp.mean(x * x, axis=-1, keepdims=True) + eps) * w


def _dot(a, b):
    return jnp.dot(a.astype(jnp.bfloat16), b, preferred_element_type=jnp.float32)


def ref_forward(x, params):
    B, S, _ = x.shape
    for lp in params["layers"]:
        xn = _rms_ref(x, lp["rms1_w"])
        wx_x = _dot(xn, lp["wx"])
        wy_x = _dot(xn, lp["wy"])
        gx = jax.nn.sigmoid(_dot(wx_x, lp["ig"]))
        ga = jax.nn.sigmoid(_dot(wx_x, lp["ag"]))
        a_t = jnp.exp(ga * lp["a_neg"])
        b_t = jnp.sqrt(1.0 - a_t * a_t) * gx * wx_x
        H1 = wx_x.shape[-1]

        def step(hs, ab):
            a, b = ab
            hs = a * hs + b
            return hs, hs

        _, hseq = lax.scan(step, jnp.zeros((B, H1), jnp.float32),
                           (jnp.swapaxes(a_t, 0, 1), jnp.swapaxes(b_t, 0, 1)))
        hh = jnp.swapaxes(hseq, 0, 1)
        hh = hh * (wy_x * jax.nn.sigmoid(wy_x))
        x = x + xn + _dot(hh, lp["wo"])                    # inner xn residual (RGLRUBlock)

        xn2 = _rms_ref(x, lp["rms2_w"])
        d1 = _dot(xn2, lp["w1"])
        d3 = _dot(xn2, lp["w3"])
        x = x + _dot(d1 * jax.nn.sigmoid(d1) * d3, lp["w2"])
    return x


# ----------------------------------------------------------------------------
if __name__ == "__main__":
    B, S, DIM = 2, 8, 128
    N_LAYERS, N_HEADS, MULTIPLE_OF = 2, 2, 128

    key = jax.random.PRNGKey(0)
    k_x, k_p = jax.random.split(key)
    x = jax.random.normal(k_x, (B, S, DIM), jnp.float32)
    tok_idx = jnp.tile(jnp.arange(S, dtype=jnp.int32)[None, :], (B, 1))
    cu_seqlens = jnp.array([0, S, 2 * S], dtype=jnp.int32)
    params = init_params(k_p, DIM, N_LAYERS, N_HEADS, MULTIPLE_OF)

    out = jax.jit(hawk_forward)(x, tok_idx, cu_seqlens, params)
    out = jax.block_until_ready(out)

    ref = ref_forward(x, params)
    assert out.shape == (B, S, DIM) and out.dtype == jnp.float32
    max_err = float(jnp.max(jnp.abs(out - ref)))
    assert jnp.allclose(out, ref, atol=2e-2, rtol=2e-2), f"max abs err {max_err}"
    print("KERNEL_OK")
</pallas_src>

<mosaic_0001>
module attributes {stable_mosaic.version = 11 : i64} {
  func.func @_scan_gate_kernel(%arg0: i32, %arg1: i32, %arg2: i32, %arg3: memref<1x8x256xf32, #tpu.memory_space<vmem>>, %arg4: memref<1x8x256xf32, #tpu.memory_space<vmem>>, %arg5: memref<1x8x256xf32, #tpu.memory_space<vmem>>, %arg6: memref<1x8x256xf32, #tpu.memory_space<vmem>>, %arg7: memref<1x256xf32, #tpu.memory_space<vmem>>) attributes {dimension_semantics = [#tpu.dimension_semantics<parallel>, #tpu.dimension_semantics<parallel>, #tpu.dimension_semantics<arbitrary>], iteration_bounds = array<i64: 2, 1, 1>, scalar_prefetch = 0 : i64, scratch_operands = 1 : i64, tpu.core_type = #tpu.core_type<tc>, window_params = [{transform_indices = @transform_0, window_bounds = array<i64: 1, 8, 256>}, {transform_indices = @transform_1, window_bounds = array<i64: 1, 8, 256>}, {transform_indices = @transform_2, window_bounds = array<i64: 1, 8, 256>}, {transform_indices = @transform_3, window_bounds = array<i64: 1, 8, 256>}]} {
    %c0_i32 = arith.constant 0 : i32
    %0 = arith.cmpi eq, %arg2, %c0_i32 : i32
    %1 = arith.extui %0 : i1 to i32
    %c0_i32_0 = arith.constant 0 : i32
    %2 = arith.cmpi ne, %1, %c0_i32_0 : i32
    scf.if %2 {
      %cst = arith.constant 0.000000e+00 : f32
      %7 = vector.broadcast %cst : f32 to vector<1x256xf32>
      %c0_6 = arith.constant 0 : index
      %c0_7 = arith.constant 0 : index
      %8 = vector.load %arg7[%c0_6, %c0_7] : memref<1x256xf32, #tpu.memory_space<vmem>>, vector<1x256xf32>
      tpu.vector_store %arg7[%c0_6, %c0_7], %7 {strides = array<i32>} : memref<1x256xf32, #tpu.memory_space<vmem>>, vector<1x256xf32>,
    } else {
    }
    %c0 = arith.constant 0 : index
    %c0_1 = arith.constant 0 : index
    %3 = vector.load %arg7[%c0, %c0_1] : memref<1x256xf32, #tpu.memory_space<vmem>>, vector<1x256xf32>
    %c0_i32_2 = arith.constant 0 : i32
    %c8_i32 = arith.constant 8 : i32
    %4 = arith.addi %c0_i32_2, %c8_i32 : i32
    %c1_i32 = arith.constant 1 : i32
    %5 = scf.for %arg8 = %c0_i32_2 to %4 step %c1_i32 iter_args(%arg9 = %3) -> (vector<1x256xf32>)  : i32 {
      %c0_6 = arith.constant 0 : index
      %7 = arith.index_cast %arg8 : i32 to index
      %c0_7 = arith.constant 0 : index
      %8 = vector.load %arg3[%c0_6, %7, %c0_7] : memref<1x8x256xf32, #tpu.memory_space<vmem>>, vector<1x1x256xf32>
      %9 = vector.shape_cast %8 : vector<1x1x256xf32> to vector<1x256xf32>
      %10 = arith.mulf %9, %arg9 : vector<1x256xf32>
      %c0_8 = arith.constant 0 : index
      %11 = arith.index_cast %arg8 : i32 to index
      %c0_9 = arith.constant 0 : index
      %12 = vector.load %arg4[%c0_8, %11, %c0_9] : memref<1x8x256xf32, #tpu.memory_space<vmem>>, vector<1x1x256xf32>
      %13 = vector.shape_cast %12 : vector<1x1x256xf32> to vector<1x256xf32>
      %14 = arith.addf %10, %13 : vector<1x256xf32>
      %c0_10 = arith.constant 0 : index
      %15 = arith.index_cast %arg8 : i32 to index
      %c0_11 = arith.constant 0 : index
      %16 = vector.load %arg5[%c0_10, %15, %c0_11] : memref<1x8x256xf32, #tpu.memory_space<vmem>>, vector<1x1x256xf32>
      %17 = vector.shape_cast %16 : vector<1x1x256xf32> to vector<1x256xf32>
      %18 = arith.mulf %14, %17 : vector<1x256xf32>
      %c0_12 = arith.constant 0 : index
      %19 = arith.index_cast %arg8 : i32 to index
      %c0_13 = arith.constant 0 : index
      %20 = vector.load %arg6[%c0_12, %19, %c0_13] : memref<1x8x256xf32, #tpu.memory_space<vmem>>, vector<1x1x256xf32>
      %21 = vector.shape_cast %20 : vector<1x1x256xf32> to vector<1x256xf32>
      %22 = vector.shape_cast %18 : vector<1x256xf32> to vector<1x1x256xf32>
      tpu.vector_store %arg6[%c0_12, %19, %c0_13], %22 {strides = array<i32>} : memref<1x8x256xf32, #tpu.memory_space<vmem>>, vector<1x1x256xf32>,
      scf.yield %14 : vector<1x256xf32>
    }
    %c8_i32_3 = arith.constant 8 : i32
    %c0_4 = arith.constant 0 : index
    %c0_5 = arith.constant 0 : index
    %6 = vector.load %arg7[%c0_4, %c0_5] : memref<1x256xf32, #tpu.memory_space<vmem>>, vector<1x256xf32>
    tpu.vector_store %arg7[%c0_4, %c0_5], %5 {strides = array<i32>} : memref<1x256xf32, #tpu.memory_space<vmem>>, vector<1x256xf32>,
    return
  }
  func.func @transform_0(%arg0: i32, %arg1: i32, %arg2: i32) -> (i32, i32, i32) {
    %c0_i32 = arith.constant 0 : i32
    return %arg0, %arg2, %arg1 : i32, i32, i32
  }
  func.func @transform_1(%arg0: i32, %arg1: i32, %arg2: i32) -> (i32, i32, i32) {
    %c0_i32 = arith.constant 0 : i32
    return %arg0, %arg2, %arg1 : i32, i32, i32
  }
  func.func @transform_2(%arg0: i32, %arg1: i32, %arg2: i32) -> (i32, i32, i32) {
    %c0_i32 = arith.constant 0 : i32
    return %arg0, %arg2, %arg1 : i32, i32, i32
  }
  func.func @transform_3(%arg0: i32, %arg1: i32, %arg2: i32) -> (i32, i32, i32) {
    %c0_i32 = arith.constant 0 : i32
    return %arg0, %arg2, %arg1 : i32, i32, i32
  }
}

module attributes {stable_mosaic.version = 11 : i64} {
  func.func @_gates_kernel(%arg0: i32, %arg1: i32, %arg2: i32, %arg3: memref<16x256xf32, #tpu.memory_space<vmem>>, %arg4: memref<256x256xbf16, #tpu.memory_space<vmem>>, %arg5: memref<256x256xbf16, #tpu.memory_space<vmem>>, %arg6: memref<16x256xf32, #tpu.memory_space<vmem>>, %arg7: memref<1x256xf32, #tpu.memory_space<vmem>>, %arg8: memref<16x256xf32, #tpu.memory_space<vmem>>, %arg9: memref<16x256xf32, #tpu.memory_space<vmem>>) attributes {dimension_semantics = [#tpu.dimension_semantics<parallel>, #tpu.dimension_semantics<parallel>, #tpu.dimension_semantics<arbitrary>], iteration_bounds = array<i64: 1, 1, 1>, scalar_prefetch = 0 : i64, scratch_operands = 0 : i64, tpu.core_type = #tpu.core_type<tc>, window_params = [{transform_indices = @transform_0, window_bounds = array<i64: 16, 256>}, {transform_indices = @transform_1, window_bounds = array<i64: 256, 256>}, {transform_indices = @transform_2, window_bounds = array<i64: 256, 256>}, {transform_indices = @transform_3, window_bounds = array<i64: 16, 256>}, {transform_indices = @transform_4, window_bounds = array<i64: 1, 256>}, {transform_indices = @transform_5, window_bounds = array<i64: 16, 256>}, {transform_indices = @transform_6, window_bounds = array<i64: 16, 256>}]} {
    %c0_i32 = arith.constant 0 : i32
    %0 = arith.cmpi eq, %arg2, %c0_i32 : i32
    %1 = arith.extui %0 : i1 to i32
    %c0_i32_0 = arith.constant 0 : i32
    %2 = arith.cmpi ne, %1, %c0_i32_0 : i32
    scf.if %2 {
      %cst_17 = arith.constant 0.000000e+00 : f32
      %18 = vector.broadcast %cst_17 : f32 to vector<16x256xf32>
      %c0_18 = arith.constant 0 : index
      %c0_19 = arith.constant 0 : index
      %19 = vector.load %arg8[%c0_18, %c0_19] : memref<16x256xf32, #tpu.memory_space<vmem>>, vector<16x256xf32>
      tpu.vector_store %arg8[%c0_18, %c0_19], %18 {strides = array<i32>} : memref<16x256xf32, #tpu.memory_space<vmem>>, vector<16x256xf32>,
      %cst_20 = arith.constant 0.000000e+00 : f32
      %20 = vector.broadcast %cst_20 : f32 to vector<16x256xf32>
      %c0_21 = arith.constant 0 : index
      %c0_22 = arith.constant 0 : index
      %21 = vector.load %arg9[%c0_21, %c0_22] : memref<16x256xf32, #tpu.memory_space<vmem>>, vector<16x256xf32>
      tpu.vector_store %arg9[%c0_21, %c0_22], %20 {strides = array<i32>} : memref<16x256xf32, #tpu.memory_space<vmem>>, vector<16x256xf32>,
    } else {
    }
    %c0 = arith.constant 0 : index
    %c0_1 = arith.constant 0 : index
    %3 = vector.load %arg3[%c0, %c0_1] : memref<16x256xf32, #tpu.memory_space<vmem>>, vector<16x256xf32>
    %4 = arith.truncf %3 : vector<16x256xf32> to vector<16x256xbf16>
    %c0_2 = arith.constant 0 : index
    %c0_3 = arith.constant 0 : index
    %5 = vector.load %arg8[%c0_2, %c0_3] : memref<16x256xf32, #tpu.memory_space<vmem>>, vector<16x256xf32>
    %c0_4 = arith.constant 0 : index
    %c0_5 = arith.constant 0 : index
    %6 = vector.load %arg4[%c0_4, %c0_5] : memref<256x256xbf16, #tpu.memory_space<vmem>>, vector<256x256xbf16>
    %cst = arith.constant dense<0.000000e+00> : vector<16x256xf32>
    %7 = tpu.matmul %4, %6, %cst {dimension_numbers = #tpu.dot_dimension_numbers<[1], [0], [0], [1], [0, 0, 1, 1], [], []>} : vector<16x256xbf16>, vector<256x256xbf16>, vector<16x256xf32> -> vector<16x256xf32>
    %8 = arith.addf %5, %7 : vector<16x256xf32>
    %c0_6 = arith.constant 0 : index
    %c0_7 = arith.constant 0 : index
    %9 = vector.load %arg8[%c0_6, %c0_7] : memref<16x256xf32, #tpu.memory_space<vmem>>, vector<16x256xf32>
    tpu.vector_store %arg8[%c0_6, %c0_7], %8 {strides = array<i32>} : memref<16x256xf32, #tpu.memory_space<vmem>>, vector<16x256xf32>,
    %c0_8 = arith.constant 0 : index
    %c0_9 = arith.constant 0 : index
    %10 = vector.load %arg9[%c0_8, %c0_9] : memref<16x256xf32, #tpu.memory_space<vmem>>, vector<16x256xf32>
    %c0_10 = arith.constant 0 : index
    %c0_11 = arith.constant 0 : index
    %11 = vector.load %arg5[%c0_10, %c0_11] : memref<256x256xbf16, #tpu.memory_space<vmem>>, vector<256x256xbf16>
    %cst_12 = arith.constant dense<0.000000e+00> : vector<16x256xf32>
    %12 = tpu.matmul %4, %11, %cst_12 {dimension_numbers = #tpu.dot_dimension_numbers<[1], [0], [0], [1], [0, 0, 1, 1], [], []>} : vector<16x256xbf16>, vector<256x256xbf16>, vector<16x256xf32> -> vector<16x256xf32>
    %13 = arith.addf %10, %12 : vector<16x256xf32>
    %c0_13 = arith.constant 0 : index
    %c0_14 = arith.constant 0 : index
    %14 = vector.load %arg9[%c0_13, %c0_14] : memref<16x256xf32, #tpu.memory_space<vmem>>, vector<16x256xf32>
    tpu.vector_store %arg9[%c0_13, %c0_14], %13 {strides = array<i32>} : memref<16x256xf32, #tpu.memory_space<vmem>>, vector<16x256xf32>,
    %c0_i32_15 = arith.constant 0 : i32
    %15 = arith.cmpi eq, %arg2, %c0_i32_15 : i32
    %16 = arith.extui %15 : i1 to i32
    %c0_i32_16 = arith.constant 0 : i32
    %17 = arith.cmpi ne, %16, %c0_i32_16 : i32
    scf.if %17 {
      %c0_17 = arith.constant 0 : index
      %c0_18 = arith.constant 0 : index
      %18 = vector.load %arg8[%c0_17, %c0_18] : memref<16x256xf32, #tpu.memory_space<vmem>>, vector<16x256xf32>
      %19 = arith.negf %18 : vector<16x256xf32>
      %20 = math.exp %19 : vector<16x256xf32>
      %cst_19 = arith.constant 1.000000e+00 : f32
      %21 = vector.broadcast %cst_19 : f32 to vector<16x256xf32>
      %22 = arith.addf %21, %20 : vector<16x256xf32>
      %23 = arith.divf %21, %22 : vector<16x256xf32>
      %c0_20 = arith.constant 0 : index
      %c0_21 = arith.constant 0 : index
      %24 = vector.load %arg9[%c0_20, %c0_21] : memref<16x256xf32, #tpu.memory_space<vmem>>, vector<16x256xf32>
      %25 = arith.negf %24 : vector<16x256xf32>
      %26 = math.exp %25 : vector<16x256xf32>
      %cst_22 = arith.constant 1.000000e+00 : f32
      %27 = vector.broadcast %cst_22 : f32 to vector<16x256xf32>
      %28 = arith.addf %27, %26 : vector<16x256xf32>
      %29 = arith.divf %27, %28 : vector<16x256xf32>
      %c0_23 = arith.constant 0 : index
      %c0_24 = arith.constant 0 : index
      %30 = vector.load %arg7[%c0_23, %c0_24] : memref<1x256xf32, #tpu.memory_space<vmem>>, vector<1x256xf32>
      %31 = vector.broadcast %30 : vector<1x256xf32> to vector<16x256xf32>
      %32 = arith.mulf %29, %31 : vector<16x256xf32>
      %33 = math.exp %32 : vector<16x256xf32>
      %34 = arith.mulf %33, %33 : vector<16x256xf32>
      %cst_25 = arith.constant 1.000000e+00 : f32
      %35 = vector.broadcast %cst_25 : f32 to vector<16x256xf32>
      %36 = arith.subf %35, %34 : vector<16x256xf32>
      %37 = math.sqrt %36 : vector<16x256xf32>
      %c0_26 = arith.constant 0 : index
      %c0_27 = arith.constant 0 : index
      %38 = vector.load %arg8[%c0_26, %c0_27] : memref<16x256xf32, #tpu.memory_space<vmem>>, vector<16x256xf32>
      tpu.vector_store %arg8[%c0_26, %c0_27], %33 {strides = array<i32>} : memref<16x256xf32, #tpu.memory_space<vmem>>, vector<16x256xf32>,
      %39 = arith.mulf %37, %23 : vector<16x256xf32>
      %c0_28 = arith.constant 0 : index
      %c0_29 = arith.constant 0 : index
      %40 = vector.load %arg6[%c0_28, %c0_29] : memref<16x256xf32, #tpu.memory_space<vmem>>, vector<16x256xf32>
      %41 = arith.mulf %39, %40 : vector<16x256xf32>
      %c0_30 = arith.constant 0 : index
      %c0_31 = arith.constant 0 : index
      %42 = vector.load %arg9[%c0_30, %c0_31] : memref<16x256xf32, #tpu.memory_space<vmem>>, vector<16x256xf32>
      tpu.vector_store %arg9[%c0_30, %c0_31], %41 {strides = array<i32>} : memref<16x256xf32, #tpu.memory_space<vmem>>, vector<16x256xf32>,
    } else {
    }
    return
  }
  func.func @transform_0(%arg0: i32, %arg1: i32, %arg2: i32) -> (i32, i32) {
    %c0_i32 = arith.constant 0 : i32
    return %arg0, %arg2 : i32, i32
  }
  func.func @transform_1(%arg0: i32, %arg1: i32, %arg2: i32) -> (i32, i32) {
    %c0_i32 = arith.constant 0 : i32
    return %arg2, %arg1 : i32, i32
  }
  func.func @transform_2(%arg0: i32, %arg1: i32, %arg2: i32) -> (i32, i32) {
    %c0_i32 = arith.constant 0 : i32
    return %arg2, %arg1 : i32, i32
  }
  func.func @transform_3(%arg0: i32, %arg1: i32, %arg2: i32) -> (i32, i32) {
    %c0_i32 = arith.constant 0 : i32
    return %arg0, %arg1 : i32, i32
  }
  func.func @transform_4(%arg0: i32, %arg1: i32, %arg2: i32) -> (i32, i32) {
    %c0_i32 = arith.constant 0 : i32
    %c0_i32_0 = arith.constant 0 : i32
    return %c0_i32, %arg1 : i32, i32
  }
  func.func @transform_5(%arg0: i32, %arg1: i32, %arg2: i32) -> (i32, i32) {
    %c0_i32 = arith.constant 0 : i32
    return %arg0, %arg1 : i32, i32
  }
  func.func @transform_6(%arg0: i32, %arg1: i32, %arg2: i32) -> (i32, i32) {
    %c0_i32 = arith.constant 0 : i32
    return %arg0, %arg1 : i32, i32
  }
}

module attributes {stable_mosaic.version = 11 : i64} {
  func.func @_mm_res2_kernel(%arg0: i32, %arg1: i32, %arg2: i32, %arg3: memref<16x256xf32, #tpu.memory_space<vmem>>, %arg4: memref<256x128xbf16, #tpu.memory_space<vmem>>, %arg5: memref<16x128xf32, #tpu.memory_space<vmem>>, %arg6: memref<16x128xf32, #tpu.memory_space<vmem>>, %arg7: memref<16x128xf32, #tpu.memory_space<vmem>>) attributes {dimension_semantics = [#tpu.dimension_semantics<parallel>, #tpu.dimension_semantics<parallel>, #tpu.dimension_semantics<arbitrary>], iteration_bounds = array<i64: 1, 1, 1>, scalar_prefetch = 0 : i64, scratch_operands = 0 : i64, tpu.core_type = #tpu.core_type<tc>, window_params = [{transform_indices = @transform_0, window_bounds = array<i64: 16, 256>}, {transform_indices = @transform_1, window_bounds = array<i64: 256, 128>}, {transform_indices = @transform_2, window_bounds = array<i64: 16, 128>}, {transform_indices = @transform_3, window_bounds = array<i64: 16, 128>}, {transform_indices = @transform_4, window_bounds = array<i64: 16, 128>}]} {
    %c0_i32 = arith.constant 0 : i32
    %0 = arith.cmpi eq, %arg2, %c0_i32 : i32
    %1 = arith.extui %0 : i1 to i32
    %c0_i32_0 = arith.constant 0 : i32
    %2 = arith.cmpi ne, %1, %c0_i32_0 : i32
    scf.if %2 {
      %c0_8 = arith.constant 0 : index
      %c0_9 = arith.constant 0 : index
      %10 = vector.load %arg5[%c0_8, %c0_9] : memref<16x128xf32, #tpu.memory_space<vmem>>, vector<16x128xf32>
      %c0_10 = arith.constant 0 : index
      %c0_11 = arith.constant 0 : index
      %11 = vector.load %arg6[%c0_10, %c0_11] : memref<16x128xf32, #tpu.memory_space<vmem>>, vector<16x128xf32>
      %12 = arith.addf %10, %11 : vector<16x128xf32>
      %c0_12 = arith.constant 0 : index
      %c0_13 = arith.constant 0 : index
      %13 = vector.load %arg7[%c0_12, %c0_13] : memref<16x128xf32, #tpu.memory_space<vmem>>, vector<16x128xf32>
      tpu.vector_store %arg7[%c0_12, %c0_13], %12 {strides = array<i32>} : memref<16x128xf32, #tpu.memory_space<vmem>>, vector<16x128xf32>,
    } else {
    }
    %c0 = arith.constant 0 : index
    %c0_1 = arith.constant 0 : index
    %3 = vector.load %arg7[%c0, %c0_1] : memref<16x128xf32, #tpu.memory_space<vmem>>, vector<16x128xf32>
    %c0_2 = arith.constant 0 : index
    %c0_3 = arith.constant 0 : index
    %4 = vector.load %arg3[%c0_2, %c0_3] : memref<16x256xf32, #tpu.memory_space<vmem>>, vector<16x256xf32>
    %5 = arith.truncf %4 : vector<16x256xf32> to vector<16x256xbf16>
    %c0_4 = arith.constant 0 : index
    %c0_5 = arith.constant 0 : index
    %6 = vector.load %arg4[%c0_4, %c0_5] : memref<256x128xbf16, #tpu.memory_space<vmem>>, vector<256x128xbf16>
    %cst = arith.constant dense<0.000000e+00> : vector<16x128xf32>
    %7 = tpu.matmul %5, %6, %cst {dimension_numbers = #tpu.dot_dimension_numbers<[1], [0], [0], [1], [0, 0, 1, 1], [], []>} : vector<16x256xbf16>, vector<256x128xbf16>, vector<16x128xf32> -> vector<16x128xf32>
    %8 = arith.addf %3, %7 : vector<16x128xf32>
    %c0_6 = arith.constant 0 : index
    %c0_7 = arith.constant 0 : index
    %9 = vector.load %arg7[%c0_6, %c0_7] : memref<16x128xf32, #tpu.memory_space<vmem>>, vector<16x128xf32>
    tpu.vector_store %arg7[%c0_6, %c0_7], %8 {strides = array<i32>} : memref<16x128xf32, #tpu.memory_space<vmem>>, vector<16x128xf32>,
    return
  }
  func.func @transform_0(%arg0: i32, %arg1: i32, %arg2: i32) -> (i32, i32) {
    %c0_i32 = arith.constant 0 : i32
    return %arg0, %arg2 : i32, i32
  }
  func.func @transform_1(%arg0: i32, %arg1: i32, %arg2: i32) -> (i32, i32) {
    %c0_i32 = arith.constant 0 : i32
    return %arg2, %arg1 : i32, i32
  }
  func.func @transform_2(%arg0: i32, %arg1: i32, %arg2: i32) -> (i32, i32) {
    %c0_i32 = arith.constant 0 : i32
    return %arg0, %arg1 : i32, i32
  }
  func.func @transform_3(%arg0: i32, %arg1: i32, %arg2: i32) -> (i32, i32) {
    %c0_i32 = arith.constant 0 : i32
    return %arg0, %arg1 : i32, i32
  }
  func.func @transform_4(%arg0: i32, %arg1: i32, %arg2: i32) -> (i32, i32) {
    %c0_i32 = arith.constant 0 : i32
    return %arg0, %arg1 : i32, i32
  }
}

module attributes {stable_mosaic.version = 11 : i64} {
  func.func @_norm_dual_mm_kernel(%arg0: i32, %arg1: i32, %arg2: memref<16x128xf32, #tpu.memory_space<vmem>>, %arg3: memref<1x128xf32, #tpu.memory_space<vmem>>, %arg4: memref<128x256xbf16, #tpu.memory_space<vmem>>, %arg5: memref<128x256xbf16, #tpu.memory_space<vmem>>, %arg6: memref<16x256xf32, #tpu.memory_space<vmem>>, %arg7: memref<16x256xf32, #tpu.memory_space<vmem>>, %arg8: memref<16x128xf32, #tpu.memory_space<vmem>>) attributes {dimension_semantics = [#tpu.dimension_semantics<parallel>, #tpu.dimension_semantics<arbitrary>], iteration_bounds = array<i64: 1, 1>, scalar_prefetch = 0 : i64, scratch_operands = 0 : i64, tpu.core_type = #tpu.core_type<tc>, window_params = [{transform_indices = @transform_0, window_bounds = array<i64: 16, 128>}, {pipeline_mode = #tpu.pipeline_mode<synchronous>, transform_indices = @transform_1, window_bounds = array<i64: 1, 128>}, {transform_indices = @transform_2, window_bounds = array<i64: 128, 256>}, {transform_indices = @transform_3, window_bounds = array<i64: 128, 256>}, {transform_indices = @transform_4, window_bounds = array<i64: 16, 256>}, {transform_indices = @transform_5, window_bounds = array<i64: 16, 256>}, {transform_indices = @transform_6, window_bounds = array<i64: 16, 128>}]} {
    %c0 = arith.constant 0 : index
    %c0_0 = arith.constant 0 : index
    %0 = vector.load %arg2[%c0, %c0_0] : memref<16x128xf32, #tpu.memory_space<vmem>>, vector<16x128xf32>
    %1 = arith.mulf %0, %0 : vector<16x128xf32>
    %cst = arith.constant dense<0.000000e+00> : vector<16xf32>
    %2 = vector.multi_reduction <add>, %1, %cst [1] : vector<16x128xf32> to vector<16xf32>
    %3 = vector.shape_cast %2 : vector<16xf32> to vector<16x1xf32>
    %cst_1 = arith.constant 1.280000e+02 : f32
    %4 = vector.broadcast %cst_1 : f32 to vector<16x1xf32>
    %5 = arith.divf %3, %4 : vector<16x1xf32>
    %cst_2 = arith.constant 9.99999974E-6 : f32
    %6 = vector.broadcast %cst_2 : f32 to vector<16x1xf32>
    %7 = arith.addf %5, %6 : vector<16x1xf32>
    %8 = math.rsqrt %7 : vector<16x1xf32>
    %9 = vector.broadcast %8 : vector<16x1xf32> to vector<16x128xf32>
    %10 = arith.mulf %0, %9 : vector<16x128xf32>
    %c0_3 = arith.constant 0 : index
    %c0_4 = arith.constant 0 : index
    %11 = vector.load %arg3[%c0_3, %c0_4] : memref<1x128xf32, #tpu.memory_space<vmem>>, vector<1x128xf32>
    %12 = vector.broadcast %11 : vector<1x128xf32> to vector<16x128xf32>
    %13 = arith.mulf %10, %12 : vector<16x128xf32>
    %c0_i32 = arith.constant 0 : i32
    %14 = arith.cmpi eq, %arg1, %c0_i32 : i32
    %15 = arith.extui %14 : i1 to i32
    %c0_i32_5 = arith.constant 0 : i32
    %16 = arith.cmpi ne, %15, %c0_i32_5 : i32
    scf.if %16 {
      %c0_17 = arith.constant 0 : index
      %c0_18 = arith.constant 0 : index
      %30 = vector.load %arg8[%c0_17, %c0_18] : memref<16x128xf32, #tpu.memory_space<vmem>>, vector<16x128xf32>
      tpu.vector_store %arg8[%c0_17, %c0_18], %13 {strides = array<i32>} : memref<16x128xf32, #tpu.memory_space<vmem>>, vector<16x128xf32>,
    } else {
    }
    %17 = arith.truncf %13 : vector<16x128xf32> to vector<16x128xbf16>
    %c0_6 = arith.constant 0 : index
    %c0_7 = arith.constant 0 : index
    %18 = vector.load %arg4[%c0_6, %c0_7] : memref<128x256xbf16, #tpu.memory_space<vmem>>, vector<128x256xbf16>
    %cst_8 = arith.constant dense<0.000000e+00> : vector<16x256xf32>
    %19 = tpu.matmul %17, %18, %cst_8 {dimension_numbers = #tpu.dot_dimension_numbers<[1], [0], [0], [1], [0, 0, 1, 1], [], []>} : vector<16x128xbf16>, vector<128x256xbf16>, vector<16x256xf32> -> vector<16x256xf32>
    %c0_9 = arith.constant 0 : index
    %c0_10 = arith.constant 0 : index
    %20 = vector.load %arg6[%c0_9, %c0_10] : memref<16x256xf32, #tpu.memory_space<vmem>>, vector<16x256xf32>
    tpu.vector_store %arg6[%c0_9, %c0_10], %19 {strides = array<i32>} : memref<16x256xf32, #tpu.memory_space<vmem>>, vector<16x256xf32>,
    %c0_11 = arith.constant 0 : index
    %c0_12 = arith.constant 0 : index
    %21 = vector.load %arg5[%c0_11, %c0_12] : memref<128x256xbf16, #tpu.memory_space<vmem>>, vector<128x256xbf16>
    %cst_13 = arith.constant dense<0.000000e+00> : vector<16x256xf32>
    %22 = tpu.matmul %17, %21, %cst_13 {dimension_numbers = #tpu.dot_dimension_numbers<[1], [0], [0], [1], [0, 0, 1, 1], [], []>} : vector<16x128xbf16>, vector<128x256xbf16>, vector<16x256xf32> -> vector<16x256xf32>
    %23 = arith.negf %22 : vector<16x256xf32>
    %24 = math.exp %23 : vector<16x256xf32>
    %cst_14 = arith.constant 1.000000e+00 : f32
    %25 = vector.broadcast %cst_14 : f32 to vector<16x256xf32>
    %26 = arith.addf %25, %24 : vector<16x256xf32>
    %27 = arith.divf %25, %26 : vector<16x256xf32>
    %28 = arith.mulf %22, %27 : vector<16x256xf32>
    %c0_15 = arith.constant 0 : index
    %c0_16 = arith.constant 0 : index
    %29 = vector.load %arg7[%c0_15, %c0_16] : memref<16x256xf32, #tpu.memory_space<vmem>>, vector<16x256xf32>
    tpu.vector_store %arg7[%c0_15, %c0_16], %28 {strides = array<i32>} : memref<16x256xf32, #tpu.memory_space<vmem>>, vector<16x256xf32>,
    return
  }
  func.func @transform_0(%arg0: i32, %arg1: i32) -> (i32, i32) {
    %c0_i32 = arith.constant 0 : i32
    %c0_i32_0 = arith.constant 0 : i32
    return %arg0, %c0_i32 : i32, i32
  }
  func.func @transform_1(%arg0: i32, %arg1: i32) -> (i32, i32) {
    %c0_i32 = arith.constant 0 : i32
    %c0_i32_0 = arith.constant 0 : i32
    %c0_i32_1 = arith.constant 0 : i32
    return %c0_i32, %c0_i32_0 : i32, i32
  }
  func.func @transform_2(%arg0: i32, %arg1: i32) -> (i32, i32) {
    %c0_i32 = arith.constant 0 : i32
    %c0_i32_0 = arith.constant 0 : i32
    return %c0_i32, %arg1 : i32, i32
  }
  func.func @transform_3(%arg0: i32, %arg1: i32) -> (i32, i32) {
    %c0_i32 = arith.constant 0 : i32
    %c0_i32_0 = arith.constant 0 : i32
    return %c0_i32, %arg1 : i32, i32
  }
  func.func @transform_4(%arg0: i32, %arg1: i32) -> (i32, i32) {
    %c0_i32 = arith.constant 0 : i32
    return %arg0, %arg1 : i32, i32
  }
  func.func @transform_5(%arg0: i32, %arg1: i32) -> (i32, i32) {
    %c0_i32 = arith.constant 0 : i32
    return %arg0, %arg1 : i32, i32
  }
  func.func @transform_6(%arg0: i32, %arg1: i32) -> (i32, i32) {
    %c0_i32 = arith.constant 0 : i32
    %c0_i32_0 = arith.constant 0 : i32
    return %arg0, %c0_i32 : i32, i32
  }
}

module attributes {stable_mosaic.version = 11 : i64} {
  func.func @_mm_res_kernel(%arg0: i32, %arg1: i32, %arg2: i32, %arg3: memref<16x384xf32, #tpu.memory_space<vmem>>, %arg4: memref<384x128xbf16, #tpu.memory_space<vmem>>, %arg5: memref<16x128xf32, #tpu.memory_space<vmem>>, %arg6: memref<16x128xf32, #tpu.memory_space<vmem>>) attributes {dimension_semantics = [#tpu.dimension_semantics<parallel>, #tpu.dimension_semantics<parallel>, #tpu.dimension_semantics<arbitrary>], iteration_bounds = array<i64: 1, 1, 1>, scalar_prefetch = 0 : i64, scratch_operands = 0 : i64, tpu.core_type = #tpu.core_type<tc>, window_params = [{transform_indices = @transform_0, window_bounds = array<i64: 16, 384>}, {transform_indices = @transform_1, window_bounds = array<i64: 384, 128>}, {transform_indices = @transform_2, window_bounds = array<i64: 16, 128>}, {transform_indices = @transform_3, window_bounds = array<i64: 16, 128>}]} {
    %c0_i32 = arith.constant 0 : i32
    %0 = arith.cmpi eq, %arg2, %c0_i32 : i32
    %1 = arith.extui %0 : i1 to i32
    %c0_i32_0 = arith.constant 0 : i32
    %2 = arith.cmpi ne, %1, %c0_i32_0 : i32
    scf.if %2 {
      %c0_8 = arith.constant 0 : index
      %c0_9 = arith.constant 0 : index
      %10 = vector.load %arg5[%c0_8, %c0_9] : memref<16x128xf32, #tpu.memory_space<vmem>>, vector<16x128xf32>
      %c0_10 = arith.constant 0 : index
      %c0_11 = arith.constant 0 : index
      %11 = vector.load %arg6[%c0_10, %c0_11] : memref<16x128xf32, #tpu.memory_space<vmem>>, vector<16x128xf32>
      tpu.vector_store %arg6[%c0_10, %c0_11], %10 {strides = array<i32>} : memref<16x128xf32, #tpu.memory_space<vmem>>, vector<16x128xf32>,
    } else {
    }
    %c0 = arith.constant 0 : index
    %c0_1 = arith.constant 0 : index
    %3 = vector.load %arg6[%c0, %c0_1] : memref<16x128xf32, #tpu.memory_space<vmem>>, vector<16x128xf32>
    %c0_2 = arith.constant 0 : index
    %c0_3 = arith.constant 0 : index
    %4 = vector.load %arg3[%c0_2, %c0_3] : memref<16x384xf32, #tpu.memory_space<vmem>>, vector<16x384xf32>
    %5 = arith.truncf %4 : vector<16x384xf32> to vector<16x384xbf16>
    %c0_4 = arith.constant 0 : index
    %c0_5 = arith.constant 0 : index
    %6 = vector.load %arg4[%c0_4, %c0_5] : memref<384x128xbf16, #tpu.memory_space<vmem>>, vector<384x128xbf16>
    %cst = arith.constant dense<0.000000e+00> : vector<16x128xf32>
    %7 = tpu.matmul %5, %6, %cst {dimension_numbers = #tpu.dot_dimension_numbers<[1], [0], [0], [1], [0, 0, 1, 1], [], []>} : vector<16x384xbf16>, vector<384x128xbf16>, vector<16x128xf32> -> vector<16x128xf32>
    %8 = arith.addf %3, %7 : vector<16x128xf32>
    %c0_6 = arith.constant 0 : index
    %c0_7 = arith.constant 0 : index
    %9 = vector.load %arg6[%c0_6, %c0_7] : memref<16x128xf32, #tpu.memory_space<vmem>>, vector<16x128xf32>
    tpu.vector_store %arg6[%c0_6, %c0_7], %8 {strides = array<i32>} : memref<16x128xf32, #tpu.memory_space<vmem>>, vector<16x128xf32>,
    return
  }
  func.func @transform_0(%arg0: i32, %arg1: i32, %arg2: i32) -> (i32, i32) {
    %c0_i32 = arith.constant 0 : i32
    return %arg0, %arg2 : i32, i32
  }
  func.func @transform_1(%arg0: i32, %arg1: i32, %arg2: i32) -> (i32, i32) {
    %c0_i32 = arith.constant 0 : i32
    return %arg2, %arg1 : i32, i32
  }
  func.func @transform_2(%arg0: i32, %arg1: i32, %arg2: i32) -> (i32, i32) {
    %c0_i32 = arith.constant 0 : i32
    return %arg0, %arg1 : i32, i32
  }
  func.func @transform_3(%arg0: i32, %arg1: i32, %arg2: i32) -> (i32, i32) {
    %c0_i32 = arith.constant 0 : i32
    return %arg0, %arg1 : i32, i32
  }
}

module attributes {stable_mosaic.version = 11 : i64} {
  func.func @_norm_swiglu_kernel(%arg0: i32, %arg1: i32, %arg2: memref<16x128xf32, #tpu.memory_space<vmem>>, %arg3: memref<1x128xf32, #tpu.memory_space<vmem>>, %arg4: memref<128x128xbf16, #tpu.memory_space<vmem>>, %arg5: memref<128x128xbf16, #tpu.memory_space<vmem>>, %arg6: memref<16x128xf32, #tpu.memory_space<vmem>>) attributes {dimension_semantics = [#tpu.dimension_semantics<parallel>, #tpu.dimension_semantics<parallel>], iteration_bounds = array<i64: 1, 3>, scalar_prefetch = 0 : i64, scratch_operands = 0 : i64, tpu.core_type = #tpu.core_type<tc>, window_params = [{transform_indices = @transform_0, window_bounds = array<i64: 16, 128>}, {pipeline_mode = #tpu.pipeline_mode<synchronous>, transform_indices = @transform_1, window_bounds = array<i64: 1, 128>}, {transform_indices = @transform_2, window_bounds = array<i64: 128, 128>}, {transform_indices = @transform_3, window_bounds = array<i64: 128, 128>}, {transform_indices = @transform_4, window_bounds = array<i64: 16, 128>}]} {
    %c0 = arith.constant 0 : index
    %c0_0 = arith.constant 0 : index
    %0 = vector.load %arg2[%c0, %c0_0] : memref<16x128xf32, #tpu.memory_space<vmem>>, vector<16x128xf32>
    %1 = arith.mulf %0, %0 : vector<16x128xf32>
    %cst = arith.constant dense<0.000000e+00> : vector<16xf32>
    %2 = vector.multi_reduction <add>, %1, %cst [1] : vector<16x128xf32> to vector<16xf32>
    %3 = vector.shape_cast %2 : vector<16xf32> to vector<16x1xf32>
    %cst_1 = arith.constant 1.280000e+02 : f32
    %4 = vector.broadcast %cst_1 : f32 to vector<16x1xf32>
    %5 = arith.divf %3, %4 : vector<16x1xf32>
    %cst_2 = arith.constant 9.99999974E-6 : f32
    %6 = vector.broadcast %cst_2 : f32 to vector<16x1xf32>
    %7 = arith.addf %5, %6 : vector<16x1xf32>
    %8 = math.rsqrt %7 : vector<16x1xf32>
    %9 = vector.broadcast %8 : vector<16x1xf32> to vector<16x128xf32>
    %10 = arith.mulf %0, %9 : vector<16x128xf32>
    %c0_3 = arith.constant 0 : index
    %c0_4 = arith.constant 0 : index
    %11 = vector.load %arg3[%c0_3, %c0_4] : memref<1x128xf32, #tpu.memory_space<vmem>>, vector<1x128xf32>
    %12 = vector.broadcast %11 : vector<1x128xf32> to vector<16x128xf32>
    %13 = arith.mulf %10, %12 : vector<16x128xf32>
    %14 = arith.truncf %13 : vector<16x128xf32> to vector<16x128xbf16>
    %c0_5 = arith.constant 0 : index
    %c0_6 = arith.constant 0 : index
    %15 = vector.load %arg4[%c0_5, %c0_6] : memref<128x128xbf16, #tpu.memory_space<vmem>>, vector<128x128xbf16>
    %cst_7 = arith.constant dense<0.000000e+00> : vector<16x128xf32>
    %16 = tpu.matmul %14, %15, %cst_7 {dimension_numbers = #tpu.dot_dimension_numbers<[1], [0], [0], [1], [0, 0, 1, 1], [], []>} : vector<16x128xbf16>, vector<128x128xbf16>, vector<16x128xf32> -> vector<16x128xf32>
    %c0_8 = arith.constant 0 : index
    %c0_9 = arith.constant 0 : index
    %17 = vector.load %arg5[%c0_8, %c0_9] : memref<128x128xbf16, #tpu.memory_space<vmem>>, vector<128x128xbf16>
    %cst_10 = arith.constant dense<0.000000e+00> : vector<16x128xf32>
    %18 = tpu.matmul %14, %17, %cst_10 {dimension_numbers = #tpu.dot_dimension_numbers<[1], [0], [0], [1], [0, 0, 1, 1], [], []>} : vector<16x128xbf16>, vector<128x128xbf16>, vector<16x128xf32> -> vector<16x128xf32>
    %19 = arith.negf %16 : vector<16x128xf32>
    %20 = math.exp %19 : vector<16x128xf32>
    %cst_11 = arith.constant 1.000000e+00 : f32
    %21 = vector.broadcast %cst_11 : f32 to vector<16x128xf32>
    %22 = arith.addf %21, %20 : vector<16x128xf32>
    %23 = arith.divf %21, %22 : vector<16x128xf32>
    %24 = arith.mulf %16, %23 : vector<16x128xf32>
    %25 = arith.mulf %24, %18 : vector<16x128xf32>
    %c0_12 = arith.constant 0 : index
    %c0_13 = arith.constant 0 : index
    %26 = vector.load %arg6[%c0_12, %c0_13] : memref<16x128xf32, #tpu.memory_space<vmem>>, vector<16x128xf32>
    tpu.vector_store %arg6[%c0_12, %c0_13], %25 {strides = array<i32>} : memref<16x128xf32, #tpu.memory_space<vmem>>, vector<16x128xf32>,
    return
  }
  func.func @transform_0(%arg0: i32, %arg1: i32) -> (i32, i32) {
    %c0_i32 = arith.constant 0 : i32
    %c0_i32_0 = arith.constant 0 : i32
    return %arg0, %c0_i32 : i32, i32
  }
  func.func @transform_1(%arg0: i32, %arg1: i32) -> (i32, i32) {
    %c0_i32 = arith.constant 0 : i32
    %c0_i32_0 = arith.constant 0 : i32
    %c0_i32_1 = arith.constant 0 : i32
    return %c0_i32, %c0_i32_0 : i32, i32
  }
  func.func @transform_2(%arg0: i32, %arg1: i32) -> (i32, i32) {
    %c0_i32 = arith.constant 0 : i32
    %c0_i32_0 = arith.constant 0 : i32
    return %c0_i32, %arg1 : i32, i32
  }
  func.func @transform_3(%arg0: i32, %arg1: i32) -> (i32, i32) {
    %c0_i32 = arith.constant 0 : i32
    %c0_i32_0 = arith.constant 0 : i32
    return %c0_i32, %arg1 : i32, i32
  }
  func.func @transform_4(%arg0: i32, %arg1: i32) -> (i32, i32) {
    %c0_i32 = arith.constant 0 : i32
    return %arg0, %arg1 : i32, i32
  }
}

module attributes {stable_mosaic.version = 11 : i64} {
  func.func @_norm_dual_mm_kernel(%arg0: i32, %arg1: i32, %arg2: memref<16x128xf32, #tpu.memory_space<vmem>>, %arg3: memref<1x128xf32, #tpu.memory_space<vmem>>, %arg4: memref<128x256xbf16, #tpu.memory_space<vmem>>, %arg5: memref<128x256xbf16, #tpu.memory_space<vmem>>, %arg6: memref<16x256xf32, #tpu.memory_space<vmem>>, %arg7: memref<16x256xf32, #tpu.memory_space<vmem>>, %arg8: memref<16x128xf32, #tpu.memory_space<vmem>>) attributes {dimension_semantics = [#tpu.dimension_semantics<parallel>, #tpu.dimension_semantics<arbitrary>], iteration_bounds = array<i64: 1, 1>, scalar_prefetch = 0 : i64, scratch_operands = 0 : i64, tpu.core_type = #tpu.core_type<tc>, window_params = [{transform_indices = @transform_0, window_bounds = array<i64: 16, 128>}, {pipeline_mode = #tpu.pipeline_mode<synchronous>, transform_indices = @transform_1, window_bounds = array<i64: 1, 128>}, {transform_indices = @transform_2, window_bounds = array<i64: 128, 256>}, {transform_indices = @transform_3, window_bounds = array<i64: 128, 256>}, {transform_indices = @transform_4, window_bounds = array<i64: 16, 256>}, {transform_indices = @transform_5, window_bounds = array<i64: 16, 256>}, {transform_indices = @transform_6, window_bounds = array<i64: 16, 128>}]} {
    %c0 = arith.constant 0 : index
    %c0_0 = arith.constant 0 : index
    %0 = vector.load %arg2[%c0, %c0_0] : memref<16x128xf32, #tpu.memory_space<vmem>>, vector<16x128xf32>
    %1 = arith.mulf %0, %0 : vector<16x128xf32>
    %cst = arith.constant dense<0.000000e+00> : vector<16xf32>
    %2 = vector.multi_reduction <add>, %1, %cst [1] : vector<16x128xf32> to vector<16xf32>
    %3 = vector.shape_cast %2 : vector<16xf32> to vector<16x1xf32>
    %cst_1 = arith.constant 1.280000e+02 : f32
    %4 = vector.broadcast %cst_1 : f32 to vector<16x1xf32>
    %5 = arith.divf %3, %4 : vector<16x1xf32>
    %cst_2 = arith.constant 9.99999974E-6 : f32
    %6 = vector.broadcast %cst_2 : f32 to vector<16x1xf32>
    %7 = arith.addf %5, %6 : vector<16x1xf32>
    %8 = math.rsqrt %7 : vector<16x1xf32>
    %9 = vector.broadcast %8 : vector<16x1xf32> to vector<16x128xf32>
    %10 = arith.mulf %0, %9 : vector<16x128xf32>
    %c0_3 = arith.constant 0 : index
    %c0_4 = arith.constant 0 : index
    %11 = vector.load %arg3[%c0_3, %c0_4] : memref<1x128xf32, #tpu.memory_space<vmem>>, vector<1x128xf32>
    %12 = vector.broadcast %11 : vector<1x128xf32> to vector<16x128xf32>
    %13 = arith.mulf %10, %12 : vector<16x128xf32>
    %c0_i32 = arith.constant 0 : i32
    %14 = arith.cmpi eq, %arg1, %c0_i32 : i32
    %15 = arith.extui %14 : i1 to i32
    %c0_i32_5 = arith.constant 0 : i32
    %16 = arith.cmpi ne, %15, %c0_i32_5 : i32
    scf.if %16 {
      %c0_17 = arith.constant 0 : index
      %c0_18 = arith.constant 0 : index
      %30 = vector.load %arg8[%c0_17, %c0_18] : memref<16x128xf32, #tpu.memory_space<vmem>>, vector<16x128xf32>
      tpu.vector_store %arg8[%c0_17, %c0_18], %13 {strides = array<i32>} : memref<16x128xf32, #tpu.memory_space<vmem>>, vector<16x128xf32>,
    } else {
    }
    %17 = arith.truncf %13 : vector<16x128xf32> to vector<16x128xbf16>
    %c0_6 = arith.constant 0 : index
    %c0_7 = arith.constant 0 : index
    %18 = vector.load %arg4[%c0_6, %c0_7] : memref<128x256xbf16, #tpu.memory_space<vmem>>, vector<128x256xbf16>
    %cst_8 = arith.constant dense<0.000000e+00> : vector<16x256xf32>
    %19 = tpu.matmul %17, %18, %cst_8 {dimension_numbers = #tpu.dot_dimension_numbers<[1], [0], [0], [1], [0, 0, 1, 1], [], []>} : vector<16x128xbf16>, vector<128x256xbf16>, vector<16x256xf32> -> vector<16x256xf32>
    %c0_9 = arith.constant 0 : index
    %c0_10 = arith.constant 0 : index
    %20 = vector.load %arg6[%c0_9, %c0_10] : memref<16x256xf32, #tpu.memory_space<vmem>>, vector<16x256xf32>
    tpu.vector_store %arg6[%c0_9, %c0_10], %19 {strides = array<i32>} : memref<16x256xf32, #tpu.memory_space<vmem>>, vector<16x256xf32>,
    %c0_11 = arith.constant 0 : index
    %c0_12 = arith.constant 0 : index
    %21 = vector.load %arg5[%c0_11, %c0_12] : memref<128x256xbf16, #tpu.memory_space<vmem>>, vector<128x256xbf16>
    %cst_13 = arith.constant dense<0.000000e+00> : vector<16x256xf32>
    %22 = tpu.matmul %17, %21, %cst_13 {dimension_numbers = #tpu.dot_dimension_numbers<[1], [0], [0], [1], [0, 0, 1, 1], [], []>} : vector<16x128xbf16>, vector<128x256xbf16>, vector<16x256xf32> -> vector<16x256xf32>
    %23 = arith.negf %22 : vector<16x256xf32>
    %24 = math.exp %23 : vector<16x256xf32>
    %cst_14 = arith.constant 1.000000e+00 : f32
    %25 = vector.broadcast %cst_14 : f32 to vector<16x256xf32>
    %26 = arith.addf %25, %24 : vector<16x256xf32>
    %27 = arith.divf %25, %26 : vector<16x256xf32>
    %28 = arith.mulf %22, %27 : vector<16x256xf32>
    %c0_15 = arith.constant 0 : index
    %c0_16 = arith.constant 0 : index
    %29 = vector.load %arg7[%c0_15, %c0_16] : memref<16x256xf32, #tpu.memory_space<vmem>>, vector<16x256xf32>
    tpu.vector_store %arg7[%c0_15, %c0_16], %28 {strides = array<i32>} : memref<16x256xf32, #tpu.memory_space<vmem>>, vector<16x256xf32>,
    return
  }
  func.func @transform_0(%arg0: i32, %arg1: i32) -> (i32, i32) {
    %c0_i32 = arith.constant 0 : i32
    %c0_i32_0 = arith.constant 0 : i32
    return %arg0, %c0_i32 : i32, i32
  }
  func.func @transform_1(%arg0: i32, %arg1: i32) -> (i32, i32) {
    %c0_i32 = arith.constant 0 : i32
    %c0_i32_0 = arith.constant 0 : i32
    %c0_i32_1 = arith.constant 0 : i32
    return %c0_i32, %c0_i32_0 : i32, i32
  }
  func.func @transform_2(%arg0: i32, %arg1: i32) -> (i32, i32) {
    %c0_i32 = arith.constant 0 : i32
    %c0_i32_0 = arith.constant 0 : i32
    return %c0_i32, %arg1 : i32, i32
  }
  func.func @transform_3(%arg0: i32, %arg1: i32) -> (i32, i32) {
    %c0_i32 = arith.constant 0 : i32
    %c0_i32_0 = arith.constant 0 : i32
    return %c0_i32, %arg1 : i32, i32
  }
  func.func @transform_4(%arg0: i32, %arg1: i32) -> (i32, i32) {
    %c0_i32 = arith.constant 0 : i32
    return %arg0, %arg1 : i32, i32
  }
  func.func @transform_5(%arg0: i32, %arg1: i32) -> (i32, i32) {
    %c0_i32 = arith.constant 0 : i32
    return %arg0, %arg1 : i32, i32
  }
  func.func @transform_6(%arg0: i32, %arg1: i32) -> (i32, i32) {
    %c0_i32 = arith.constant 0 : i32
    %c0_i32_0 = arith.constant 0 : i32
    return %arg0, %c0_i32 : i32, i32
  }
}

module attributes {stable_mosaic.version = 11 : i64} {
  func.func @_gates_kernel(%arg0: i32, %arg1: i32, %arg2: i32, %arg3: memref<16x256xf32, #tpu.memory_space<vmem>>, %arg4: memref<256x256xbf16, #tpu.memory_space<vmem>>, %arg5: memref<256x256xbf16, #tpu.memory_space<vmem>>, %arg6: memref<16x256xf32, #tpu.memory_space<vmem>>, %arg7: memref<1x256xf32, #tpu.memory_space<vmem>>, %arg8: memref<16x256xf32, #tpu.memory_space<vmem>>, %arg9: memref<16x256xf32, #tpu.memory_space<vmem>>) attributes {dimension_semantics = [#tpu.dimension_semantics<parallel>, #tpu.dimension_semantics<parallel>, #tpu.dimension_semantics<arbitrary>], iteration_bounds = array<i64: 1, 1, 1>, scalar_prefetch = 0 : i64, scratch_operands = 0 : i64, tpu.core_type = #tpu.core_type<tc>, window_params = [{transform_indices = @transform_0, window_bounds = array<i64: 16, 256>}, {transform_indices = @transform_1, window_bounds = array<i64: 256, 256>}, {transform_indices = @transform_2, window_bounds = array<i64: 256, 256>}, {transform_indices = @transform_3, window_bounds = array<i64: 16, 256>}, {transform_indices = @transform_4, window_bounds = array<i64: 1, 256>}, {transform_indices = @transform_5, window_bounds = array<i64: 16, 256>}, {transform_indices = @transform_6, window_bounds = array<i64: 16, 256>}]} {
    %c0_i32 = arith.constant 0 : i32
    %0 = arith.cmpi eq, %arg2, %c0_i32 : i32
    %1 = arith.extui %0 : i1 to i32
    %c0_i32_0 = arith.constant 0 : i32
    %2 = arith.cmpi ne, %1, %c0_i32_0 : i32
    scf.if %2 {
      %cst_17 = arith.constant 0.000000e+00 : f32
      %18 = vector.broadcast %cst_17 : f32 to vector<16x256xf32>
      %c0_18 = arith.constant 0 : index
      %c0_19 = arith.constant 0 : index
      %19 = vector.load %arg8[%c0_18, %c0_19] : memref<16x256xf32, #tpu.memory_space<vmem>>, vector<16x256xf32>
      tpu.vector_store %arg8[%c0_18, %c0_19], %18 {strides = array<i32>} : memref<16x256xf32, #tpu.memory_space<vmem>>, vector<16x256xf32>,
      %cst_20 = arith.constant 0.000000e+00 : f32
      %20 = vector.broadcast %cst_20 : f32 to vector<16x256xf32>
      %c0_21 = arith.constant 0 : index
      %c0_22 = arith.constant 0 : index
      %21 = vector.load %arg9[%c0_21, %c0_22] : memref<16x256xf32, #tpu.memory_space<vmem>>, vector<16x256xf32>
      tpu.vector_store %arg9[%c0_21, %c0_22], %20 {strides = array<i32>} : memref<16x256xf32, #tpu.memory_space<vmem>>, vector<16x256xf32>,
    } else {
    }
    %c0 = arith.constant 0 : index
    %c0_1 = arith.constant 0 : index
    %3 = vector.load %arg3[%c0, %c0_1] : memref<16x256xf32, #tpu.memory_space<vmem>>, vector<16x256xf32>
    %4 = arith.truncf %3 : vector<16x256xf32> to vector<16x256xbf16>
    %c0_2 = arith.constant 0 : index
    %c0_3 = arith.constant 0 : index
    %5 = vector.load %arg8[%c0_2, %c0_3] : memref<16x256xf32, #tpu.memory_space<vmem>>, vector<16x256xf32>
    %c0_4 = arith.constant 0 : index
    %c0_5 = arith.constant 0 : index
    %6 = vector.load %arg4[%c0_4, %c0_5] : memref<256x256xbf16, #tpu.memory_space<vmem>>, vector<256x256xbf16>
    %cst = arith.constant dense<0.000000e+00> : vector<16x256xf32>
    %7 = tpu.matmul %4, %6, %cst {dimension_numbers = #tpu.dot_dimension_numbers<[1], [0], [0], [1], [0, 0, 1, 1], [], []>} : vector<16x256xbf16>, vector<256x256xbf16>, vector<16x256xf32> -> vector<16x256xf32>
    %8 = arith.addf %5, %7 : vector<16x256xf32>
    %c0_6 = arith.constant 0 : index
    %c0_7 = arith.constant 0 : index
    %9 = vector.load %arg8[%c0_6, %c0_7] : memref<16x256xf32, #tpu.memory_space<vmem>>, vector<16x256xf32>
    tpu.vector_store %arg8[%c0_6, %c0_7], %8 {strides = array<i32>} : memref<16x256xf32, #tpu.memory_space<vmem>>, vector<16x256xf32>,
    %c0_8 = arith.constant 0 : index
    %c0_9 = arith.constant 0 : index
    %10 = vector.load %arg9[%c0_8, %c0_9] : memref<16x256xf32, #tpu.memory_space<vmem>>, vector<16x256xf32>
    %c0_10 = arith.constant 0 : index
    %c0_11 = arith.constant 0 : index
    %11 = vector.load %arg5[%c0_10, %c0_11] : memref<256x256xbf16, #tpu.memory_space<vmem>>, vector<256x256xbf16>
    %cst_12 = arith.constant dense<0.000000e+00> : vector<16x256xf32>
    %12 = tpu.matmul %4, %11, %cst_12 {dimension_numbers = #tpu.dot_dimension_numbers<[1], [0], [0], [1], [0, 0, 1, 1], [], []>} : vector<16x256xbf16>, vector<256x256xbf16>, vector<16x256xf32> -> vector<16x256xf32>
    %13 = arith.addf %10, %12 : vector<16x256xf32>
    %c0_13 = arith.constant 0 : index
    %c0_14 = arith.constant 0 : index
    %14 = vector.load %arg9[%c0_13, %c0_14] : memref<16x256xf32, #tpu.memory_space<vmem>>, vector<16x256xf32>
    tpu.vector_store %arg9[%c0_13, %c0_14], %13 {strides = array<i32>} : memref<16x256xf32, #tpu.memory_space<vmem>>, vector<16x256xf32>,
    %c0_i32_15 = arith.constant 0 : i32
    %15 = arith.cmpi eq, %arg2, %c0_i32_15 : i32
    %16 = arith.extui %15 : i1 to i32
    %c0_i32_16 = arith.constant 0 : i32
    %17 = arith.cmpi ne, %16, %c0_i32_16 : i32
    scf.if %17 {
      %c0_17 = arith.constant 0 : index
      %c0_18 = arith.constant 0 : index
      %18 = vector.load %arg8[%c0_17, %c0_18] : memref<16x256xf32, #tpu.memory_space<vmem>>, vector<16x256xf32>
      %19 = arith.negf %18 : vector<16x256xf32>
      %20 = math.exp %19 : vector<16x256xf32>
      %cst_19 = arith.constant 1.000000e+00 : f32
      %21 = vector.broadcast %cst_19 : f32 to vector<16x256xf32>
      %22 = arith.addf %21, %20 : vector<16x256xf32>
      %23 = arith.divf %21, %22 : vector<16x256xf32>
      %c0_20 = arith.constant 0 : index
      %c0_21 = arith.constant 0 : index
      %24 = vector.load %arg9[%c0_20, %c0_21] : memref<16x256xf32, #tpu.memory_space<vmem>>, vector<16x256xf32>
      %25 = arith.negf %24 : vector<16x256xf32>
      %26 = math.exp %25 : vector<16x256xf32>
      %cst_22 = arith.constant 1.000000e+00 : f32
      %27 = vector.broadcast %cst_22 : f32 to vector<16x256xf32>
      %28 = arith.addf %27, %26 : vector<16x256xf32>
      %29 = arith.divf %27, %28 : vector<16x256xf32>
      %c0_23 = arith.constant 0 : index
      %c0_24 = arith.constant 0 : index
      %30 = vector.load %arg7[%c0_23, %c0_24] : memref<1x256xf32, #tpu.memory_space<vmem>>, vector<1x256xf32>
      %31 = vector.broadcast %30 : vector<1x256xf32> to vector<16x256xf32>
      %32 = arith.mulf %29, %31 : vector<16x256xf32>
      %33 = math.exp %32 : vector<16x256xf32>
      %34 = arith.mulf %33, %33 : vector<16x256xf32>
      %cst_25 = arith.constant 1.000000e+00 : f32
      %35 = vector.broadcast %cst_25 : f32 to vector<16x256xf32>
      %36 = arith.subf %35, %34 : vector<16x256xf32>
      %37 = math.sqrt %36 : vector<16x256xf32>
      %c0_26 = arith.constant 0 : index
      %c0_27 = arith.constant 0 : index
      %38 = vector.load %arg8[%c0_26, %c0_27] : memref<16x256xf32, #tpu.memory_space<vmem>>, vector<16x256xf32>
      tpu.vector_store %arg8[%c0_26, %c0_27], %33 {strides = array<i32>} : memref<16x256xf32, #tpu.memory_space<vmem>>, vector<16x256xf32>,
      %39 = arith.mulf %37, %23 : vector<16x256xf32>
      %c0_28 = arith.constant 0 : index
      %c0_29 = arith.constant 0 : index
      %40 = vector.load %arg6[%c0_28, %c0_29] : memref<16x256xf32, #tpu.memory_space<vmem>>, vector<16x256xf32>
      %41 = arith.mulf %39, %40 : vector<16x256xf32>
      %c0_30 = arith.constant 0 : index
      %c0_31 = arith.constant 0 : index
      %42 = vector.load %arg9[%c0_30, %c0_31] : memref<16x256xf32, #tpu.memory_space<vmem>>, vector<16x256xf32>
      tpu.vector_store %arg9[%c0_30, %c0_31], %41 {strides = array<i32>} : memref<16x256xf32, #tpu.memory_space<vmem>>, vector<16x256xf32>,
    } else {
    }
    return
  }
  func.func @transform_0(%arg0: i32, %arg1: i32, %arg2: i32) -> (i32, i32) {
    %c0_i32 = arith.constant 0 : i32
    return %arg0, %arg2 : i32, i32
  }
  func.func @transform_1(%arg0: i32, %arg1: i32, %arg2: i32) -> (i32, i32) {
    %c0_i32 = arith.constant 0 : i32
    return %arg2, %arg1 : i32, i32
  }
  func.func @transform_2(%arg0: i32, %arg1: i32, %arg2: i32) -> (i32, i32) {
    %c0_i32 = arith.constant 0 : i32
    return %arg2, %arg1 : i32, i32
  }
  func.func @transform_3(%arg0: i32, %arg1: i32, %arg2: i32) -> (i32, i32) {
    %c0_i32 = arith.constant 0 : i32
    return %arg0, %arg1 : i32, i32
  }
  func.func @transform_4(%arg0: i32, %arg1: i32, %arg2: i32) -> (i32, i32) {
    %c0_i32 = arith.constant 0 : i32
    %c0_i32_0 = arith.constant 0 : i32
    return %c0_i32, %arg1 : i32, i32
  }
  func.func @transform_5(%arg0: i32, %arg1: i32, %arg2: i32) -> (i32, i32) {
    %c0_i32 = arith.constant 0 : i32
    return %arg0, %arg1 : i32, i32
  }
  func.func @transform_6(%arg0: i32, %arg1: i32, %arg2: i32) -> (i32, i32) {
    %c0_i32 = arith.constant 0 : i32
    return %arg0, %arg1 : i32, i32
  }
}

module attributes {stable_mosaic.version = 11 : i64} {
  func.func @_mm_res_kernel(%arg0: i32, %arg1: i32, %arg2: i32, %arg3: memref<16x384xf32, #tpu.memory_space<vmem>>, %arg4: memref<384x128xbf16, #tpu.memory_space<vmem>>, %arg5: memref<16x128xf32, #tpu.memory_space<vmem>>, %arg6: memref<16x128xf32, #tpu.memory_space<vmem>>) attributes {dimension_semantics = [#tpu.dimension_semantics<parallel>, #tpu.dimension_semantics<parallel>, #tpu.dimension_semantics<arbitrary>], iteration_bounds = array<i64: 1, 1, 1>, scalar_prefetch = 0 : i64, scratch_operands = 0 : i64, tpu.core_type = #tpu.core_type<tc>, window_params = [{transform_indices = @transform_0, window_bounds = array<i64: 16, 384>}, {transform_indices = @transform_1, window_bounds = array<i64: 384, 128>}, {transform_indices = @transform_2, window_bounds = array<i64: 16, 128>}, {transform_indices = @transform_3, window_bounds = array<i64: 16, 128>}]} {
    %c0_i32 = arith.constant 0 : i32
    %0 = arith.cmpi eq, %arg2, %c0_i32 : i32
    %1 = arith.extui %0 : i1 to i32
    %c0_i32_0 = arith.constant 0 : i32
    %2 = arith.cmpi ne, %1, %c0_i32_0 : i32
    scf.if %2 {
      %c0_8 = arith.constant 0 : index
      %c0_9 = arith.constant 0 : index
      %10 = vector.load %arg5[%c0_8, %c0_9] : memref<16x128xf32, #tpu.memory_space<vmem>>, vector<16x128xf32>
      %c0_10 = arith.constant 0 : index
      %c0_11 = arith.constant 0 : index
      %11 = vector.load %arg6[%c0_10, %c0_11] : memref<16x128xf32, #tpu.memory_space<vmem>>, vector<16x128xf32>
      tpu.vector_store %arg6[%c0_10, %c0_11], %10 {strides = array<i32>} : memref<16x128xf32, #tpu.memory_space<vmem>>, vector<16x128xf32>,
    } else {
    }
    %c0 = arith.constant 0 : index
    %c0_1 = arith.constant 0 : index
    %3 = vector.load %arg6[%c0, %c0_1] : memref<16x128xf32, #tpu.memory_space<vmem>>, vector<16x128xf32>
    %c0_2 = arith.constant 0 : index
    %c0_3 = arith.constant 0 : index
    %4 = vector.load %arg3[%c0_2, %c0_3] : memref<16x384xf32, #tpu.memory_space<vmem>>, vector<16x384xf32>
    %5 = arith.truncf %4 : vector<16x384xf32> to vector<16x384xbf16>
    %c0_4 = arith.constant 0 : index
    %c0_5 = arith.constant 0 : index
    %6 = vector.load %arg4[%c0_4, %c0_5] : memref<384x128xbf16, #tpu.memory_space<vmem>>, vector<384x128xbf16>
    %cst = arith.constant dense<0.000000e+00> : vector<16x128xf32>
    %7 = tpu.matmul %5, %6, %cst {dimension_numbers = #tpu.dot_dimension_numbers<[1], [0], [0], [1], [0, 0, 1, 1], [], []>} : vector<16x384xbf16>, vector<384x128xbf16>, vector<16x128xf32> -> vector<16x128xf32>
    %8 = arith.addf %3, %7 : vector<16x128xf32>
    %c0_6 = arith.constant 0 : index
    %c0_7 = arith.constant 0 : index
    %9 = vector.load %arg6[%c0_6, %c0_7] : memref<16x128xf32, #tpu.memory_space<vmem>>, vector<16x128xf32>
    tpu.vector_store %arg6[%c0_6, %c0_7], %8 {strides = array<i32>} : memref<16x128xf32, #tpu.memory_space<vmem>>, vector<16x128xf32>,
    return
  }
  func.func @transform_0(%arg0: i32, %arg1: i32, %arg2: i32) -> (i32, i32) {
    %c0_i32 = arith.constant 0 : i32
    return %arg0, %arg2 : i32, i32
  }
  func.func @transform_1(%arg0: i32, %arg1: i32, %arg2: i32) -> (i32, i32) {
    %c0_i32 = arith.constant 0 : i32
    return %arg2, %arg1 : i32, i32
  }
  func.func @transform_2(%arg0: i32, %arg1: i32, %arg2: i32) -> (i32, i32) {
    %c0_i32 = arith.constant 0 : i32
    return %arg0, %arg1 : i32, i32
  }
  func.func @transform_3(%arg0: i32, %arg1: i32, %arg2: i32) -> (i32, i32) {
    %c0_i32 = arith.constant 0 : i32
    return %arg0, %arg1 : i32, i32
  }
}

</mosaic_0001>

<llo_original>
// kernel: hawk_forward.14
$region0: #{hawk_forward.14}
  #allocation0 [shape = 'u32[]', space=smem, size = 0x4, offset = 0x4, fixed_abs, tag = 'smem constant byte address 0x4 - core index']
  #allocation1 [shape = 'u32[144,128]{1,0:T(1,128)}', space=vmem, size = 0x12000, scoped, tag = 'internal scratch']
  #allocation2 [shape = 'f32[1,256]{1,0:T(1,128)}', space=vmem, size = 0x400, scoped, tag = 'scratch operand']
  %s0 = inlined_call_operand.vmem [shape: f32[2,8,256], index: 0, kind: input, shape index: {}]
  %s1 = inlined_call_operand.vmem [shape: f32[2,8,256], index: 1, kind: input, shape index: {}]
  %s2 = inlined_call_operand.vmem [shape: f32[2,8,256], index: 2, kind: input, shape index: {}]
  %s3 = inlined_call_operand.vmem [shape: f32[2,8,256], index: 3, kind: output, shape index: {}]
  %s4 = sld [smem:[#allocation0]]
  $region56: #{hawk_forward.14} parent=0
    _
  %s6 = ssub.s32 1, %s4
  %s7 = scalar_select 0, %s6, %s4
  loop: start=0, step=1, limit=4
  $region2: #{hawk_forward.14} parent=0 // loop_pre_header
    _
  $region3: #{hawk_forward.14} parent=0 // loop_header
    %s9 = sphi 0, %s13
    %p10 = scmp.ge.s32.totalorder %s9, 4
    %s16 = sphi 0, %s35
    %s17 = sphi 0, %s31
    %s18 = sphi 0, %s27
    %s19 = sphi 0, %s16
    %s20 = sphi 0, %s17
    %s21 = sphi 0, %s18
    %s22 = sphi 0, %s19
    %s23 = sphi 0, %s20
    %s24 = sphi 0, %s21
    %s42 = sphi 0, %s44
    %s45 = sphi 0, %s42
    %s46 = sphi 0, %s45
    %s62 = sphi 0, %s46
    %s72 = sphi 0, %s74
    %s75 = sphi 0, %s72
    %s76 = sphi 0, %s75
    %s92 = sphi 0, %s76
    %s102 = sphi 0, %s104
    %s105 = sphi 0, %s102
    %s106 = sphi 0, %s105
    %s122 = sphi 0, %s106
    %s132 = sphi 0, %s134
    %s135 = sphi 0, %s132
    %s136 = sphi 0, %s135
    %s152 = sphi 0, %s136
  $region4: #{hawk_forward.14} parent=0 // loop_header_branch
    %12 = sbr.rel (%p10) target = $region8
  $region5: #{hawk_forward.14} parent=0 // loop_body
    %s14 = ssub.s32 %s9, 1
    %s15 = ssub.s32 %s9, 2
    %s25 = sadd.s32 1, %s18
    %p26 = scmp.ge.s32.totalorder %s25, 1
    %s27 = scalar_select %p26, 0, %s25
    %s28 = sadd.s32 1, %s17
    %s29 = scalar_select %p26, %s28, %s17
    %p30 = scmp.ge.s32.totalorder %s29, 1
    %s31 = scalar_select %p30, 0, %s29
    %s32 = sadd.s32 1, %s16
    %s33 = scalar_select %p30, %s32, %s16
    %p34 = scmp.ge.s32.totalorder %s33, 2
    %s35 = scalar_select %p34, 0, %s33
    %s36 = ssub.s32 %s16, %s35
    %s37 = ssub.s32 %s18, %s27
    %s38 = sor.u32 %s36, %s37
    %s39 = ssub.s32 %s17, %s31
    %s40 = sor.u32 %s38, %s39
    %p41 = scmp.eq.s32.totalorder %s40, 0
    %s43 = sadd.s32 %s42, 1
    %s44 = scalar_select %p41, %s42, %s43
    %p47 = pneg %p41
    %p48 = scmp.eq.s32.totalorder %s9, 1
    %p49 = por %p47, %p48
    %p50 = scmp.ne.s32.totalorder %s42, %s45
    %p51 = scmp.eq.s32.totalorder %s9, 0
    %p52 = por %p50, %p51
    %p53 = scmp.ne.s32.totalorder %s42, %s45
    %p54 = scmp.eq.s32.totalorder %s14, 1
    %p55 = por %p53, %p54
    %p56 = scmp.ne.s32.totalorder %s45, %s46
    %p57 = scmp.eq.s32.totalorder %s14, 0
    %p58 = por %p56, %p57
    %p59 = scmp.ne.s32.totalorder %s45, %s46
    %p60 = scmp.eq.s32.totalorder %s15, 1
    %p61 = por %p59, %p60
    %p63 = scmp.ne.s32.totalorder %s46, %s62
    %p64 = scmp.eq.s32.totalorder %s15, 0
    %p65 = por %p63, %p64
    %s66 = ssub.s32 %s16, %s35
    %s67 = ssub.s32 %s18, %s27
    %s68 = sor.u32 %s66, %s67
    %s69 = ssub.s32 %s17, %s31
    %s70 = sor.u32 %s68, %s69
    %p71 = scmp.eq.s32.totalorder %s70, 0
    %s73 = sadd.s32 %s72, 1
    %s74 = scalar_select %p71, %s72, %s73
    %p77 = pneg %p71
    %p78 = scmp.eq.s32.totalorder %s9, 1
    %p79 = por %p77, %p78
    %p80 = scmp.ne.s32.totalorder %s72, %s75
    %p81 = scmp.eq.s32.totalorder %s9, 0
    %p82 = por %p80, %p81
    %p83 = scmp.ne.s32.totalorder %s72, %s75
    %p84 = scmp.eq.s32.totalorder %s14, 1
    %p85 = por %p83, %p84
    %p86 = scmp.ne.s32.totalorder %s75, %s76
    %p87 = scmp.eq.s32.totalorder %s14, 0
    %p88 = por %p86, %p87
    %p89 = scmp.ne.s32.totalorder %s75, %s76
    %p90 = scmp.eq.s32.totalorder %s15, 1
    %p91 = por %p89, %p90
    %p93 = scmp.ne.s32.totalorder %s76, %s92
    %p94 = scmp.eq.s32.totalorder %s15, 0
    %p95 = por %p93, %p94
    %s96 = ssub.s32 %s16, %s35
    %s97 = ssub.s32 %s18, %s27
    %s98 = sor.u32 %s96, %s97
    %s99 = ssub.s32 %s17, %s31
    %s100 = sor.u32 %s98, %s99
    %p101 = scmp.eq.s32.totalorder %s100, 0
    %s103 = sadd.s32 %s102, 1
    %s104 = scalar_select %p101, %s102, %s103
    %p107 = pneg %p101
    %p108 = scmp.eq.s32.totalorder %s9, 1
    %p109 = por %p107, %p108
    %p110 = scmp.ne.s32.totalorder %s102, %s105
    %p111 = scmp.eq.s32.totalorder %s9, 0
    %p112 = por %p110, %p111
    %p113 = scmp.ne.s32.totalorder %s102, %s105
    %p114 = scmp.eq.s32.totalorder %s14, 1
    %p115 = por %p113, %p114
    %p116 = scmp.ne.s32.totalorder %s105, %s106
    %p117 = scmp.eq.s32.totalorder %s14, 0
    %p118 = por %p116, %p117
    %p119 = scmp.ne.s32.totalorder %s105, %s106
    %p120 = scmp.eq.s32.totalorder %s15, 1
    %p121 = por %p119, %p120
    %p123 = scmp.ne.s32.totalorder %s106, %s122
    %p124 = scmp.eq.s32.totalorder %s15, 0
    %p125 = por %p123, %p124
    %s126 = ssub.s32 %s16, %s35
    %s127 = ssub.s32 %s18, %s27
    %s128 = sor.u32 %s126, %s127
    %s129 = ssub.s32 %s17, %s31
    %s130 = sor.u32 %s128, %s129
    %p131 = scmp.eq.s32.totalorder %s130, 0
    %s133 = sadd.s32 %s132, 1
    %s134 = scalar_select %p131, %s132, %s133
    %p137 = pneg %p131
    %p138 = scmp.eq.s32.totalorder %s9, 1
    %p139 = por %p137, %p138
    %p140 = scmp.ne.s32.totalorder %s132, %s135
    %p141 = scmp.eq.s32.totalorder %s9, 0
    %p142 = por %p140, %p141
    %p143 = scmp.ne.s32.totalorder %s132, %s135
    %p144 = scmp.eq.s32.totalorder %s14, 1
    %p145 = por %p143, %p144
    %p146 = scmp.ne.s32.totalorder %s135, %s136
    %p147 = scmp.eq.s32.totalorder %s14, 0
    %p148 = por %p146, %p147
    %p149 = scmp.ne.s32.totalorder %s135, %s136
    %p150 = scmp.eq.s32.totalorder %s15, 1
    %p151 = por %p149, %p150
    %p153 = scmp.ne.s32.totalorder %s136, %s152
    %p154 = scmp.eq.s32.totalorder %s15, 0
    %p155 = por %p153, %p154
    %p156 = scmp.le.s32.totalorder 1, %s9
    %p157 = scmp.lt.s32.totalorder %s9, 3
    %p158 = pnand %p156, %p157
    %p159 = pneg %p158
    // Predicated region
    $region9: #{hawk_forward.14} parent=5 // pred_check
      _
    $region10: #{hawk_forward.14} parent=5 // pred_check_branch
      %161 = sbr.rel (%p158) target = $region12
    $region11: #{hawk_forward.14} parent=5 // pred_region
      %s162 = ssub.s32 %s9, 1
    $region12: #{hawk_forward.14} parent=5 // pred_fallthru
      _
    %p163 = scmp.lt.s32.totalorder %s9, 2
    // Predicated region
    $region13: #{hawk_forward.14} parent=5 // pred_check
      %p164 = pneg %p163
    $region14: #{hawk_forward.14} parent=5 // pred_check_branch
      %166 = sbr.rel (%p164) target = $region16
    $region15: #{hawk_forward.14} parent=5 // pred_region
      // Predicated region
      $region17: #{hawk_forward.14} parent=15 // pred_check
        %p167 = pneg %p52
      $region18: #{hawk_forward.14} parent=15 // pred_check_branch
        %169 = sbr.rel (%p167) target = $region20
      $region19: #{hawk_forward.14} parent=15 // pred_region
        %s170 = smul.u32 2, %s17
        %p171 = scmp.lt.s32.totalorder %s16, 1
        %s172 = scalar_select %p171, %s16, 1
        %p173 = scmp.lt.s32.totalorder %s18, 0
        %s174 = scalar_select %p173, %s18, 0
        %p175 = scmp.lt.s32.totalorder %s170, 1
        %s176 = scalar_select %p175, %s170, 1
        %s177 = smul.addr %s174, 2
        %s178 = sadd.s32 %s176, %s177
        %s179 = smul.addr %s172, 2
        %s180 = sadd.s32 %s178, %s179
        %s181 = smul.addr %s180, 8
        %s182 = scalar_lea.vmem %s0, %s181
        %s183 = smul.u32 2, %s17
      $region20: #{hawk_forward.14} parent=15 // pred_fallthru
        _
      // Predicated region
      $region21: #{hawk_forward.14} parent=15 // pred_check
        %p184 = pneg %p82
      $region22: #{hawk_forward.14} parent=15 // pred_check_branch
        %186 = sbr.rel (%p184) target = $region24
      $region23: #{hawk_forward.14} parent=15 // pred_region
        %s187 = smul.u32 2, %s17
        %p188 = scmp.lt.s32.totalorder %s16, 1
        %s189 = scalar_select %p188, %s16, 1
        %p190 = scmp.lt.s32.totalorder %s18, 0
        %s191 = scalar_select %p190, %s18, 0
        %p192 = scmp.lt.s32.totalorder %s187, 1
        %s193 = scalar_select %p192, %s187, 1
        %s194 = smul.addr %s191, 2
        %s195 = sadd.s32 %s193, %s194
        %s196 = smul.addr %s189, 2
        %s197 = sadd.s32 %s195, %s196
        %s198 = smul.addr %s197, 8
        %s199 = scalar_lea.vmem %s1, %s198
        %s200 = smul.u32 2, %s17
      $region24: #{hawk_forward.14} parent=15 // pred_fallthru
        _
      // Predicated region
      $region25: #{hawk_forward.14} parent=15 // pred_check
        %p201 = pneg %p112
      $region26: #{hawk_forward.14} parent=15 // pred_check_branch
        %203 = sbr.rel (%p201) target = $region28
      $region27: #{hawk_forward.14} parent=15 // pred_region
        %s204 = smul.u32 2, %s17
        %p205 = scmp.lt.s32.totalorder %s16, 1
        %s206 = scalar_select %p205, %s16, 1
        %p207 = scmp.lt.s32.totalorder %s18, 0
        %s208 = scalar_select %p207, %s18, 0
        %p209 = scmp.lt.s32.totalorder %s204, 1
        %s210 = scalar_select %p209, %s204, 1
        %s211 = smul.addr %s208, 2
        %s212 = sadd.s32 %s210, %s211
        %s213 = smul.addr %s206, 2
        %s214 = sadd.s32 %s212, %s213
        %s215 = smul.addr %s214, 8
        %s216 = scalar_lea.vmem %s2, %s215
        %s217 = smul.u32 2, %s17
      $region28: #{hawk_forward.14} parent=15 // pred_fallthru
        _
    $region16: #{hawk_forward.14} parent=5 // pred_fallthru
      _
    %p218 = scmp.le.s32.totalorder 1, %s9
    %p219 = scmp.lt.s32.totalorder %s9, 3
    %p220 = pnand %p218, %p219
    %p221 = pneg %p220
    // Predicated region
    $region29: #{hawk_forward.14} parent=5 // pred_check
      _
    $region30: #{hawk_forward.14} parent=5 // pred_check_branch
      %223 = sbr.rel (%p220) target = $region32
    $region31: #{hawk_forward.14} parent=5 // pred_region
      %s224 = ssub.s32 %s9, 1
      %s225 = smul.u32 2, %s20
      %p226 = scmp.lt.s32.totalorder %s19, 1
      %s227 = scalar_select %p226, %s19, 1
      %p228 = scmp.lt.s32.totalorder %s21, 0
      %s229 = scalar_select %p228, %s21, 0
      %p230 = scmp.lt.s32.totalorder %s225, 1
      %s231 = scalar_select %p230, %s225, 1
      %s232 = smul.addr %s229, 2
      %s233 = sadd.s32 %s231, %s232
      %s234 = smul.addr %s227, 2
      %s235 = sadd.s32 %s233, %s234
      %s236 = smul.addr %s235, 8
      %s237 = scalar_lea.vmem %s0, %s236
      %p238 = pneg %p58
      %p239 = pneg %p55
      %s240 = smul.u32 2, %s20
      %p241 = scmp.lt.s32.totalorder %s19, 1
      %s242 = scalar_select %p241, %s19, 1
      %p243 = scmp.lt.s32.totalorder %s21, 0
      %s244 = scalar_select %p243, %s21, 0
      %p245 = scmp.lt.s32.totalorder %s240, 1
      %s246 = scalar_select %p245, %s240, 1
      %s247 = smul.addr %s244, 2
      %s248 = sadd.s32 %s246, %s247
      %s249 = smul.addr %s242, 2
      %s250 = sadd.s32 %s248, %s249
      %s251 = smul.addr %s250, 8
      %s252 = scalar_lea.vmem %s1, %s251
      %p253 = pneg %p88
      %p254 = pneg %p85
      %s255 = smul.u32 2, %s20
      %p256 = scmp.lt.s32.totalorder %s19, 1
      %s257 = scalar_select %p256, %s19, 1
      %p258 = scmp.lt.s32.totalorder %s21, 0
      %s259 = scalar_select %p258, %s21, 0
      %p260 = scmp.lt.s32.totalorder %s255, 1
      %s261 = scalar_select %p260, %s255, 1
      %s262 = smul.addr %s259, 2
      %s263 = sadd.s32 %s261, %s262
      %s264 = smul.addr %s257, 2
      %s265 = sadd.s32 %s263, %s264
      %s266 = smul.addr %s265, 8
      %s267 = scalar_lea.vmem %s2, %s266
      %p268 = pneg %p118
      %p269 = pneg %p115
      %p270 = pneg %p148
      %p271 = pneg %p145
      %s272 = smul.u32 2, %s20
      %p273 = scmp.lt.s32.totalorder %s19, 1
      %s274 = scalar_select %p273, %s19, 1
      %p275 = scmp.lt.s32.totalorder %s21, 0
      %s276 = scalar_select %p275, %s21, 0
      %p277 = scmp.lt.s32.totalorder %s272, 1
      %s278 = scalar_select %p277, %s272, 1
      %s279 = smul.addr %s276, 2
      %s280 = sadd.s32 %s278, %s279
      %s281 = smul.addr %s274, 2
      %s282 = sadd.s32 %s280, %s281
      %s283 = smul.addr %s282, 8
      %s284 = scalar_lea.vmem %s3, %s283
      %s285 = smul.u32 2, %s20
      %p286 = scmp.lt.s32.totalorder %s19, 1
      %s287 = scalar_select %p286, %s19, 1
      %p288 = scmp.lt.s32.totalorder %s21, 0
      %s289 = scalar_select %p288, %s21, 0
      %p290 = scmp.lt.s32.totalorder %s285, 1
      %s291 = scalar_select %p290, %s285, 1
      %s292 = smul.addr %s289, 2
      %s293 = sadd.s32 %s291, %s292
      %s294 = smul.addr %s287, 2
      %s295 = sadd.s32 %s293, %s294
      %s296 = smul.addr %s295, 8
      %s297 = scalar_lea.vmem %s0, %s296
      %s298 = smul.u32 2, %s20
      %s299 = smul.u32 2, %s20
      %p300 = scmp.lt.s32.totalorder %s19, 1
      %s301 = scalar_select %p300, %s19, 1
      %p302 = scmp.lt.s32.totalorder %s21, 0
      %s303 = scalar_select %p302, %s21, 0
      %p304 = scmp.lt.s32.totalorder %s299, 1
      %s305 = scalar_select %p304, %s299, 1
      %s306 = smul.addr %s303, 2
      %s307 = sadd.s32 %s305, %s306
      %s308 = smul.addr %s301, 2
      %s309 = sadd.s32 %s307, %s308
      %s310 = smul.addr %s309, 8
      %s311 = scalar_lea.vmem %s1, %s310
      %s312 = smul.u32 2, %s20
      %s313 = smul.u32 2, %s20
      %p314 = scmp.lt.s32.totalorder %s19, 1
      %s315 = scalar_select %p314, %s19, 1
      %p316 = scmp.lt.s32.totalorder %s21, 0
      %s317 = scalar_select %p316, %s21, 0
      %p318 = scmp.lt.s32.totalorder %s313, 1
      %s319 = scalar_select %p318, %s313, 1
      %s320 = smul.addr %s317, 2
      %s321 = sadd.s32 %s319, %s320
      %s322 = smul.addr %s315, 2
      %s323 = sadd.s32 %s321, %s322
      %s324 = smul.addr %s323, 8
      %s325 = scalar_lea.vmem %s2, %s324
      %s326 = smul.u32 2, %s20
      %s327 = smul.u32 2, %s20
      %p328 = scmp.lt.s32.totalorder %s19, 1
      %s329 = scalar_select %p328, %s19, 1
      %p330 = scmp.lt.s32.totalorder %s21, 0
      %s331 = scalar_select %p330, %s21, 0
      %p332 = scmp.lt.s32.totalorder %s327, 1
      %s333 = scalar_select %p332, %s327, 1
      %s334 = smul.addr %s331, 2
      %s335 = sadd.s32 %s333, %s334
      %s336 = smul.addr %s329, 2
      %s337 = sadd.s32 %s335, %s336
      %s338 = smul.addr %s337, 8
      %s339 = scalar_lea.vmem %s3, %s338
      %s340 = smul.u32 2, %s20
      %p341 = scmp.eq.s32.totalorder %s21, 0
      // Predicated region
      $region33: #{hawk_forward.14} parent=31 // pred_check
        %p342 = pneg %p341
      $region34: #{hawk_forward.14} parent=31 // pred_check_branch
        %344 = sbr.rel (%p342) target = $region36
      $region35: #{hawk_forward.14} parent=31 // pred_region
        %v345 = vlaneseq
        %vm346 = vcmp.ge.s32.totalorder %v345, 0
        %vm347 = vcmp.lt.s32.totalorder %v345, 256
        %vm348 = vmand %vm346, %vm347
        %349 = vst.msk [vmem:[#allocation2] sm:$0x3] %vm348, 0.0
      $region36: #{hawk_forward.14} parent=31 // pred_fallthru
        _
      %v350 = vld [vmem:[#allocation2] sm:$0x3]
      loop: start=0, step=1, limit=8
      $region37: #{hawk_forward.14} parent=31 // loop_pre_header
        _
      $region38: #{hawk_forward.14} parent=31 // loop_header
        %s352 = sphi 0, %s356
        %p353 = scmp.ge.s32.totalorder %s352, 8
        %v357 = vphi %v350, %v370
      $region39: #{hawk_forward.14} parent=31 // loop_header_branch
        %355 = sbr.rel (%p353) target = $region43
      $region40: #{hawk_forward.14} parent=31 // loop_body
        %s358 = sshra.s32 %s352, 3
        %s359 = sand.u32 %s352, 7
        %s360 = sshra.s32 %s352, 3
        %s361 = sand.u32 %s352, 7
        %s362 = smul.u32 %s358, 2
        %s363 = smul.u32 %s362, 8
        %s364 = sadd.s32 %s363, %s361
        %s365 = scalar_lea.vmem %s297, %s364
        %v366 = vld [vmem:[%s365] ss:$8 sm:$0x3]
        %v367 = vmul.f32 %v366, %v357
        %s368 = scalar_lea.vmem %s311, %s364
        %v369 = vld [vmem:[%s368] ss:$8 sm:$0x3]
        %v370 = vadd.f32 %v367, %v369
        %s371 = scalar_lea.vmem %s325, %s364
        %v372 = vld [vmem:[%s371] ss:$8 sm:$0x3]
        %v373 = vmul.f32 %v370, %v372
        %v374 = vlaneseq
        %vm375 = vcmp.ge.s32.totalorder %v374, 0
        %vm376 = vcmp.lt.s32.totalorder %v374, 256
        %vm377 = vmand %vm375, %vm376
        %s378 = scalar_lea.vmem %s339, %s364
        %379 = vst.msk [vmem:[%s378] ss:$8 sm:$0x3] %vm377, %v373
        %380 = vst.msk [vmem:[%s378] ss:$8 sm:$0x0] %vm377, %v373
      $region41: #{hawk_forward.14} parent=31 // loop_footer
        %s356 = sadd.s32 1, %s352
      $region42: #{hawk_forward.14} parent=31 // loop_footer_branch
        %351 = sbr.rel target = $region38
      $region43: #{hawk_forward.14} parent=31 // loop_exit
        _
      %v381 = vlaneseq
      %vm382 = vcmp.ge.s32.totalorder %v381, 0
      %vm383 = vcmp.lt.s32.totalorder %v381, 256
      %vm384 = vmand %vm382, %vm383
      %385 = vst.msk [vmem:[#allocation2] sm:$0x3] %vm384, %v357
      %s386 = smul.u32 2, %s20
      %p387 = scmp.lt.s32.totalorder %s19, 1
      %s388 = scalar_select %p387, %s19, 1
      %p389 = scmp.lt.s32.totalorder %s21, 0
      %s390 = scalar_select %p389, %s21, 0
      %p391 = scmp.lt.s32.totalorder %s386, 1
      %s392 = scalar_select %p391, %s386, 1
      %s393 = smul.addr %s390, 2
      %s394 = sadd.s32 %s392, %s393
      %s395 = smul.addr %s388, 2
      %s396 = sadd.s32 %s394, %s395
      %s397 = smul.addr %s396, 8
      %s398 = scalar_lea.vmem %s3, %s397
      // Predicated region
      $region44: #{hawk_forward.14} parent=31 // pred_check
        %p399 = pneg %p145
      $region45: #{hawk_forward.14} parent=31 // pred_check_branch
        %401 = sbr.rel (%p399) target = $region47
      $region46: #{hawk_forward.14} parent=31 // pred_region
        %s402 = smul.u32 2, %s20
      $region47: #{hawk_forward.14} parent=31 // pred_fallthru
        _
    $region32: #{hawk_forward.14} parent=5 // pred_fallthru
      _
    %p403 = scmp.le.s32.totalorder 2, %s9
    // Predicated region
    $region48: #{hawk_forward.14} parent=5 // pred_check
      %p404 = pneg %p403
    $region49: #{hawk_forward.14} parent=5 // pred_check_branch
      %406 = sbr.rel (%p404) target = $region51
    $region50: #{hawk_forward.14} parent=5 // pred_region
      %s407 = ssub.s32 %s9, 2
      // Predicated region
      $region52: #{hawk_forward.14} parent=50 // pred_check
        %p408 = pneg %p151
      $region53: #{hawk_forward.14} parent=50 // pred_check_branch
        %410 = sbr.rel (%p408) target = $region55
      $region54: #{hawk_forward.14} parent=50 // pred_region
        %s411 = smul.u32 2, %s23
        %p412 = scmp.lt.s32.totalorder %s22, 1
        %s413 = scalar_select %p412, %s22, 1
        %p414 = scmp.lt.s32.totalorder %s24, 0
        %s415 = scalar_select %p414, %s24, 0
        %p416 = scmp.lt.s32.totalorder %s411, 1
        %s417 = scalar_select %p416, %s411, 1
        %s418 = smul.addr %s415, 2
        %s419 = sadd.s32 %s417, %s418
        %s420 = smul.addr %s413, 2
        %s421 = sadd.s32 %s419, %s420
        %s422 = smul.addr %s421, 8
        %s423 = scalar_lea.vmem %s3, %s422
      $region55: #{hawk_forward.14} parent=50 // pred_fallthru
        _
    $region51: #{hawk_forward.14} parent=5 // pred_fallthru
      _
  $region6: #{hawk_forward.14} parent=0 // loop_footer
    %s13 = sadd.s32 1, %s9
  $region7: #{hawk_forward.14} parent=0 // loop_footer_branch
    %8 = sbr.rel target = $region3
  $region8: #{hawk_forward.14} parent=0 // loop_exit
    _

// kernel: hawk_forward.15
$region0: #{hawk_forward.15}
  #allocation0 [shape = 'u32[]', space=smem, size = 0x4, offset = 0x4, fixed_abs, tag = 'smem constant byte address 0x4 - core index']
  #allocation1 [shape = 'u32[144,128]{1,0:T(1,128)}', space=vmem, size = 0x12000, scoped, tag = 'internal scratch']
  %s0 = inlined_call_operand.vmem [shape: f32[16,256], index: 0, kind: input, shape index: {}]
  %s1 = inlined_call_operand.vmem [shape: bf16[256,128], index: 1, kind: input, shape index: {}]
  %s2 = inlined_call_operand.vmem [shape: f32[16,128], index: 2, kind: input, shape index: {}]
  %s3 = inlined_call_operand.vmem [shape: f32[16,128], index: 3, kind: input, shape index: {}]
  %s4 = inlined_call_operand.vmem [shape: f32[16,128], index: 4, kind: output, shape index: {}]
  %s5 = sld [smem:[#allocation0]]
  $region30: #{hawk_forward.15} parent=0
    _
  %s7 = ssub.s32 1, %s5
  %s8 = scalar_select 0, %s7, %s5
  // Predicated region
  $region2: #{hawk_forward.15} parent=0 // pred_check
    _
  $region3: #{hawk_forward.15} parent=0 // pred_check_branch
    %10 = sbr.rel (0) target = $region5
  $region4: #{hawk_forward.15} parent=0 // pred_region
    _
  $region5: #{hawk_forward.15} parent=0 // pred_fallthru
    _
  // Predicated region
  $region6: #{hawk_forward.15} parent=0 // pred_check
    _
  $region7: #{hawk_forward.15} parent=0 // pred_check_branch
    %12 = sbr.rel (0) target = $region9
  $region8: #{hawk_forward.15} parent=0 // pred_region
    _
  $region9: #{hawk_forward.15} parent=0 // pred_fallthru
    _
  // Predicated region
  $region10: #{hawk_forward.15} parent=0 // pred_check
    _
  $region11: #{hawk_forward.15} parent=0 // pred_check_branch
    %14 = sbr.rel (0) target = $region13
  $region12: #{hawk_forward.15} parent=0 // pred_region
    _
  $region13: #{hawk_forward.15} parent=0 // pred_fallthru
    _
  // Predicated region
  $region14: #{hawk_forward.15} parent=0 // pred_check
    _
  $region15: #{hawk_forward.15} parent=0 // pred_check_branch
    %16 = sbr.rel (0) target = $region17
  $region16: #{hawk_forward.15} parent=0 // pred_region
    _
  $region17: #{hawk_forward.15} parent=0 // pred_fallthru
    _
  %p18 = scmp.eq.s32.totalorder 0, 0
  // Predicated region
  $region18: #{hawk_forward.15} parent=0 // pred_check
    %p19 = pneg %p18
  $region19: #{hawk_forward.15} parent=0 // pred_check_branch
    %21 = sbr.rel (%p19) target = $region21
  $region20: #{hawk_forward.15} parent=0 // pred_region
    %v22 = vld [vmem:[%s2] sm:$0xff]
    %v23 = vld [vmem:[%s2 + $0x8] sm:$0xff]
    %v24 = vld [vmem:[%s3] sm:$0xff]
    %v25 = vld [vmem:[%s3 + $0x8] sm:$0xff]
    %v26 = vadd.f32 %v22, %v24
    %v27 = vadd.f32 %v23, %v25
    %28 = vst [vmem:[%s4] sm:$0xff] %v26
    %29 = vst [vmem:[%s4 + $0x8] sm:$0xff] %v27
  $region21: #{hawk_forward.15} parent=0 // pred_fallthru
    _
  %v30 = vld [vmem:[%s4] sm:$0xff]
  %v31 = vld [vmem:[%s4 + $0x8] sm:$0xff]
  %v32 = vld [vmem:[%s0] sm:$0xff]
  %v33 = vld [vmem:[%s0 + $0x8] sm:$0xff]
  %v34 = vld [vmem:[%s0 + $0x10] sm:$0xff]
  %v35 = vld [vmem:[%s0 + $0x18] sm:$0xff]
  %v36 = vpack.c.bf16 %v34, %v32
  %v37 = vpack.c.bf16 %v35, %v33
  %v38 = vld [vmem:[%s1] sm:$0xf]
  %v39 = vld [vmem:[%s1 + $0x4] sm:$0xf]
  %v40 = vld [vmem:[%s1 + $0x8] sm:$0xf]
  %v41 = vld [vmem:[%s1 + $0xc] sm:$0xf]
  %v42 = vld [vmem:[%s1 + $0x10] sm:$0xf]
  %v43 = vld [vmem:[%s1 + $0x14] sm:$0xf]
  %v44 = vld [vmem:[%s1 + $0x18] sm:$0xf]
  %v45 = vld [vmem:[%s1 + $0x1c] sm:$0xf]
  %v46 = vld [vmem:[%s1 + $0x20] sm:$0xf]
  %v47 = vld [vmem:[%s1 + $0x24] sm:$0xf]
  %v48 = vld [vmem:[%s1 + $0x28] sm:$0xf]
  %v49 = vld [vmem:[%s1 + $0x2c] sm:$0xf]
  %v50 = vld [vmem:[%s1 + $0x30] sm:$0xf]
  %v51 = vld [vmem:[%s1 + $0x34] sm:$0xf]
  %v52 = vld [vmem:[%s1 + $0x38] sm:$0xf]
  %v53 = vld [vmem:[%s1 + $0x3c] sm:$0xf]
  %v54 = vld [vmem:[%s1 + $0x40] sm:$0xf]
  %v55 = vld [vmem:[%s1 + $0x44] sm:$0xf]
  %v56 = vld [vmem:[%s1 + $0x48] sm:$0xf]
  %v57 = vld [vmem:[%s1 + $0x4c] sm:$0xf]
  %v58 = vld [vmem:[%s1 + $0x50] sm:$0xf]
  %v59 = vld [vmem:[%s1 + $0x54] sm:$0xf]
  %v60 = vld [vmem:[%s1 + $0x58] sm:$0xf]
  %v61 = vld [vmem:[%s1 + $0x5c] sm:$0xf]
  %v62 = vld [vmem:[%s1 + $0x60] sm:$0xf]
  %v63 = vld [vmem:[%s1 + $0x64] sm:$0xf]
  %v64 = vld [vmem:[%s1 + $0x68] sm:$0xf]
  %v65 = vld [vmem:[%s1 + $0x6c] sm:$0xf]
  %v66 = vld [vmem:[%s1 + $0x70] sm:$0xf]
  %v67 = vld [vmem:[%s1 + $0x74] sm:$0xf]
  %v68 = vld [vmem:[%s1 + $0x78] sm:$0xf]
  %v69 = vld [vmem:[%s1 + $0x7c] sm:$0xf]
  %v102 = vunpack.c.l.b16 %v38
  %v103 = vunpack.c.l.b16 %v39
  %v104 = vunpack.c.l.b16 %v40
  %v105 = vunpack.c.l.b16 %v41
  %v106 = vunpack.c.l.b16 %v42
  %v107 = vunpack.c.l.b16 %v43
  %v108 = vunpack.c.l.b16 %v44
  %v109 = vunpack.c.l.b16 %v45
  %v110 = vunpack.c.l.b16 %v46
  %v111 = vunpack.c.l.b16 %v47
  %v112 = vunpack.c.l.b16 %v48
  %v113 = vunpack.c.l.b16 %v49
  %v114 = vunpack.c.l.b16 %v50
  %v115 = vunpack.c.l.b16 %v51
  %v116 = vunpack.c.l.b16 %v52
  %v117 = vunpack.c.l.b16 %v53
  %v118 = vunpack.c.l.b16 %v54
  %v119 = vunpack.c.l.b16 %v55
  %v120 = vunpack.c.l.b16 %v56
  %v121 = vunpack.c.l.b16 %v57
  %v122 = vunpack.c.l.b16 %v58
  %v123 = vunpack.c.l.b16 %v59
  %v124 = vunpack.c.l.b16 %v60
  %v125 = vunpack.c.l.b16 %v61
  %v126 = vunpack.c.l.b16 %v62
  %v127 = vunpack.c.l.b16 %v63
  %v128 = vunpack.c.l.b16 %v64
  %v129 = vunpack.c.l.b16 %v65
  %v130 = vunpack.c.l.b16 %v66
  %v131 = vunpack.c.l.b16 %v67
  %v132 = vunpack.c.l.b16 %v68
  %v133 = vunpack.c.l.b16 %v69
  %v134 = vpack.c.b16 %v103, %v102
  %v135 = vpack.c.b16 %v105, %v104
  %v136 = vpack.c.b16 %v107, %v106
  %v137 = vpack.c.b16 %v109, %v108
  %v138 = vpack.c.b16 %v111, %v110
  %v139 = vpack.c.b16 %v113, %v112
  %v140 = vpack.c.b16 %v115, %v114
  %v141 = vpack.c.b16 %v117, %v116
  %v142 = vpack.c.b16 %v119, %v118
  %v143 = vpack.c.b16 %v121, %v120
  %v144 = vpack.c.b16 %v123, %v122
  %v145 = vpack.c.b16 %v125, %v124
  %v146 = vpack.c.b16 %v127, %v126
  %v147 = vpack.c.b16 %v129, %v128
  %v148 = vpack.c.b16 %v131, %v130
  %v149 = vpack.c.b16 %v133, %v132
  %166 = vmatprep.subr.bf16.mxu0 0
  %167 = vmatpush1.bf16.msra.mxu0 %v134
  %168 = vmatprep.subr.bf16.mxu0 0
  %169 = vmatpush1.bf16.msra.mxu0 %v135
  %170 = vmatprep.subr.bf16.mxu0 0
  %171 = vmatpush1.bf16.msra.mxu0 %v136
  %172 = vmatprep.subr.bf16.mxu0 0
  %173 = vmatpush1.bf16.msra.mxu0 %v137
  %174 = vmatprep.subr.bf16.mxu0 0
  %175 = vmatpush1.bf16.msra.mxu0 %v138
  %176 = vmatprep.subr.bf16.mxu0 0
  %177 = vmatpush1.bf16.msra.mxu0 %v139
  %178 = vmatprep.subr.bf16.mxu0 0
  %179 = vmatpush1.bf16.msra.mxu0 %v140
  %180 = vmatprep.subr.bf16.mxu0 0
  %181 = vmatpush1.bf16.msra.mxu0 %v141
  %182 = vmatprep.subr.bf16.mxu0 0
  %183 = vmatpush1.bf16.msra.mxu0 %v142
  %184 = vmatprep.subr.bf16.mxu0 0
  %185 = vmatpush1.bf16.msra.mxu0 %v143
  %186 = vmatprep.subr.bf16.mxu0 0
  %187 = vmatpush1.bf16.msra.mxu0 %v144
  %188 = vmatprep.subr.bf16.mxu0 0
  %189 = vmatpush1.bf16.msra.mxu0 %v145
  %190 = vmatprep.subr.bf16.mxu0 0
  %191 = vmatpush1.bf16.msra.mxu0 %v146
  %192 = vmatprep.subr.bf16.mxu0 0
  %193 = vmatpush1.bf16.msra.mxu0 %v147
  %194 = vmatprep.subr.bf16.mxu0 0
  %195 = vmatpush1.bf16.msra.mxu0 %v148
  %196 = vmatprep.subr.bf16.mxu0 0
  %197 = vmatpush1.bf16.msra.mxu0 %v149
  %198 = vmatprep.mubr.bf16.mxu0 %v37
  %199 = vmatmul.mubr.bf16.gmra.mrb[0].mxu0 %v36
  %v200 = vpop.f32.mrb[0].mxu0
  %v201 = vadd.f32 0.0, %v200
  %v202 = vpop.f32.mrb[0].mxu0
  %v203 = vpop.f32.mrb[0].mxu0
  %v204 = vadd.f32 0.0, %v203
  %v205 = vpop.f32.mrb[0].mxu0
  %206 = vdwg.mxu0
  %v207 = vadd.f32 %v30, %v201
  %v208 = vadd.f32 %v31, %v204
  %209 = vst [vmem:[%s4] sm:$0xff] %v207
  %210 = vst [vmem:[%s4 + $0x8] sm:$0xff] %v208
  // Predicated region
  $region22: #{hawk_forward.15} parent=0 // pred_check
    _
  $region23: #{hawk_forward.15} parent=0 // pred_check_branch
    %212 = sbr.rel (0) target = $region25
  $region24: #{hawk_forward.15} parent=0 // pred_region
    _
  $region25: #{hawk_forward.15} parent=0 // pred_fallthru
    _
  // Predicated region
  $region26: #{hawk_forward.15} parent=0 // pred_check
    _
  $region27: #{hawk_forward.15} parent=0 // pred_check_branch
    %214 = sbr.rel (0) target = $region29
  $region28: #{hawk_forward.15} parent=0 // pred_region
    _
  $region29: #{hawk_forward.15} parent=0 // pred_fallthru
    _

// kernel: hawk_forward.12
$region0: #{hawk_forward.12}
  #allocation0 [shape = 'u32[]', space=smem, size = 0x4, offset = 0x4, fixed_abs, tag = 'smem constant byte address 0x4 - core index']
  #allocation1 [shape = 'u32[144,128]{1,0:T(1,128)}', space=vmem, size = 0x12000, scoped, tag = 'internal scratch']
  %s0 = inlined_call_operand.hbm [shape: f32[16,128], index: 0, kind: input, shape index: {}]
  %s1 = inlined_call_operand.vmem [shape: f32[1,128], index: 1, kind: input, shape index: {}]
  %s2 = inlined_call_operand.hbm [shape: bf16[128,256], index: 2, kind: input, shape index: {}]
  %s3 = inlined_call_operand.hbm [shape: bf16[128,256], index: 3, kind: input, shape index: {}]
  %s4 = inlined_call_operand.vmem [shape: f32[16,256], index: 4, kind: output, shape index: {0}]
  %s5 = inlined_call_operand.vmem [shape: f32[16,256], index: 5, kind: output, shape index: {1}]
  %s6 = inlined_call_operand.vmem [shape: f32[16,128], index: 6, kind: output, shape index: {2}]
  %7 = xla_tuple %s4, %s5, %s6
  %s8 = sld [smem:[#allocation0]]
  $region58: #{hawk_forward.12} parent=0
    _
  %s10 = ssub.s32 1, %s8
  %s11 = scalar_select 0, %s10, %s8
  $region1: #{hawk_forward.12} parent=0
    #allocation2 [shape = 'u8[8192]{0}', space=vmem, size = 0x2000, scoped, tag = 'input window, operand 0, single buffered']
    #allocation3 [shape = 's32[1]{0}', space=sflag, size = 0x4, scoped, tag = 'scoped memory for hawk_forward.12']
    #allocation4 [shape = 'u8[65536]{0}', space=vmem, size = 0x10000, scoped, tag = 'input window, operand 2, single buffered']
    #allocation5 [shape = 's32[1]{0}', space=sflag, size = 0x4, scoped, tag = 'scoped memory for hawk_forward.12']
    #allocation6 [shape = 'u8[65536]{0}', space=vmem, size = 0x10000, scoped, tag = 'input window, operand 3, single buffered']
    %12 = vsyncpa [#allocation3], 0
    %13 = vsyncpa [#allocation5], 0
    // Predicated region
    $region2: #{hawk_forward.12} parent=1 // pred_check
      _
    $region3: #{hawk_forward.12} parent=1 // pred_check_branch
      %15 = sbr.rel (0) target = $region5
    $region4: #{hawk_forward.12} parent=1 // pred_region
      %s17 = ssub.s32 256, 256
      %18 = vsyncadd [#allocation3], %s17
      %s19 = sshll.u32 [#allocation2], 4
      %s20 = int_to_ptr.vmem [resolvable:$true] %s19
      %25 = dma.hbm_to_vmem [thread:$0]  %s0, 256, %s20, [#allocation3], 128, 128, 8
    $region5: #{hawk_forward.12} parent=1 // pred_fallthru
      _
    // Predicated region
    $region6: #{hawk_forward.12} parent=1 // pred_check
      _
    $region7: #{hawk_forward.12} parent=1 // pred_check_branch
      %27 = sbr.rel (0) target = $region9
    $region8: #{hawk_forward.12} parent=1 // pred_region
      _
    $region9: #{hawk_forward.12} parent=1 // pred_fallthru
      _
    // Predicated region
    $region10: #{hawk_forward.12} parent=1 // pred_check
      _
    $region11: #{hawk_forward.12} parent=1 // pred_check_branch
      %29 = sbr.rel (0) target = $region13
    $region12: #{hawk_forward.12} parent=1 // pred_region
      %s31 = ssub.s32 2048, 2048
      %32 = vsyncadd [#allocation5], %s31
      %s33 = sshll.u32 [#allocation4], 4
      %s34 = int_to_ptr.vmem [resolvable:$true] %s33
      %39 = dma.hbm_to_vmem [thread:$0]  %s2, 2048, %s34, [#allocation5], 128, 128, 8
    $region13: #{hawk_forward.12} parent=1 // pred_fallthru
      _
    // Predicated region
    $region14: #{hawk_forward.12} parent=1 // pred_check
      _
    $region15: #{hawk_forward.12} parent=1 // pred_check_branch
      %41 = sbr.rel (0) target = $region17
    $region16: #{hawk_forward.12} parent=1 // pred_region
      %s43 = ssub.s32 2048, 2048
      %44 = vsyncadd [#allocation5], %s43
      %s45 = sshll.u32 [#allocation6], 4
      %s46 = int_to_ptr.vmem [resolvable:$true] %s45
      %51 = dma.hbm_to_vmem [thread:$0]  %s3, 2048, %s46, [#allocation5], 128, 128, 8
    $region17: #{hawk_forward.12} parent=1 // pred_fallthru
      _
    // Predicated region
    $region18: #{hawk_forward.12} parent=1 // pred_check
      _
    $region19: #{hawk_forward.12} parent=1 // pred_check_branch
      %53 = sbr.rel (0) target = $region21
    $region20: #{hawk_forward.12} parent=1 // pred_region
      %54 = dma.done [#allocation3], 256
    $region21: #{hawk_forward.12} parent=1 // pred_fallthru
      _
    // Predicated region
    $region22: #{hawk_forward.12} parent=1 // pred_check
      _
    $region23: #{hawk_forward.12} parent=1 // pred_check_branch
      %56 = sbr.rel (0) target = $region25
    $region24: #{hawk_forward.12} parent=1 // pred_region
      %57 = dma.done [#allocation5], 2048
    $region25: #{hawk_forward.12} parent=1 // pred_fallthru
      _
    // Predicated region
    $region26: #{hawk_forward.12} parent=1 // pred_check
      _
    $region27: #{hawk_forward.12} parent=1 // pred_check_branch
      %59 = sbr.rel (0) target = $region29
    $region28: #{hawk_forward.12} parent=1 // pred_region
      %60 = dma.done [#allocation5], 2048
    $region29: #{hawk_forward.12} parent=1 // pred_fallthru
      _
    %v62 = vld [vmem:[#allocation2] sm:$0xff]
    %v63 = vld [vmem:[#allocation2 + $0x8] sm:$0xff]
    %v64 = vmul.f32 %v62, %v62
    %v65 = vmul.f32 %v63, %v63
    %66 = vadd.xlane.f32.xlu0 %v64
    %v67 = vpop.xlane.xlu0 %66
    %68 = vadd.xlane.f32.xlu0 %v65
    %v69 = vpop.xlane.xlu0 %68
    %v70 = vrcp.pop 128.0
    %v71 = vmul.f32 %v67, %v70
    %v72 = vmul.f32 %v69, %v70
    %v73 = vadd.f32 %v71, 1e-05
    %v74 = vadd.f32 %v72, 1e-05
    %v75 = vrsqrt.pop %v73
    %v76 = vrsqrt.pop %v74
    %v77 = vmul.f32 %v62, %v75
    %v78 = vmul.f32 %v63, %v76
    %v79 = vld [vmem:[%s1] sm:$0x1]
    %v81 = vlaneseq
    %v82 = vshrl.u32 %v81, 7
    %v83 = vsub.s32 0, %v82
    %v84 = vrot.slane %v79, %v83
    %v86 = vmul.f32 %v77, %v84
    %v87 = vmul.f32 %v78, %v84
    %p88 = scmp.eq.s32.totalorder 0, 0
    // Predicated region
    $region30: #{hawk_forward.12} parent=1 // pred_check
      %p89 = pneg %p88
    $region31: #{hawk_forward.12} parent=1 // pred_check_branch
      %91 = sbr.rel (%p89) target = $region33
    $region32: #{hawk_forward.12} parent=1 // pred_region
      %92 = vst [vmem:[%s6] sm:$0xff] %v86
      %93 = vst [vmem:[%s6 + $0x8] sm:$0xff] %v87
    $region33: #{hawk_forward.12} parent=1 // pred_fallthru
      _
    %v94 = vpack.c.bf16 %v87, %v86
    %v95 = vld [vmem:[#allocation4] sm:$0xff]
    %v96 = vld [vmem:[#allocation4 + $0x8] sm:$0xff]
    %v97 = vld [vmem:[#allocation4 + $0x10] sm:$0xff]
    %v98 = vld [vmem:[#allocation4 + $0x18] sm:$0xff]
    %v99 = vld [vmem:[#allocation4 + $0x20] sm:$0xff]
    %v100 = vld [vmem:[#allocation4 + $0x28] sm:$0xff]
    %v101 = vld [vmem:[#allocation4 + $0x30] sm:$0xff]
    %v102 = vld [vmem:[#allocation4 + $0x38] sm:$0xff]
    %v103 = vld [vmem:[#allocation4 + $0x40] sm:$0xff]
    %v104 = vld [vmem:[#allocation4 + $0x48] sm:$0xff]
    %v105 = vld [vmem:[#allocation4 + $0x50] sm:$0xff]
    %v106 = vld [vmem:[#allocation4 + $0x58] sm:$0xff]
    %v107 = vld [vmem:[#allocation4 + $0x60] sm:$0xff]
    %v108 = vld [vmem:[#allocation4 + $0x68] sm:$0xff]
    %v109 = vld [vmem:[#allocation4 + $0x70] sm:$0xff]
    %v110 = vld [vmem:[#allocation4 + $0x78] sm:$0xff]
    %v127 = vunpack.c.l.b16 %v95
    %v128 = vunpack.c.h.b16 %v95
    %v129 = vunpack.c.l.b16 %v96
    %v130 = vunpack.c.h.b16 %v96
    %v131 = vunpack.c.l.b16 %v97
    %v132 = vunpack.c.h.b16 %v97
    %v133 = vunpack.c.l.b16 %v98
    %v134 = vunpack.c.h.b16 %v98
    %v135 = vunpack.c.l.b16 %v99
    %v136 = vunpack.c.h.b16 %v99
    %v137 = vunpack.c.l.b16 %v100
    %v138 = vunpack.c.h.b16 %v100
    %v139 = vunpack.c.l.b16 %v101
    %v140 = vunpack.c.h.b16 %v101
    %v141 = vunpack.c.l.b16 %v102
    %v142 = vunpack.c.h.b16 %v102
    %v143 = vunpack.c.l.b16 %v103
    %v144 = vunpack.c.h.b16 %v103
    %v145 = vunpack.c.l.b16 %v104
    %v146 = vunpack.c.h.b16 %v104
    %v147 = vunpack.c.l.b16 %v105
    %v148 = vunpack.c.h.b16 %v105
    %v149 = vunpack.c.l.b16 %v106
    %v150 = vunpack.c.h.b16 %v106
    %v151 = vunpack.c.l.b16 %v107
    %v152 = vunpack.c.h.b16 %v107
    %v153 = vunpack.c.l.b16 %v108
    %v154 = vunpack.c.h.b16 %v108
    %v155 = vunpack.c.l.b16 %v109
    %v156 = vunpack.c.h.b16 %v109
    %v157 = vunpack.c.l.b16 %v110
    %v158 = vunpack.c.h.b16 %v110
    %v159 = vpack.c.b16 %v129, %v127
    %v160 = vpack.c.b16 %v130, %v128
    %v161 = vpack.c.b16 %v133, %v131
    %v162 = vpack.c.b16 %v134, %v132
    %v163 = vpack.c.b16 %v137, %v135
    %v164 = vpack.c.b16 %v138, %v136
    %v165 = vpack.c.b16 %v141, %v139
    %v166 = vpack.c.b16 %v142, %v140
    %v167 = vpack.c.b16 %v145, %v143
    %v168 = vpack.c.b16 %v146, %v144
    %v169 = vpack.c.b16 %v149, %v147
    %v170 = vpack.c.b16 %v150, %v148
    %v171 = vpack.c.b16 %v153, %v151
    %v172 = vpack.c.b16 %v154, %v152
    %v173 = vpack.c.b16 %v157, %v155
    %v174 = vpack.c.b16 %v158, %v156
    %191 = vmatprep.subr.bf16.mxu0 %v160
    %192 = vmatpush1.bf16.msra.mxu0 %v159
    %193 = vmatprep.subr.bf16.mxu0 %v162
    %194 = vmatpush1.bf16.msra.mxu0 %v161
    %195 = vmatprep.subr.bf16.mxu0 %v164
    %196 = vmatpush1.bf16.msra.mxu0 %v163
    %197 = vmatprep.subr.bf16.mxu0 %v166
    %198 = vmatpush1.bf16.msra.mxu0 %v165
    %199 = vmatprep.subr.bf16.mxu0 %v168
    %200 = vmatpush1.bf16.msra.mxu0 %v167
    %201 = vmatprep.subr.bf16.mxu0 %v170
    %202 = vmatpush1.bf16.msra.mxu0 %v169
    %203 = vmatprep.subr.bf16.mxu0 %v172
    %204 = vmatpush1.bf16.msra.mxu0 %v171
    %205 = vmatprep.subr.bf16.mxu0 %v174
    %206 = vmatpush1.bf16.msra.mxu0 %v173
    %207 = vmatprep.subr.bf16.mxu0 0
    %208 = vmatpush1.bf16.msra.mxu0 0
    %209 = vmatprep.subr.bf16.mxu0 0
    %210 = vmatpush1.bf16.msra.mxu0 0
    %211 = vmatprep.subr.bf16.mxu0 0
    %212 = vmatpush1.bf16.msra.mxu0 0
    %213 = vmatprep.subr.bf16.mxu0 0
    %214 = vmatpush1.bf16.msra.mxu0 0
    %215 = vmatprep.subr.bf16.mxu0 0
    %216 = vmatpush1.bf16.msra.mxu0 0
    %217 = vmatprep.subr.bf16.mxu0 0
    %218 = vmatpush1.bf16.msra.mxu0 0
    %219 = vmatprep.subr.bf16.mxu0 0
    %220 = vmatpush1.bf16.msra.mxu0 0
    %221 = vmatprep.subr.bf16.mxu0 0
    %222 = vmatpush1.bf16.msra.mxu0 0
    %223 = vmatprep.mubr.bf16.mxu0 0
    %224 = vmatmul.mubr.bf16.gmra.mrb[0].mxu0 %v94
    %v225 = vpop.f32.mrb[0].mxu0
    %v226 = vadd.f32 0.0, %v225
    %v227 = vpop.f32.mrb[0].mxu0
    %v228 = vadd.f32 0.0, %v227
    %v229 = vpop.f32.mrb[0].mxu0
    %v230 = vadd.f32 0.0, %v229
    %v231 = vpop.f32.mrb[0].mxu0
    %v232 = vadd.f32 0.0, %v231
    %233 = vdwg.mxu0
    %234 = vst [vmem:[%s4] sm:$0xff] %v226
    %235 = vst [vmem:[%s4 + $0x8] sm:$0xff] %v228
    %236 = vst [vmem:[%s4 + $0x10] sm:$0xff] %v230
    %237 = vst [vmem:[%s4 + $0x18] sm:$0xff] %v232
    %v238 = vld [vmem:[#allocation6] sm:$0xff]
    %v239 = vld [vmem:[#allocation6 + $0x8] sm:$0xff]
    %v240 = vld [vmem:[#allocation6 + $0x10] sm:$0xff]
    %v241 = vld [vmem:[#allocation6 + $0x18] sm:$0xff]
    %v242 = vld [vmem:[#allocation6 + $0x20] sm:$0xff]
    %v243 = vld [vmem:[#allocation6 + $0x28] sm:$0xff]
    %v244 = vld [vmem:[#allocation6 + $0x30] sm:$0xff]
    %v245 = vld [vmem:[#allocation6 + $0x38] sm:$0xff]
    %v246 = vld [vmem:[#allocation6 + $0x40] sm:$0xff]
    %v247 = vld [vmem:[#allocation6 + $0x48] sm:$0xff]
    %v248 = vld [vmem:[#allocation6 + $0x50] sm:$0xff]
    %v249 = vld [vmem:[#allocation6 + $0x58] sm:$0xff]
    %v250 = vld [vmem:[#allocation6 + $0x60] sm:$0xff]
    %v251 = vld [vmem:[#allocation6 + $0x68] sm:$0xff]
    %v252 = vld [vmem:[#allocation6 + $0x70] sm:$0xff]
    %v253 = vld [vmem:[#allocation6 + $0x78] sm:$0xff]
    %v270 = vunpack.c.l.b16 %v238
    %v271 = vunpack.c.h.b16 %v238
    %v272 = vunpack.c.l.b16 %v239
    %v273 = vunpack.c.h.b16 %v239
    %v274 = vunpack.c.l.b16 %v240
    %v275 = vunpack.c.h.b16 %v240
    %v276 = vunpack.c.l.b16 %v241
    %v277 = vunpack.c.h.b16 %v241
    %v278 = vunpack.c.l.b16 %v242
    %v279 = vunpack.c.h.b16 %v242
    %v280 = vunpack.c.l.b16 %v243
    %v281 = vunpack.c.h.b16 %v243
    %v282 = vunpack.c.l.b16 %v244
    %v283 = vunpack.c.h.b16 %v244
    %v284 = vunpack.c.l.b16 %v245
    %v285 = vunpack.c.h.b16 %v245
    %v286 = vunpack.c.l.b16 %v246
    %v287 = vunpack.c.h.b16 %v246
    %v288 = vunpack.c.l.b16 %v247
    %v289 = vunpack.c.h.b16 %v247
    %v290 = vunpack.c.l.b16 %v248
    %v291 = vunpack.c.h.b16 %v248
    %v292 = vunpack.c.l.b16 %v249
    %v293 = vunpack.c.h.b16 %v249
    %v294 = vunpack.c.l.b16 %v250
    %v295 = vunpack.c.h.b16 %v250
    %v296 = vunpack.c.l.b16 %v251
    %v297 = vunpack.c.h.b16 %v251
    %v298 = vunpack.c.l.b16 %v252
    %v299 = vunpack.c.h.b16 %v252
    %v300 = vunpack.c.l.b16 %v253
    %v301 = vunpack.c.h.b16 %v253
    %v302 = vpack.c.b16 %v272, %v270
    %v303 = vpack.c.b16 %v273, %v271
    %v304 = vpack.c.b16 %v276, %v274
    %v305 = vpack.c.b16 %v277, %v275
    %v306 = vpack.c.b16 %v280, %v278
    %v307 = vpack.c.b16 %v281, %v279
    %v308 = vpack.c.b16 %v284, %v282
    %v309 = vpack.c.b16 %v285, %v283
    %v310 = vpack.c.b16 %v288, %v286
    %v311 = vpack.c.b16 %v289, %v287
    %v312 = vpack.c.b16 %v292, %v290
    %v313 = vpack.c.b16 %v293, %v291
    %v314 = vpack.c.b16 %v296, %v294
    %v315 = vpack.c.b16 %v297, %v295
    %v316 = vpack.c.b16 %v300, %v298
    %v317 = vpack.c.b16 %v301, %v299
    %334 = vmatprep.subr.bf16.mxu0 %v303
    %335 = vmatpush1.bf16.msra.mxu0 %v302
    %336 = vmatprep.subr.bf16.mxu0 %v305
    %337 = vmatpush1.bf16.msra.mxu0 %v304
    %338 = vmatprep.subr.bf16.mxu0 %v307
    %339 = vmatpush1.bf16.msra.mxu0 %v306
    %340 = vmatprep.subr.bf16.mxu0 %v309
    %341 = vmatpush1.bf16.msra.mxu0 %v308
    %342 = vmatprep.subr.bf16.mxu0 %v311
    %343 = vmatpush1.bf16.msra.mxu0 %v310
    %344 = vmatprep.subr.bf16.mxu0 %v313
    %345 = vmatpush1.bf16.msra.mxu0 %v312
    %346 = vmatprep.subr.bf16.mxu0 %v315
    %347 = vmatpush1.bf16.msra.mxu0 %v314
    %348 = vmatprep.subr.bf16.mxu0 %v317
    %349 = vmatpush1.bf16.msra.mxu0 %v316
    %350 = vmatprep.subr.bf16.mxu0 0
    %351 = vmatpush1.bf16.msra.mxu0 0
    %352 = vmatprep.subr.bf16.mxu0 0
    %353 = vmatpush1.bf16.msra.mxu0 0
    %354 = vmatprep.subr.bf16.mxu0 0
    %355 = vmatpush1.bf16.msra.mxu0 0
    %356 = vmatprep.subr.bf16.mxu0 0
    %357 = vmatpush1.bf16.msra.mxu0 0
    %358 = vmatprep.subr.bf16.mxu0 0
    %359 = vmatpush1.bf16.msra.mxu0 0
    %360 = vmatprep.subr.bf16.mxu0 0
    %361 = vmatpush1.bf16.msra.mxu0 0
    %362 = vmatprep.subr.bf16.mxu0 0
    %363 = vmatpush1.bf16.msra.mxu0 0
    %364 = vmatprep.subr.bf16.mxu0 0
    %365 = vmatpush1.bf16.msra.mxu0 0
    %366 = vmatprep.mubr.bf16.mxu0 0
    %367 = vmatmul.mubr.bf16.gmra.mrb[0].mxu0 %v94
    %v368 = vpop.f32.mrb[0].mxu0
    %v369 = vadd.f32 0.0, %v368
    %v370 = vpop.f32.mrb[0].mxu0
    %v371 = vadd.f32 0.0, %v370
    %v372 = vpop.f32.mrb[0].mxu0
    %v373 = vadd.f32 0.0, %v372
    %v374 = vpop.f32.mrb[0].mxu0
    %v375 = vadd.f32 0.0, %v374
    %376 = vdwg.mxu0
    %v377 = vxor.u32 %v369, 2147483648
    %v378 = vxor.u32 %v371, 2147483648
    %v379 = vxor.u32 %v373, 2147483648
    %v380 = vxor.u32 %v375, 2147483648
    %v381 = vmul.f32 %v377, 1.442695
    %v382 = vpow.pop %v381
    %v383 = vmul.f32 %v378, 1.442695
    %v384 = vpow.pop %v383
    %v385 = vmul.f32 %v379, 1.442695
    %v386 = vpow.pop %v385
    %v387 = vmul.f32 %v380, 1.442695
    %v388 = vpow.pop %v387
    %v389 = vadd.f32 %v382, 1.0
    %v390 = vadd.f32 %v384, 1.0
    %v391 = vadd.f32 %v386, 1.0
    %v392 = vadd.f32 %v388, 1.0
    %v393 = vrcp.pop %v389
    %v394 = vmul.f32 1.0, %v393
    %v395 = vrcp.pop %v390
    %v396 = vmul.f32 1.0, %v395
    %v397 = vrcp.pop %v391
    %v398 = vmul.f32 1.0, %v397
    %v399 = vrcp.pop %v392
    %v400 = vmul.f32 1.0, %v399
    %v401 = vmul.f32 %v369, %v394
    %v402 = vmul.f32 %v371, %v396
    %v403 = vmul.f32 %v373, %v398
    %v404 = vmul.f32 %v375, %v400
    %405 = vst [vmem:[%s5] sm:$0xff] %v401
    %406 = vst [vmem:[%s5 + $0x8] sm:$0xff] %v402
    %407 = vst [vmem:[%s5 + $0x10] sm:$0xff] %v403
    %408 = vst [vmem:[%s5 + $0x18] sm:$0xff] %v404
    // Predicated region
    $region34: #{hawk_forward.12} parent=1 // pred_check
      _
    $region35: #{hawk_forward.12} parent=1 // pred_check_branch
      %410 = sbr.rel (0) target = $region37
    $region36: #{hawk_forward.12} parent=1 // pred_region
      _
    $region37: #{hawk_forward.12} parent=1 // pred_fallthru
      _
    // Predicated region
    $region38: #{hawk_forward.12} parent=1 // pred_check
      _
    $region39: #{hawk_forward.12} parent=1 // pred_check_branch
      %412 = sbr.rel (0) target = $region41
    $region40: #{hawk_forward.12} parent=1 // pred_region
      _
    $region41: #{hawk_forward.12} parent=1 // pred_fallthru
      _
    // Predicated region
    $region42: #{hawk_forward.12} parent=1 // pred_check
      _
    $region43: #{hawk_forward.12} parent=1 // pred_check_branch
      %414 = sbr.rel (0) target = $region45
    $region44: #{hawk_forward.12} parent=1 // pred_region
      _
    $region45: #{hawk_forward.12} parent=1 // pred_fallthru
      _
    // Predicated region
    $region46: #{hawk_forward.12} parent=1 // pred_check
      _
    $region47: #{hawk_forward.12} parent=1 // pred_check_branch
      %416 = sbr.rel (0) target = $region49
    $region48: #{hawk_forward.12} parent=1 // pred_region
      _
    $region49: #{hawk_forward.12} parent=1 // pred_fallthru
      _
    // Predicated region
    $region50: #{hawk_forward.12} parent=1 // pred_check
      _
    $region51: #{hawk_forward.12} parent=1 // pred_check_branch
      %418 = sbr.rel (0) target = $region53
    $region52: #{hawk_forward.12} parent=1 // pred_region
      _
    $region53: #{hawk_forward.12} parent=1 // pred_fallthru
      _
    // Predicated region
    $region54: #{hawk_forward.12} parent=1 // pred_check
      _
    $region55: #{hawk_forward.12} parent=1 // pred_check_branch
      %420 = sbr.rel (0) target = $region57
    $region56: #{hawk_forward.12} parent=1 // pred_region
      _
    $region57: #{hawk_forward.12} parent=1 // pred_fallthru
      _
    %421 = vsyncpa [#allocation3], 1
    %422 = vsyncpa [#allocation5], 1

// kernel: hawk_forward.13
$region0: #{hawk_forward.13}
  #allocation0 [shape = 'u32[]', space=smem, size = 0x4, offset = 0x4, fixed_abs, tag = 'smem constant byte address 0x4 - core index']
  #allocation1 [shape = 'u32[144,128]{1,0:T(1,128)}', space=vmem, size = 0x12000, scoped, tag = 'internal scratch']
  %s0 = inlined_call_operand.vmem [shape: f32[16,256], index: 0, kind: input, shape index: {}, may-alias: {0,3}]
  %s1 = inlined_call_operand.vmem [shape: bf16[256,256], index: 1, kind: input, shape index: {}]
  %s2 = inlined_call_operand.hbm [shape: bf16[256,256], index: 2, kind: input, shape index: {}]
  %s3 = inlined_call_operand.vmem [shape: f32[16,256], index: 3, kind: input, shape index: {}, may-alias: {0,3}]
  %s4 = inlined_call_operand.vmem [shape: f32[1,256], index: 4, kind: input, shape index: {}]
  %s5 = inlined_call_operand.vmem [shape: f32[16,256], index: 5, kind: output, shape index: {0}]
  %s6 = inlined_call_operand.vmem [shape: f32[16,256], index: 6, kind: output, shape index: {1}]
  %7 = xla_tuple %s5, %s6
  %s8 = sld [smem:[#allocation0]]
  $region50: #{hawk_forward.13} parent=0
    _
  %s10 = ssub.s32 1, %s8
  %s11 = scalar_select 0, %s10, %s8
  $region1: #{hawk_forward.13} parent=0
    #allocation2 [shape = 'u8[131072]{0}', space=vmem, size = 0x20000, scoped, tag = 'input window, operand 2, single buffered']
    #allocation3 [shape = 's32[1]{0}', space=sflag, size = 0x4, scoped, tag = 'scoped memory for hawk_forward.13']
    %12 = vsyncpa [#allocation3], 0
    // Predicated region
    $region2: #{hawk_forward.13} parent=1 // pred_check
      _
    $region3: #{hawk_forward.13} parent=1 // pred_check_branch
      %14 = sbr.rel (0) target = $region5
    $region4: #{hawk_forward.13} parent=1 // pred_region
      _
    $region5: #{hawk_forward.13} parent=1 // pred_fallthru
      _
    // Predicated region
    $region6: #{hawk_forward.13} parent=1 // pred_check
      _
    $region7: #{hawk_forward.13} parent=1 // pred_check_branch
      %16 = sbr.rel (0) target = $region9
    $region8: #{hawk_forward.13} parent=1 // pred_region
      _
    $region9: #{hawk_forward.13} parent=1 // pred_fallthru
      _
    // Predicated region
    $region10: #{hawk_forward.13} parent=1 // pred_check
      _
    $region11: #{hawk_forward.13} parent=1 // pred_check_branch
      %18 = sbr.rel (0) target = $region13
    $region12: #{hawk_forward.13} parent=1 // pred_region
      %s20 = ssub.s32 4096, 4096
      %21 = vsyncadd [#allocation3], %s20
      %s22 = sshll.u32 [#allocation2], 4
      %s23 = int_to_ptr.vmem [resolvable:$true] %s22
      %28 = dma.hbm_to_vmem [thread:$0]  %s2, 4096, %s23, [#allocation3], 128, 128, 8
    $region13: #{hawk_forward.13} parent=1 // pred_fallthru
      _
    // Predicated region
    $region14: #{hawk_forward.13} parent=1 // pred_check
      _
    $region15: #{hawk_forward.13} parent=1 // pred_check_branch
      %30 = sbr.rel (0) target = $region17
    $region16: #{hawk_forward.13} parent=1 // pred_region
      _
    $region17: #{hawk_forward.13} parent=1 // pred_fallthru
      _
    // Predicated region
    $region18: #{hawk_forward.13} parent=1 // pred_check
      _
    $region19: #{hawk_forward.13} parent=1 // pred_check_branch
      %32 = sbr.rel (0) target = $region21
    $region20: #{hawk_forward.13} parent=1 // pred_region
      _
    $region21: #{hawk_forward.13} parent=1 // pred_fallthru
      _
    // Predicated region
    $region22: #{hawk_forward.13} parent=1 // pred_check
      _
    $region23: #{hawk_forward.13} parent=1 // pred_check_branch
      %34 = sbr.rel (0) target = $region25
    $region24: #{hawk_forward.13} parent=1 // pred_region
      %35 = dma.done [#allocation3], 4096
    $region25: #{hawk_forward.13} parent=1 // pred_fallthru
      _
    %p36 = scmp.eq.s32.totalorder 0, 0
    // Predicated region
    $region26: #{hawk_forward.13} parent=1 // pred_check
      %p37 = pneg %p36
    $region27: #{hawk_forward.13} parent=1 // pred_check_branch
      %39 = sbr.rel (%p37) target = $region29
    $region28: #{hawk_forward.13} parent=1 // pred_region
      %40 = vst [vmem:[%s5] sm:$0xff] 0.0
      %41 = vst [vmem:[%s5 + $0x8] sm:$0xff] 0.0
      %42 = vst [vmem:[%s5 + $0x10] sm:$0xff] 0.0
      %43 = vst [vmem:[%s5 + $0x18] sm:$0xff] 0.0
      %44 = vst [vmem:[%s6] sm:$0xff] 0.0
      %45 = vst [vmem:[%s6 + $0x8] sm:$0xff] 0.0
      %46 = vst [vmem:[%s6 + $0x10] sm:$0xff] 0.0
      %47 = vst [vmem:[%s6 + $0x18] sm:$0xff] 0.0
    $region29: #{hawk_forward.13} parent=1 // pred_fallthru
      _
    %v48 = vld [vmem:[%s0] sm:$0xff]
    %v49 = vld [vmem:[%s0 + $0x8] sm:$0xff]
    %v50 = vld [vmem:[%s0 + $0x10] sm:$0xff]
    %v51 = vld [vmem:[%s0 + $0x18] sm:$0xff]
    %v52 = vpack.c.bf16 %v50, %v48
    %v53 = vpack.c.bf16 %v51, %v49
    %v54 = vld [vmem:[%s5] sm:$0xff]
    %v55 = vld [vmem:[%s5 + $0x8] sm:$0xff]
    %v56 = vld [vmem:[%s5 + $0x10] sm:$0xff]
    %v57 = vld [vmem:[%s5 + $0x18] sm:$0xff]
    %v58 = vld [vmem:[%s1] sm:$0xff]
    %v59 = vld [vmem:[%s1 + $0x8] sm:$0xff]
    %v60 = vld [vmem:[%s1 + $0x10] sm:$0xff]
    %v61 = vld [vmem:[%s1 + $0x18] sm:$0xff]
    %v62 = vld [vmem:[%s1 + $0x20] sm:$0xff]
    %v63 = vld [vmem:[%s1 + $0x28] sm:$0xff]
    %v64 = vld [vmem:[%s1 + $0x30] sm:$0xff]
    %v65 = vld [vmem:[%s1 + $0x38] sm:$0xff]
    %v66 = vld [vmem:[%s1 + $0x40] sm:$0xff]
    %v67 = vld [vmem:[%s1 + $0x48] sm:$0xff]
    %v68 = vld [vmem:[%s1 + $0x50] sm:$0xff]
    %v69 = vld [vmem:[%s1 + $0x58] sm:$0xff]
    %v70 = vld [vmem:[%s1 + $0x60] sm:$0xff]
    %v71 = vld [vmem:[%s1 + $0x68] sm:$0xff]
    %v72 = vld [vmem:[%s1 + $0x70] sm:$0xff]
    %v73 = vld [vmem:[%s1 + $0x78] sm:$0xff]
    %v74 = vld [vmem:[%s1 + $0x80] sm:$0xff]
    %v75 = vld [vmem:[%s1 + $0x88] sm:$0xff]
    %v76 = vld [vmem:[%s1 + $0x90] sm:$0xff]
    %v77 = vld [vmem:[%s1 + $0x98] sm:$0xff]
    %v78 = vld [vmem:[%s1 + $0xa0] sm:$0xff]
    %v79 = vld [vmem:[%s1 + $0xa8] sm:$0xff]
    %v80 = vld [vmem:[%s1 + $0xb0] sm:$0xff]
    %v81 = vld [vmem:[%s1 + $0xb8] sm:$0xff]
    %v82 = vld [vmem:[%s1 + $0xc0] sm:$0xff]
    %v83 = vld [vmem:[%s1 + $0xc8] sm:$0xff]
    %v84 = vld [vmem:[%s1 + $0xd0] sm:$0xff]
    %v85 = vld [vmem:[%s1 + $0xd8] sm:$0xff]
    %v86 = vld [vmem:[%s1 + $0xe0] sm:$0xff]
    %v87 = vld [vmem:[%s1 + $0xe8] sm:$0xff]
    %v88 = vld [vmem:[%s1 + $0xf0] sm:$0xff]
    %v89 = vld [vmem:[%s1 + $0xf8] sm:$0xff]
    %v122 = vunpack.c.l.b16 %v58
    %v123 = vunpack.c.h.b16 %v58
    %v124 = vunpack.c.l.b16 %v59
    %v125 = vunpack.c.h.b16 %v59
    %v126 = vunpack.c.l.b16 %v60
    %v127 = vunpack.c.h.b16 %v60
    %v128 = vunpack.c.l.b16 %v61
    %v129 = vunpack.c.h.b16 %v61
    %v130 = vunpack.c.l.b16 %v62
    %v131 = vunpack.c.h.b16 %v62
    %v132 = vunpack.c.l.b16 %v63
    %v133 = vunpack.c.h.b16 %v63
    %v134 = vunpack.c.l.b16 %v64
    %v135 = vunpack.c.h.b16 %v64
    %v136 = vunpack.c.l.b16 %v65
    %v137 = vunpack.c.h.b16 %v65
    %v138 = vunpack.c.l.b16 %v66
    %v139 = vunpack.c.h.b16 %v66
    %v140 = vunpack.c.l.b16 %v67
    %v141 = vunpack.c.h.b16 %v67
    %v142 = vunpack.c.l.b16 %v68
    %v143 = vunpack.c.h.b16 %v68
    %v144 = vunpack.c.l.b16 %v69
    %v145 = vunpack.c.h.b16 %v69
    %v146 = vunpack.c.l.b16 %v70
    %v147 = vunpack.c.h.b16 %v70
    %v148 = vunpack.c.l.b16 %v71
    %v149 = vunpack.c.h.b16 %v71
    %v150 = vunpack.c.l.b16 %v72
    %v151 = vunpack.c.h.b16 %v72
    %v152 = vunpack.c.l.b16 %v73
    %v153 = vunpack.c.h.b16 %v73
    %v154 = vunpack.c.l.b16 %v74
    %v155 = vunpack.c.h.b16 %v74
    %v156 = vunpack.c.l.b16 %v75
    %v157 = vunpack.c.h.b16 %v75
    %v158 = vunpack.c.l.b16 %v76
    %v159 = vunpack.c.h.b16 %v76
    %v160 = vunpack.c.l.b16 %v77
    %v161 = vunpack.c.h.b16 %v77
    %v162 = vunpack.c.l.b16 %v78
    %v163 = vunpack.c.h.b16 %v78
    %v164 = vunpack.c.l.b16 %v79
    %v165 = vunpack.c.h.b16 %v79
    %v166 = vunpack.c.l.b16 %v80
    %v167 = vunpack.c.h.b16 %v80
    %v168 = vunpack.c.l.b16 %v81
    %v169 = vunpack.c.h.b16 %v81
    %v170 = vunpack.c.l.b16 %v82
    %v171 = vunpack.c.h.b16 %v82
    %v172 = vunpack.c.l.b16 %v83
    %v173 = vunpack.c.h.b16 %v83
    %v174 = vunpack.c.l.b16 %v84
    %v175 = vunpack.c.h.b16 %v84
    %v176 = vunpack.c.l.b16 %v85
    %v177 = vunpack.c.h.b16 %v85
    %v178 = vunpack.c.l.b16 %v86
    %v179 = vunpack.c.h.b16 %v86
    %v180 = vunpack.c.l.b16 %v87
    %v181 = vunpack.c.h.b16 %v87
    %v182 = vunpack.c.l.b16 %v88
    %v183 = vunpack.c.h.b16 %v88
    %v184 = vunpack.c.l.b16 %v89
    %v185 = vunpack.c.h.b16 %v89
    %v186 = vpack.c.b16 %v124, %v122
    %v187 = vpack.c.b16 %v125, %v123
    %v188 = vpack.c.b16 %v128, %v126
    %v189 = vpack.c.b16 %v129, %v127
    %v190 = vpack.c.b16 %v132, %v130
    %v191 = vpack.c.b16 %v133, %v131
    %v192 = vpack.c.b16 %v136, %v134
    %v193 = vpack.c.b16 %v137, %v135
    %v194 = vpack.c.b16 %v140, %v138
    %v195 = vpack.c.b16 %v141, %v139
    %v196 = vpack.c.b16 %v144, %v142
    %v197 = vpack.c.b16 %v145, %v143
    %v198 = vpack.c.b16 %v148, %v146
    %v199 = vpack.c.b16 %v149, %v147
    %v200 = vpack.c.b16 %v152, %v150
    %v201 = vpack.c.b16 %v153, %v151
    %v202 = vpack.c.b16 %v156, %v154
    %v203 = vpack.c.b16 %v157, %v155
    %v204 = vpack.c.b16 %v160, %v158
    %v205 = vpack.c.b16 %v161, %v159
    %v206 = vpack.c.b16 %v164, %v162
    %v207 = vpack.c.b16 %v165, %v163
    %v208 = vpack.c.b16 %v168, %v166
    %v209 = vpack.c.b16 %v169, %v167
    %v210 = vpack.c.b16 %v172, %v170
    %v211 = vpack.c.b16 %v173, %v171
    %v212 = vpack.c.b16 %v176, %v174
    %v213 = vpack.c.b16 %v177, %v175
    %v214 = vpack.c.b16 %v180, %v178
    %v215 = vpack.c.b16 %v181, %v179
    %v216 = vpack.c.b16 %v184, %v182
    %v217 = vpack.c.b16 %v185, %v183
    %250 = vmatprep.subr.bf16.mxu0 %v187
    %251 = vmatpush1.bf16.msra.mxu0 %v186
    %252 = vmatprep.subr.bf16.mxu0 %v189
    %253 = vmatpush1.bf16.msra.mxu0 %v188
    %254 = vmatprep.subr.bf16.mxu0 %v191
    %255 = vmatpush1.bf16.msra.mxu0 %v190
    %256 = vmatprep.subr.bf16.mxu0 %v193
    %257 = vmatpush1.bf16.msra.mxu0 %v192
    %258 = vmatprep.subr.bf16.mxu0 %v195
    %259 = vmatpush1.bf16.msra.mxu0 %v194
    %260 = vmatprep.subr.bf16.mxu0 %v197
    %261 = vmatpush1.bf16.msra.mxu0 %v196
    %262 = vmatprep.subr.bf16.mxu0 %v199
    %263 = vmatpush1.bf16.msra.mxu0 %v198
    %264 = vmatprep.subr.bf16.mxu0 %v201
    %265 = vmatpush1.bf16.msra.mxu0 %v200
    %266 = vmatprep.subr.bf16.mxu0 %v203
    %267 = vmatpush1.bf16.msra.mxu0 %v202
    %268 = vmatprep.subr.bf16.mxu0 %v205
    %269 = vmatpush1.bf16.msra.mxu0 %v204
    %270 = vmatprep.subr.bf16.mxu0 %v207
    %271 = vmatpush1.bf16.msra.mxu0 %v206
    %272 = vmatprep.subr.bf16.mxu0 %v209
    %273 = vmatpush1.bf16.msra.mxu0 %v208
    %274 = vmatprep.subr.bf16.mxu0 %v211
    %275 = vmatpush1.bf16.msra.mxu0 %v210
    %276 = vmatprep.subr.bf16.mxu0 %v213
    %277 = vmatpush1.bf16.msra.mxu0 %v212
    %278 = vmatprep.subr.bf16.mxu0 %v215
    %279 = vmatpush1.bf16.msra.mxu0 %v214
    %280 = vmatprep.subr.bf16.mxu0 %v217
    %281 = vmatpush1.bf16.msra.mxu0 %v216
    %282 = vmatprep.mubr.bf16.mxu0 %v53
    %283 = vmatmul.mubr.bf16.gmra.mrb[0].mxu0 %v52
    %v284 = vpop.f32.mrb[0].mxu0
    %v285 = vadd.f32 0.0, %v284
    %v286 = vpop.f32.mrb[0].mxu0
    %v287 = vadd.f32 0.0, %v286
    %v288 = vpop.f32.mrb[0].mxu0
    %v289 = vadd.f32 0.0, %v288
    %v290 = vpop.f32.mrb[0].mxu0
    %v291 = vadd.f32 0.0, %v290
    %292 = vdwg.mxu0
    %v293 = vadd.f32 %v54, %v285
    %v294 = vadd.f32 %v55, %v287
    %v295 = vadd.f32 %v56, %v289
    %v296 = vadd.f32 %v57, %v291
    %297 = vst [vmem:[%s5] sm:$0xff] %v293
    %298 = vst [vmem:[%s5 + $0x8] sm:$0xff] %v294
    %299 = vst [vmem:[%s5 + $0x10] sm:$0xff] %v295
    %300 = vst [vmem:[%s5 + $0x18] sm:$0xff] %v296
    %v301 = vld [vmem:[%s6] sm:$0xff]
    %v302 = vld [vmem:[%s6 + $0x8] sm:$0xff]
    %v303 = vld [vmem:[%s6 + $0x10] sm:$0xff]
    %v304 = vld [vmem:[%s6 + $0x18] sm:$0xff]
    %v305 = vld [vmem:[#allocation2] sm:$0xff]
    %v306 = vld [vmem:[#allocation2 + $0x8] sm:$0xff]
    %v307 = vld [vmem:[#allocation2 + $0x10] sm:$0xff]
    %v308 = vld [vmem:[#allocation2 + $0x18] sm:$0xff]
    %v309 = vld [vmem:[#allocation2 + $0x20] sm:$0xff]
    %v310 = vld [vmem:[#allocation2 + $0x28] sm:$0xff]
    %v311 = vld [vmem:[#allocation2 + $0x30] sm:$0xff]
    %v312 = vld [vmem:[#allocation2 + $0x38] sm:$0xff]
    %v313 = vld [vmem:[#allocation2 + $0x40] sm:$0xff]
    %v314 = vld [vmem:[#allocation2 + $0x48] sm:$0xff]
    %v315 = vld [vmem:[#allocation2 + $0x50] sm:$0xff]
    %v316 = vld [vmem:[#allocation2 + $0x58] sm:$0xff]
    %v317 = vld [vmem:[#allocation2 + $0x60] sm:$0xff]
    %v318 = vld [vmem:[#allocation2 + $0x68] sm:$0xff]
    %v319 = vld [vmem:[#allocation2 + $0x70] sm:$0xff]
    %v320 = vld [vmem:[#allocation2 + $0x78] sm:$0xff]
    %v321 = vld [vmem:[#allocation2 + $0x80] sm:$0xff]
    %v322 = vld [vmem:[#allocation2 + $0x88] sm:$0xff]
    %v323 = vld [vmem:[#allocation2 + $0x90] sm:$0xff]
    %v324 = vld [vmem:[#allocation2 + $0x98] sm:$0xff]
    %v325 = vld [vmem:[#allocation2 + $0xa0] sm:$0xff]
    %v326 = vld [vmem:[#allocation2 + $0xa8] sm:$0xff]
    %v327 = vld [vmem:[#allocation2 + $0xb0] sm:$0xff]
    %v328 = vld [vmem:[#allocation2 + $0xb8] sm:$0xff]
    %v329 = vld [vmem:[#allocation2 + $0xc0] sm:$0xff]
    %v330 = vld [vmem:[#allocation2 + $0xc8] sm:$0xff]
    %v331 = vld [vmem:[#allocation2 + $0xd0] sm:$0xff]
    %v332 = vld [vmem:[#allocation2 + $0xd8] sm:$0xff]
    %v333 = vld [vmem:[#allocation2 + $0xe0] sm:$0xff]
    %v334 = vld [vmem:[#allocation2 + $0xe8] sm:$0xff]
    %v335 = vld [vmem:[#allocation2 + $0xf0] sm:$0xff]
    %v336 = vld [vmem:[#allocation2 + $0xf8] sm:$0xff]
    %v369 = vunpack.c.l.b16 %v305
    %v370 = vunpack.c.h.b16 %v305
    %v371 = vunpack.c.l.b16 %v306
    %v372 = vunpack.c.h.b16 %v306
    %v373 = vunpack.c.l.b16 %v307
    %v374 = vunpack.c.h.b16 %v307
    %v375 = vunpack.c.l.b16 %v308
    %v376 = vunpack.c.h.b16 %v308
    %v377 = vunpack.c.l.b16 %v309
    %v378 = vunpack.c.h.b16 %v309
    %v379 = vunpack.c.l.b16 %v310
    %v380 = vunpack.c.h.b16 %v310
    %v381 = vunpack.c.l.b16 %v311
    %v382 = vunpack.c.h.b16 %v311
    %v383 = vunpack.c.l.b16 %v312
    %v384 = vunpack.c.h.b16 %v312
    %v385 = vunpack.c.l.b16 %v313
    %v386 = vunpack.c.h.b16 %v313
    %v387 = vunpack.c.l.b16 %v314
    %v388 = vunpack.c.h.b16 %v314
    %v389 = vunpack.c.l.b16 %v315
    %v390 = vunpack.c.h.b16 %v315
    %v391 = vunpack.c.l.b16 %v316
    %v392 = vunpack.c.h.b16 %v316
    %v393 = vunpack.c.l.b16 %v317
    %v394 = vunpack.c.h.b16 %v317
    %v395 = vunpack.c.l.b16 %v318
    %v396 = vunpack.c.h.b16 %v318
    %v397 = vunpack.c.l.b16 %v319
    %v398 = vunpack.c.h.b16 %v319
    %v399 = vunpack.c.l.b16 %v320
    %v400 = vunpack.c.h.b16 %v320
    %v401 = vunpack.c.l.b16 %v321
    %v402 = vunpack.c.h.b16 %v321
    %v403 = vunpack.c.l.b16 %v322
    %v404 = vunpack.c.h.b16 %v322
    %v405 = vunpack.c.l.b16 %v323
    %v406 = vunpack.c.h.b16 %v323
    %v407 = vunpack.c.l.b16 %v324
    %v408 = vunpack.c.h.b16 %v324
    %v409 = vunpack.c.l.b16 %v325
    %v410 = vunpack.c.h.b16 %v325
    %v411 = vunpack.c.l.b16 %v326
    %v412 = vunpack.c.h.b16 %v326
    %v413 = vunpack.c.l.b16 %v327
    %v414 = vunpack.c.h.b16 %v327
    %v415 = vunpack.c.l.b16 %v328
    %v416 = vunpack.c.h.b16 %v328
    %v417 = vunpack.c.l.b16 %v329
    %v418 = vunpack.c.h.b16 %v329
    %v419 = vunpack.c.l.b16 %v330
    %v420 = vunpack.c.h.b16 %v330
    %v421 = vunpack.c.l.b16 %v331
    %v422 = vunpack.c.h.b16 %v331
    %v423 = vunpack.c.l.b16 %v332
    %v424 = vunpack.c.h.b16 %v332
    %v425 = vunpack.c.l.b16 %v333
    %v426 = vunpack.c.h.b16 %v333
    %v427 = vunpack.c.l.b16 %v334
    %v428 = vunpack.c.h.b16 %v334
    %v429 = vunpack.c.l.b16 %v335
    %v430 = vunpack.c.h.b16 %v335
    %v431 = vunpack.c.l.b16 %v336
    %v432 = vunpack.c.h.b16 %v336
    %v433 = vpack.c.b16 %v371, %v369
    %v434 = vpack.c.b16 %v372, %v370
    %v435 = vpack.c.b16 %v375, %v373
    %v436 = vpack.c.b16 %v376, %v374
    %v437 = vpack.c.b16 %v379, %v377
    %v438 = vpack.c.b16 %v380, %v378
    %v439 = vpack.c.b16 %v383, %v381
    %v440 = vpack.c.b16 %v384, %v382
    %v441 = vpack.c.b16 %v387, %v385
    %v442 = vpack.c.b16 %v388, %v386
    %v443 = vpack.c.b16 %v391, %v389
    %v444 = vpack.c.b16 %v392, %v390
    %v445 = vpack.c.b16 %v395, %v393
    %v446 = vpack.c.b16 %v396, %v394
    %v447 = vpack.c.b16 %v399, %v397
    %v448 = vpack.c.b16 %v400, %v398
    %v449 = vpack.c.b16 %v403, %v401
    %v450 = vpack.c.b16 %v404, %v402
    %v451 = vpack.c.b16 %v407, %v405
    %v452 = vpack.c.b16 %v408, %v406
    %v453 = vpack.c.b16 %v411, %v409
    %v454 = vpack.c.b16 %v412, %v410
    %v455 = vpack.c.b16 %v415, %v413
    %v456 = vpack.c.b16 %v416, %v414
    %v457 = vpack.c.b16 %v419, %v417
    %v458 = vpack.c.b16 %v420, %v418
    %v459 = vpack.c.b16 %v423, %v421
    %v460 = vpack.c.b16 %v424, %v422
    %v461 = vpack.c.b16 %v427, %v425
    %v462 = vpack.c.b16 %v428, %v426
    %v463 = vpack.c.b16 %v431, %v429
    %v464 = vpack.c.b16 %v432, %v430
    %497 = vmatprep.subr.bf16.mxu0 %v434
    %498 = vmatpush1.bf16.msra.mxu0 %v433
    %499 = vmatprep.subr.bf16.mxu0 %v436
    %500 = vmatpush1.bf16.msra.mxu0 %v435
    %501 = vmatprep.subr.bf16.mxu0 %v438
    %502 = vmatpush1.bf16.msra.mxu0 %v437
    %503 = vmatprep.subr.bf16.mxu0 %v440
    %504 = vmatpush1.bf16.msra.mxu0 %v439
    %505 = vmatprep.subr.bf16.mxu0 %v442
    %506 = vmatpush1.bf16.msra.mxu0 %v441
    %507 = vmatprep.subr.bf16.mxu0 %v444
    %508 = vmatpush1.bf16.msra.mxu0 %v443
    %509 = vmatprep.subr.bf16.mxu0 %v446
    %510 = vmatpush1.bf16.msra.mxu0 %v445
    %511 = vmatprep.subr.bf16.mxu0 %v448
    %512 = vmatpush1.bf16.msra.mxu0 %v447
    %513 = vmatprep.subr.bf16.mxu0 %v450
    %514 = vmatpush1.bf16.msra.mxu0 %v449
    %515 = vmatprep.subr.bf16.mxu0 %v452
    %516 = vmatpush1.bf16.msra.mxu0 %v451
    %517 = vmatprep.subr.bf16.mxu0 %v454
    %518 = vmatpush1.bf16.msra.mxu0 %v453
    %519 = vmatprep.subr.bf16.mxu0 %v456
    %520 = vmatpush1.bf16.msra.mxu0 %v455
    %521 = vmatprep.subr.bf16.mxu0 %v458
    %522 = vmatpush1.bf16.msra.mxu0 %v457
    %523 = vmatprep.subr.bf16.mxu0 %v460
    %524 = vmatpush1.bf16.msra.mxu0 %v459
    %525 = vmatprep.subr.bf16.mxu0 %v462
    %526 = vmatpush1.bf16.msra.mxu0 %v461
    %527 = vmatprep.subr.bf16.mxu0 %v464
    %528 = vmatpush1.bf16.msra.mxu0 %v463
    %529 = vmatprep.mubr.bf16.mxu0 %v53
    %530 = vmatmul.mubr.bf16.gmra.mrb[0].mxu0 %v52
    %v531 = vpop.f32.mrb[0].mxu0
    %v532 = vadd.f32 0.0, %v531
    %v533 = vpop.f32.mrb[0].mxu0
    %v534 = vadd.f32 0.0, %v533
    %v535 = vpop.f32.mrb[0].mxu0
    %v536 = vadd.f32 0.0, %v535
    %v537 = vpop.f32.mrb[0].mxu0
    %v538 = vadd.f32 0.0, %v537
    %539 = vdwg.mxu0
    %v540 = vadd.f32 %v301, %v532
    %v541 = vadd.f32 %v302, %v534
    %v542 = vadd.f32 %v303, %v536
    %v543 = vadd.f32 %v304, %v538
    %544 = vst [vmem:[%s6] sm:$0xff] %v540
    %545 = vst [vmem:[%s6 + $0x8] sm:$0xff] %v541
    %546 = vst [vmem:[%s6 + $0x10] sm:$0xff] %v542
    %547 = vst [vmem:[%s6 + $0x18] sm:$0xff] %v543
    // Predicated region
    $region30: #{hawk_forward.13} parent=1 // pred_check
      %p548 = pneg %p36
    $region31: #{hawk_forward.13} parent=1 // pred_check_branch
      %550 = sbr.rel (%p548) target = $region33
    $region32: #{hawk_forward.13} parent=1 // pred_region
      %v551 = vld [vmem:[%s5] sm:$0xff]
      %v552 = vld [vmem:[%s5 + $0x8] sm:$0xff]
      %v553 = vld [vmem:[%s5 + $0x10] sm:$0xff]
      %v554 = vld [vmem:[%s5 + $0x18] sm:$0xff]
      %v555 = vxor.u32 %v551, 2147483648
      %v556 = vxor.u32 %v552, 2147483648
      %v557 = vxor.u32 %v553, 2147483648
      %v558 = vxor.u32 %v554, 2147483648
      %v559 = vmul.f32 %v555, 1.442695
      %v560 = vpow.pop %v559
      %v561 = vmul.f32 %v556, 1.442695
      %v562 = vpow.pop %v561
      %v563 = vmul.f32 %v557, 1.442695
      %v564 = vpow.pop %v563
      %v565 = vmul.f32 %v558, 1.442695
      %v566 = vpow.pop %v565
      %v567 = vadd.f32 %v560, 1.0
      %v568 = vadd.f32 %v562, 1.0
      %v569 = vadd.f32 %v564, 1.0
      %v570 = vadd.f32 %v566, 1.0
      %v571 = vrcp.pop %v567
      %v572 = vmul.f32 1.0, %v571
      %v573 = vrcp.pop %v568
      %v574 = vmul.f32 1.0, %v573
      %v575 = vrcp.pop %v569
      %v576 = vmul.f32 1.0, %v575
      %v577 = vrcp.pop %v570
      %v578 = vmul.f32 1.0, %v577
      %v579 = vld [vmem:[%s6] sm:$0xff]
      %v580 = vld [vmem:[%s6 + $0x8] sm:$0xff]
      %v581 = vld [vmem:[%s6 + $0x10] sm:$0xff]
      %v582 = vld [vmem:[%s6 + $0x18] sm:$0xff]
      %v583 = vxor.u32 %v579, 2147483648
      %v584 = vxor.u32 %v580, 2147483648
      %v585 = vxor.u32 %v581, 2147483648
      %v586 = vxor.u32 %v582, 2147483648
      %v587 = vmul.f32 %v583, 1.442695
      %v588 = vpow.pop %v587
      %v589 = vmul.f32 %v584, 1.442695
      %v590 = vpow.pop %v589
      %v591 = vmul.f32 %v585, 1.442695
      %v592 = vpow.pop %v591
      %v593 = vmul.f32 %v586, 1.442695
      %v594 = vpow.pop %v593
      %v595 = vadd.f32 %v588, 1.0
      %v596 = vadd.f32 %v590, 1.0
      %v597 = vadd.f32 %v592, 1.0
      %v598 = vadd.f32 %v594, 1.0
      %v599 = vrcp.pop %v595
      %v600 = vmul.f32 1.0, %v599
      %v601 = vrcp.pop %v596
      %v602 = vmul.f32 1.0, %v601
      %v603 = vrcp.pop %v597
      %v604 = vmul.f32 1.0, %v603
      %v605 = vrcp.pop %v598
      %v606 = vmul.f32 1.0, %v605
      %v607 = vld [vmem:[%s4] sm:$0x3]
      %v609 = vlaneseq
      %v610 = vshrl.u32 %v609, 7
      %v611 = vsub.s32 0, %v610
      %v612 = vrot.slane %v607, %v611
      %v613 = vlaneseq
      %v614 = vshrl.u32 %v613, 7
      %v615 = vsub.s32 1, %v614
      %v616 = vrot.slane %v607, %v615
      %v619 = vmul.f32 %v600, %v612
      %v620 = vmul.f32 %v602, %v616
      %v621 = vmul.f32 %v604, %v612
      %v622 = vmul.f32 %v606, %v616
      %v623 = vmul.f32 %v619, 1.442695
      %v624 = vpow.pop %v623
      %v625 = vmul.f32 %v620, 1.442695
      %v626 = vpow.pop %v625
      %v627 = vmul.f32 %v621, 1.442695
      %v628 = vpow.pop %v627
      %v629 = vmul.f32 %v622, 1.442695
      %v630 = vpow.pop %v629
      %v631 = vmul.f32 %v624, %v624
      %v632 = vmul.f32 %v626, %v626
      %v633 = vmul.f32 %v628, %v628
      %v634 = vmul.f32 %v630, %v630
      %v635 = vsub.f32 1.0, %v631
      %v636 = vsub.f32 1.0, %v632
      %v637 = vsub.f32 1.0, %v633
      %v638 = vsub.f32 1.0, %v634
      %v639 = vrsqrt.pop %v635
      %v640 = vmul.f32 %v635, %v639
      %vm641 = vcmp.eq.f32.partialorder %v635, inf
      %v642 = vsel %vm641, %v635, %v640
      %vm643 = vcmp.eq.f32.partialorder %v635, 0.0
      %v644 = vand.u32 %v635, 2147483648
      %v645 = vsel %vm643, %v644, %v642
      %v646 = vrsqrt.pop %v636
      %v647 = vmul.f32 %v636, %v646
      %vm648 = vcmp.eq.f32.partialorder %v636, inf
      %v649 = vsel %vm648, %v636, %v647
      %vm650 = vcmp.eq.f32.partialorder %v636, 0.0
      %v651 = vand.u32 %v636, 2147483648
      %v652 = vsel %vm650, %v651, %v649
      %v653 = vrsqrt.pop %v637
      %v654 = vmul.f32 %v637, %v653
      %vm655 = vcmp.eq.f32.partialorder %v637, inf
      %v656 = vsel %vm655, %v637, %v654
      %vm657 = vcmp.eq.f32.partialorder %v637, 0.0
      %v658 = vand.u32 %v637, 2147483648
      %v659 = vsel %vm657, %v658, %v656
      %v660 = vrsqrt.pop %v638
      %v661 = vmul.f32 %v638, %v660
      %vm662 = vcmp.eq.f32.partialorder %v638, inf
      %v663 = vsel %vm662, %v638, %v661
      %vm664 = vcmp.eq.f32.partialorder %v638, 0.0
      %v665 = vand.u32 %v638, 2147483648
      %v666 = vsel %vm664, %v665, %v663
      %667 = vst [vmem:[%s5] sm:$0xff] %v624
      %668 = vst [vmem:[%s5 + $0x8] sm:$0xff] %v626
      %669 = vst [vmem:[%s5 + $0x10] sm:$0xff] %v628
      %670 = vst [vmem:[%s5 + $0x18] sm:$0xff] %v630
      %v671 = vmul.f32 %v645, %v572
      %v672 = vmul.f32 %v652, %v574
      %v673 = vmul.f32 %v659, %v576
      %v674 = vmul.f32 %v666, %v578
      %v675 = vld [vmem:[%s3] sm:$0xff]
      %v676 = vld [vmem:[%s3 + $0x8] sm:$0xff]
      %v677 = vld [vmem:[%s3 + $0x10] sm:$0xff]
      %v678 = vld [vmem:[%s3 + $0x18] sm:$0xff]
      %v679 = vmul.f32 %v671, %v675
      %v680 = vmul.f32 %v672, %v676
      %v681 = vmul.f32 %v673, %v677
      %v682 = vmul.f32 %v674, %v678
      %683 = vst [vmem:[%s6] sm:$0xff] %v679
      %684 = vst [vmem:[%s6 + $0x8] sm:$0xff] %v680
      %685 = vst [vmem:[%s6 + $0x10] sm:$0xff] %v681
      %686 = vst [vmem:[%s6 + $0x18] sm:$0xff] %v682
    $region33: #{hawk_forward.13} parent=1 // pred_fallthru
      _
    // Predicated region
    $region34: #{hawk_forward.13} parent=1 // pred_check
      _
    $region35: #{hawk_forward.13} parent=1 // pred_check_branch
      %688 = sbr.rel (0) target = $region37
    $region36: #{hawk_forward.13} parent=1 // pred_region
      _
    $region37: #{hawk_forward.13} parent=1 // pred_fallthru
      _
    // Predicated region
    $region38: #{hawk_forward.13} parent=1 // pred_check
      _
    $region39: #{hawk_forward.13} parent=1 // pred_check_branch
      %690 = sbr.rel (0) target = $region41
    $region40: #{hawk_forward.13} parent=1 // pred_region
      _
    $region41: #{hawk_forward.13} parent=1 // pred_fallthru
      _
    // Predicated region
    $region42: #{hawk_forward.13} parent=1 // pred_check
      _
    $region43: #{hawk_forward.13} parent=1 // pred_check_branch
      %692 = sbr.rel (0) target = $region45
    $region44: #{hawk_forward.13} parent=1 // pred_region
      _
    $region45: #{hawk_forward.13} parent=1 // pred_fallthru
      _
    // Predicated region
    $region46: #{hawk_forward.13} parent=1 // pred_check
      _
    $region47: #{hawk_forward.13} parent=1 // pred_check_branch
      %694 = sbr.rel (0) target = $region49
    $region48: #{hawk_forward.13} parent=1 // pred_region
      _
    $region49: #{hawk_forward.13} parent=1 // pred_fallthru
      _
    %695 = vsyncpa [#allocation3], 1

// kernel: hawk_forward.17
$region0: #{hawk_forward.17}
  #allocation0 [shape = 'u32[]', space=smem, size = 0x4, offset = 0x4, fixed_abs, tag = 'smem constant byte address 0x4 - core index']
  #allocation1 [shape = 'u32[144,128]{1,0:T(1,128)}', space=vmem, size = 0x12000, scoped, tag = 'internal scratch']
  %s0 = inlined_call_operand.vmem [shape: f32[16,384], index: 0, kind: input, shape index: {}]
  %s1 = inlined_call_operand.vmem [shape: bf16[384,128], index: 1, kind: input, shape index: {}]
  %s2 = inlined_call_operand.vmem [shape: f32[16,128], index: 2, kind: input, shape index: {}]
  %s3 = inlined_call_operand.vmem [shape: f32[16,128], index: 3, kind: output, shape index: {}]
  %s4 = sld [smem:[#allocation0]]
  $region26: #{hawk_forward.17} parent=0
    _
  %s6 = ssub.s32 1, %s4
  %s7 = scalar_select 0, %s6, %s4
  // Predicated region
  $region2: #{hawk_forward.17} parent=0 // pred_check
    _
  $region3: #{hawk_forward.17} parent=0 // pred_check_branch
    %9 = sbr.rel (0) target = $region5
  $region4: #{hawk_forward.17} parent=0 // pred_region
    _
  $region5: #{hawk_forward.17} parent=0 // pred_fallthru
    _
  // Predicated region
  $region6: #{hawk_forward.17} parent=0 // pred_check
    _
  $region7: #{hawk_forward.17} parent=0 // pred_check_branch
    %11 = sbr.rel (0) target = $region9
  $region8: #{hawk_forward.17} parent=0 // pred_region
    _
  $region9: #{hawk_forward.17} parent=0 // pred_fallthru
    _
  // Predicated region
  $region10: #{hawk_forward.17} parent=0 // pred_check
    _
  $region11: #{hawk_forward.17} parent=0 // pred_check_branch
    %13 = sbr.rel (0) target = $region13
  $region12: #{hawk_forward.17} parent=0 // pred_region
    _
  $region13: #{hawk_forward.17} parent=0 // pred_fallthru
    _
  %p15 = scmp.eq.s32.totalorder 0, 0
  // Predicated region
  $region14: #{hawk_forward.17} parent=0 // pred_check
    %p16 = pneg %p15
  $region15: #{hawk_forward.17} parent=0 // pred_check_branch
    %18 = sbr.rel (%p16) target = $region17
  $region16: #{hawk_forward.17} parent=0 // pred_region
    %v19 = vld [vmem:[%s2] sm:$0xff]
    %v20 = vld [vmem:[%s2 + $0x8] sm:$0xff]
    %21 = vst [vmem:[%s3] sm:$0xff] %v19
    %22 = vst [vmem:[%s3 + $0x8] sm:$0xff] %v20
  $region17: #{hawk_forward.17} parent=0 // pred_fallthru
    _
  %v23 = vld [vmem:[%s3] sm:$0xff]
  %v24 = vld [vmem:[%s3 + $0x8] sm:$0xff]
  %v25 = vld [vmem:[%s0] sm:$0xff]
  %v26 = vld [vmem:[%s0 + $0x8] sm:$0xff]
  %v27 = vld [vmem:[%s0 + $0x10] sm:$0xff]
  %v28 = vld [vmem:[%s0 + $0x18] sm:$0xff]
  %v29 = vld [vmem:[%s0 + $0x20] sm:$0xff]
  %v30 = vld [vmem:[%s0 + $0x28] sm:$0xff]
  %v31 = vpack.c.bf16 %v28, %v25
  %v32 = vpack.c.bf16 %v29, %v26
  %v33 = vpack.c.bf16 %v30, %v27
  %v34 = vld [vmem:[%s1] sm:$0xf]
  %v35 = vld [vmem:[%s1 + $0x4] sm:$0xf]
  %v36 = vld [vmem:[%s1 + $0x8] sm:$0xf]
  %v37 = vld [vmem:[%s1 + $0xc] sm:$0xf]
  %v38 = vld [vmem:[%s1 + $0x10] sm:$0xf]
  %v39 = vld [vmem:[%s1 + $0x14] sm:$0xf]
  %v40 = vld [vmem:[%s1 + $0x18] sm:$0xf]
  %v41 = vld [vmem:[%s1 + $0x1c] sm:$0xf]
  %v42 = vld [vmem:[%s1 + $0x20] sm:$0xf]
  %v43 = vld [vmem:[%s1 + $0x24] sm:$0xf]
  %v44 = vld [vmem:[%s1 + $0x28] sm:$0xf]
  %v45 = vld [vmem:[%s1 + $0x2c] sm:$0xf]
  %v46 = vld [vmem:[%s1 + $0x30] sm:$0xf]
  %v47 = vld [vmem:[%s1 + $0x34] sm:$0xf]
  %v48 = vld [vmem:[%s1 + $0x38] sm:$0xf]
  %v49 = vld [vmem:[%s1 + $0x3c] sm:$0xf]
  %v50 = vld [vmem:[%s1 + $0x40] sm:$0xf]
  %v51 = vld [vmem:[%s1 + $0x44] sm:$0xf]
  %v52 = vld [vmem:[%s1 + $0x48] sm:$0xf]
  %v53 = vld [vmem:[%s1 + $0x4c] sm:$0xf]
  %v54 = vld [vmem:[%s1 + $0x50] sm:$0xf]
  %v55 = vld [vmem:[%s1 + $0x54] sm:$0xf]
  %v56 = vld [vmem:[%s1 + $0x58] sm:$0xf]
  %v57 = vld [vmem:[%s1 + $0x5c] sm:$0xf]
  %v58 = vld [vmem:[%s1 + $0x60] sm:$0xf]
  %v59 = vld [vmem:[%s1 + $0x64] sm:$0xf]
  %v60 = vld [vmem:[%s1 + $0x68] sm:$0xf]
  %v61 = vld [vmem:[%s1 + $0x6c] sm:$0xf]
  %v62 = vld [vmem:[%s1 + $0x70] sm:$0xf]
  %v63 = vld [vmem:[%s1 + $0x74] sm:$0xf]
  %v64 = vld [vmem:[%s1 + $0x78] sm:$0xf]
  %v65 = vld [vmem:[%s1 + $0x7c] sm:$0xf]
  %v66 = vld [vmem:[%s1 + $0x80] sm:$0xf]
  %v67 = vld [vmem:[%s1 + $0x84] sm:$0xf]
  %v68 = vld [vmem:[%s1 + $0x88] sm:$0xf]
  %v69 = vld [vmem:[%s1 + $0x8c] sm:$0xf]
  %v70 = vld [vmem:[%s1 + $0x90] sm:$0xf]
  %v71 = vld [vmem:[%s1 + $0x94] sm:$0xf]
  %v72 = vld [vmem:[%s1 + $0x98] sm:$0xf]
  %v73 = vld [vmem:[%s1 + $0x9c] sm:$0xf]
  %v74 = vld [vmem:[%s1 + $0xa0] sm:$0xf]
  %v75 = vld [vmem:[%s1 + $0xa4] sm:$0xf]
  %v76 = vld [vmem:[%s1 + $0xa8] sm:$0xf]
  %v77 = vld [vmem:[%s1 + $0xac] sm:$0xf]
  %v78 = vld [vmem:[%s1 + $0xb0] sm:$0xf]
  %v79 = vld [vmem:[%s1 + $0xb4] sm:$0xf]
  %v80 = vld [vmem:[%s1 + $0xb8] sm:$0xf]
  %v81 = vld [vmem:[%s1 + $0xbc] sm:$0xf]
  %v130 = vunpack.c.l.b16 %v34
  %v131 = vunpack.c.l.b16 %v35
  %v132 = vunpack.c.l.b16 %v36
  %v133 = vunpack.c.l.b16 %v37
  %v134 = vunpack.c.l.b16 %v38
  %v135 = vunpack.c.l.b16 %v39
  %v136 = vunpack.c.l.b16 %v40
  %v137 = vunpack.c.l.b16 %v41
  %v138 = vunpack.c.l.b16 %v42
  %v139 = vunpack.c.l.b16 %v43
  %v140 = vunpack.c.l.b16 %v44
  %v141 = vunpack.c.l.b16 %v45
  %v142 = vunpack.c.l.b16 %v46
  %v143 = vunpack.c.l.b16 %v47
  %v144 = vunpack.c.l.b16 %v48
  %v145 = vunpack.c.l.b16 %v49
  %v146 = vunpack.c.l.b16 %v50
  %v147 = vunpack.c.l.b16 %v51
  %v148 = vunpack.c.l.b16 %v52
  %v149 = vunpack.c.l.b16 %v53
  %v150 = vunpack.c.l.b16 %v54
  %v151 = vunpack.c.l.b16 %v55
  %v152 = vunpack.c.l.b16 %v56
  %v153 = vunpack.c.l.b16 %v57
  %v154 = vunpack.c.l.b16 %v58
  %v155 = vunpack.c.l.b16 %v59
  %v156 = vunpack.c.l.b16 %v60
  %v157 = vunpack.c.l.b16 %v61
  %v158 = vunpack.c.l.b16 %v62
  %v159 = vunpack.c.l.b16 %v63
  %v160 = vunpack.c.l.b16 %v64
  %v161 = vunpack.c.l.b16 %v65
  %v162 = vunpack.c.l.b16 %v66
  %v163 = vunpack.c.l.b16 %v67
  %v164 = vunpack.c.l.b16 %v68
  %v165 = vunpack.c.l.b16 %v69
  %v166 = vunpack.c.l.b16 %v70
  %v167 = vunpack.c.l.b16 %v71
  %v168 = vunpack.c.l.b16 %v72
  %v169 = vunpack.c.l.b16 %v73
  %v170 = vunpack.c.l.b16 %v74
  %v171 = vunpack.c.l.b16 %v75
  %v172 = vunpack.c.l.b16 %v76
  %v173 = vunpack.c.l.b16 %v77
  %v174 = vunpack.c.l.b16 %v78
  %v175 = vunpack.c.l.b16 %v79
  %v176 = vunpack.c.l.b16 %v80
  %v177 = vunpack.c.l.b16 %v81
  %v178 = vpack.c.b16 %v131, %v130
  %v179 = vpack.c.b16 %v133, %v132
  %v180 = vpack.c.b16 %v135, %v134
  %v181 = vpack.c.b16 %v137, %v136
  %v182 = vpack.c.b16 %v139, %v138
  %v183 = vpack.c.b16 %v141, %v140
  %v184 = vpack.c.b16 %v143, %v142
  %v185 = vpack.c.b16 %v145, %v144
  %v186 = vpack.c.b16 %v147, %v146
  %v187 = vpack.c.b16 %v149, %v148
  %v188 = vpack.c.b16 %v151, %v150
  %v189 = vpack.c.b16 %v153, %v152
  %v190 = vpack.c.b16 %v155, %v154
  %v191 = vpack.c.b16 %v157, %v156
  %v192 = vpack.c.b16 %v159, %v158
  %v193 = vpack.c.b16 %v161, %v160
  %v194 = vpack.c.b16 %v163, %v162
  %v195 = vpack.c.b16 %v165, %v164
  %v196 = vpack.c.b16 %v167, %v166
  %v197 = vpack.c.b16 %v169, %v168
  %v198 = vpack.c.b16 %v171, %v170
  %v199 = vpack.c.b16 %v173, %v172
  %v200 = vpack.c.b16 %v175, %v174
  %v201 = vpack.c.b16 %v177, %v176
  %226 = vmatprep.subr.bf16.mxu0 0
  %227 = vmatpush1.bf16.msra.mxu0 %v178
  %228 = vmatprep.subr.bf16.mxu0 0
  %229 = vmatpush1.bf16.msra.mxu0 %v179
  %230 = vmatprep.subr.bf16.mxu0 0
  %231 = vmatpush1.bf16.msra.mxu0 %v180
  %232 = vmatprep.subr.bf16.mxu0 0
  %233 = vmatpush1.bf16.msra.mxu0 %v181
  %234 = vmatprep.subr.bf16.mxu0 0
  %235 = vmatpush1.bf16.msra.mxu0 %v182
  %236 = vmatprep.subr.bf16.mxu0 0
  %237 = vmatpush1.bf16.msra.mxu0 %v183
  %238 = vmatprep.subr.bf16.mxu0 0
  %239 = vmatpush1.bf16.msra.mxu0 %v184
  %240 = vmatprep.subr.bf16.mxu0 0
  %241 = vmatpush1.bf16.msra.mxu0 %v185
  %242 = vmatprep.subr.bf16.mxu0 0
  %243 = vmatpush1.bf16.msra.mxu0 %v186
  %244 = vmatprep.subr.bf16.mxu0 0
  %245 = vmatpush1.bf16.msra.mxu0 %v187
  %246 = vmatprep.subr.bf16.mxu0 0
  %247 = vmatpush1.bf16.msra.mxu0 %v188
  %248 = vmatprep.subr.bf16.mxu0 0
  %249 = vmatpush1.bf16.msra.mxu0 %v189
  %250 = vmatprep.subr.bf16.mxu0 0
  %251 = vmatpush1.bf16.msra.mxu0 %v190
  %252 = vmatprep.subr.bf16.mxu0 0
  %253 = vmatpush1.bf16.msra.mxu0 %v191
  %254 = vmatprep.subr.bf16.mxu0 0
  %255 = vmatpush1.bf16.msra.mxu0 %v192
  %256 = vmatprep.subr.bf16.mxu0 0
  %257 = vmatpush1.bf16.msra.mxu0 %v193
  %258 = vmatprep.mubr.bf16.mxu0 %v32
  %259 = vmatmul.mubr.bf16.gmra.mrb[0].mxu0 %v31
  %v260 = vpop.f32.mrb[0].mxu0
  %v261 = vadd.f32 0.0, %v260
  %v262 = vpop.f32.mrb[0].mxu0
  %v263 = vpop.f32.mrb[0].mxu0
  %v264 = vadd.f32 0.0, %v263
  %v265 = vpop.f32.mrb[0].mxu0
  %266 = vdwg.mxu0
  %267 = vmatprep.subr.bf16.mxu0 0
  %268 = vmatpush1.bf16.msra.mxu0 %v194
  %269 = vmatprep.subr.bf16.mxu0 0
  %270 = vmatpush1.bf16.msra.mxu0 %v195
  %271 = vmatprep.subr.bf16.mxu0 0
  %272 = vmatpush1.bf16.msra.mxu0 %v196
  %273 = vmatprep.subr.bf16.mxu0 0
  %274 = vmatpush1.bf16.msra.mxu0 %v197
  %275 = vmatprep.subr.bf16.mxu0 0
  %276 = vmatpush1.bf16.msra.mxu0 %v198
  %277 = vmatprep.subr.bf16.mxu0 0
  %278 = vmatpush1.bf16.msra.mxu0 %v199
  %279 = vmatprep.subr.bf16.mxu0 0
  %280 = vmatpush1.bf16.msra.mxu0 %v200
  %281 = vmatprep.subr.bf16.mxu0 0
  %282 = vmatpush1.bf16.msra.mxu0 %v201
  %283 = vmatprep.subr.bf16.mxu0 0
  %284 = vmatpush1.bf16.msra.mxu0 0
  %285 = vmatprep.subr.bf16.mxu0 0
  %286 = vmatpush1.bf16.msra.mxu0 0
  %287 = vmatprep.subr.bf16.mxu0 0
  %288 = vmatpush1.bf16.msra.mxu0 0
  %289 = vmatprep.subr.bf16.mxu0 0
  %290 = vmatpush1.bf16.msra.mxu0 0
  %291 = vmatprep.subr.bf16.mxu0 0
  %292 = vmatpush1.bf16.msra.mxu0 0
  %293 = vmatprep.subr.bf16.mxu0 0
  %294 = vmatpush1.bf16.msra.mxu0 0
  %295 = vmatprep.subr.bf16.mxu0 0
  %296 = vmatpush1.bf16.msra.mxu0 0
  %297 = vmatprep.subr.bf16.mxu0 0
  %298 = vmatpush1.bf16.msra.mxu0 0
  %299 = vmatprep.mubr.bf16.mxu0 0
  %300 = vmatmul.mubr.bf16.gmra.mrb[0].mxu0 %v33
  %v301 = vpop.f32.mrb[0].mxu0
  %v302 = vadd.f32 %v261, %v301
  %v303 = vpop.f32.mrb[0].mxu0
  %v304 = vpop.f32.mrb[0].mxu0
  %v305 = vadd.f32 %v264, %v304
  %v306 = vpop.f32.mrb[0].mxu0
  %307 = vdwg.mxu0
  %v308 = vadd.f32 %v23, %v302
  %v309 = vadd.f32 %v24, %v305
  %310 = vst [vmem:[%s3] sm:$0xff] %v308
  %311 = vst [vmem:[%s3 + $0x8] sm:$0xff] %v309
  // Predicated region
  $region18: #{hawk_forward.17} parent=0 // pred_check
    _
  $region19: #{hawk_forward.17} parent=0 // pred_check_branch
    %313 = sbr.rel (0) target = $region21
  $region20: #{hawk_forward.17} parent=0 // pred_region
    _
  $region21: #{hawk_forward.17} parent=0 // pred_fallthru
    _
  // Predicated region
  $region22: #{hawk_forward.17} parent=0 // pred_check
    _
  $region23: #{hawk_forward.17} parent=0 // pred_check_branch
    %315 = sbr.rel (0) target = $region25
  $region24: #{hawk_forward.17} parent=0 // pred_region
    _
  $region25: #{hawk_forward.17} parent=0 // pred_fallthru
    _

// kernel: hawk_forward.16
$region0: #{hawk_forward.16}
  #allocation0 [shape = 'u32[]', space=smem, size = 0x4, offset = 0x4, fixed_abs, tag = 'smem constant byte address 0x4 - core index']
  #allocation1 [shape = 'u32[144,128]{1,0:T(1,128)}', space=vmem, size = 0x12000, scoped, tag = 'internal scratch']
  %s0 = inlined_call_operand.vmem [shape: f32[16,128], index: 0, kind: input, shape index: {}]
  %s1 = inlined_call_operand.vmem [shape: f32[1,128], index: 1, kind: input, shape index: {}]
  %s2 = inlined_call_operand.vmem [shape: bf16[128,384], index: 2, kind: input, shape index: {}]
  %s3 = inlined_call_operand.vmem [shape: bf16[128,384], index: 3, kind: input, shape index: {}]
  %s4 = inlined_call_operand.vmem [shape: f32[16,384], index: 4, kind: output, shape index: {}]
  %s5 = sld [smem:[#allocation0]]
  $region165: #{hawk_forward.16} parent=0
    _
  %s7 = ssub.s32 1, %s5
  %s8 = scalar_select 0, %s7, %s5
  $region1: #{hawk_forward.16} parent=0
    #allocation2 [shape = 'u8[65536]{0}', space=vmem, size = 0x10000, scoped, tag = 'input window, operand 2']
    #allocation3 [shape = 'u8[65536]{0}', space=vmem, size = 0x10000, scoped, tag = 'input window, operand 3']
    #allocation4 [shape = 'u8[16384]{0}', space=vmem, size = 0x4000, scoped, tag = 'output window, operand 0']
    loop: start=0, step=1, limit=5
    $region2: #{hawk_forward.16} parent=1 // loop_pre_header
      _
    $region3: #{hawk_forward.16} parent=1 // loop_header
      %s10 = sphi 0, %s14
      %p11 = scmp.ge.s32.totalorder %s10, 5
      %s17 = sphi 0, %s29
      %s18 = sphi 0, %s25
      %s19 = sphi 0, %s17
      %s20 = sphi 0, %s18
      %s21 = sphi 0, %s19
      %s22 = sphi 0, %s20
      %s32 = sphi 0, %s34
      %s35 = sphi 0, %s32
      %s36 = sphi 0, %s35
      %s52 = sphi 0, %s36
      %s56 = sphi 0, %s56
      %s58 = sphi 0, %s56
      %s59 = sphi 0, %s58
      %s73 = sphi 0, %s59
      %s79 = sphi 0, %s81
      %s82 = sphi 0, %s79
      %s83 = sphi 0, %s82
      %s99 = sphi 0, %s83
      %s105 = sphi 0, %s107
      %s108 = sphi 0, %s105
      %s109 = sphi 0, %s108
      %s125 = sphi 0, %s109
      %s133 = sphi 0, %s135
      %s136 = sphi 0, %s133
      %s137 = sphi 0, %s136
      %s153 = sphi 0, %s137
    $region4: #{hawk_forward.16} parent=1 // loop_header_branch
      %13 = sbr.rel (%p11) target = $region8
    $region5: #{hawk_forward.16} parent=1 // loop_body
      %s15 = ssub.s32 %s10, 1
      %s16 = ssub.s32 %s10, 2
      %s23 = sadd.s32 1, %s18
      %p24 = scmp.ge.s32.totalorder %s23, 3
      %s25 = scalar_select %p24, 0, %s23
      %s26 = sadd.s32 1, %s17
      %s27 = scalar_select %p24, %s26, %s17
      %p28 = scmp.ge.s32.totalorder %s27, 1
      %s29 = scalar_select %p28, 0, %s27
      %s30 = ssub.s32 %s17, %s29
      %p31 = scmp.eq.s32.totalorder %s30, 0
      %s33 = sadd.s32 %s32, 1
      %s34 = scalar_select %p31, %s32, %s33
      %p37 = pneg %p31
      %p38 = scmp.eq.s32.totalorder %s10, 2
      %p39 = por %p37, %p38
      %p40 = scmp.ne.s32.totalorder %s32, %s35
      %p41 = scmp.eq.s32.totalorder %s10, 0
      %p42 = por %p40, %p41
      %p43 = scmp.ne.s32.totalorder %s32, %s35
      %p44 = scmp.eq.s32.totalorder %s15, 2
      %p45 = por %p43, %p44
      %p46 = scmp.ne.s32.totalorder %s35, %s36
      %p47 = scmp.eq.s32.totalorder %s15, 0
      %p48 = por %p46, %p47
      %p49 = scmp.ne.s32.totalorder %s35, %s36
      %p50 = scmp.eq.s32.totalorder %s16, 2
      %p51 = por %p49, %p50
      %p53 = scmp.ne.s32.totalorder %s36, %s52
      %p54 = scmp.eq.s32.totalorder %s16, 0
      %p55 = por %p53, %p54
      %s57 = sadd.s32 %s56, 1
      %p60 = scmp.eq.s32.totalorder %s10, 2
      %p61 = scmp.ne.s32.totalorder %s56, %s58
      %p62 = scmp.eq.s32.totalorder %s10, 0
      %p63 = por %p61, %p62
      %p64 = scmp.ne.s32.totalorder %s56, %s58
      %p65 = scmp.eq.s32.totalorder %s15, 2
      %p66 = por %p64, %p65
      %p67 = scmp.ne.s32.totalorder %s58, %s59
      %p68 = scmp.eq.s32.totalorder %s15, 0
      %p69 = por %p67, %p68
      %p70 = scmp.ne.s32.totalorder %s58, %s59
      %p71 = scmp.eq.s32.totalorder %s16, 2
      %p72 = por %p70, %p71
      %p74 = scmp.ne.s32.totalorder %s59, %s73
      %p75 = scmp.eq.s32.totalorder %s16, 0
      %p76 = por %p74, %p75
      %s77 = ssub.s32 %s18, %s25
      %p78 = scmp.eq.s32.totalorder %s77, 0
      %s80 = sadd.s32 %s79, 1
      %s81 = scalar_select %p78, %s79, %s80
      %p84 = pneg %p78
      %p85 = scmp.eq.s32.totalorder %s10, 2
      %p86 = por %p84, %p85
      %p87 = scmp.ne.s32.totalorder %s79, %s82
      %p88 = scmp.eq.s32.totalorder %s10, 0
      %p89 = por %p87, %p88
      %p90 = scmp.ne.s32.totalorder %s79, %s82
      %p91 = scmp.eq.s32.totalorder %s15, 2
      %p92 = por %p90, %p91
      %p93 = scmp.ne.s32.totalorder %s82, %s83
      %p94 = scmp.eq.s32.totalorder %s15, 0
      %p95 = por %p93, %p94
      %p96 = scmp.ne.s32.totalorder %s82, %s83
      %p97 = scmp.eq.s32.totalorder %s16, 2
      %p98 = por %p96, %p97
      %p100 = scmp.ne.s32.totalorder %s83, %s99
      %p101 = scmp.eq.s32.totalorder %s16, 0
      %p102 = por %p100, %p101
      %s103 = ssub.s32 %s18, %s25
      %p104 = scmp.eq.s32.totalorder %s103, 0
      %s106 = sadd.s32 %s105, 1
      %s107 = scalar_select %p104, %s105, %s106
      %p110 = pneg %p104
      %p111 = scmp.eq.s32.totalorder %s10, 2
      %p112 = por %p110, %p111
      %p113 = scmp.ne.s32.totalorder %s105, %s108
      %p114 = scmp.eq.s32.totalorder %s10, 0
      %p115 = por %p113, %p114
      %p116 = scmp.ne.s32.totalorder %s105, %s108
      %p117 = scmp.eq.s32.totalorder %s15, 2
      %p118 = por %p116, %p117
      %p119 = scmp.ne.s32.totalorder %s108, %s109
      %p120 = scmp.eq.s32.totalorder %s15, 0
      %p121 = por %p119, %p120
      %p122 = scmp.ne.s32.totalorder %s108, %s109
      %p123 = scmp.eq.s32.totalorder %s16, 2
      %p124 = por %p122, %p123
      %p126 = scmp.ne.s32.totalorder %s109, %s125
      %p127 = scmp.eq.s32.totalorder %s16, 0
      %p128 = por %p126, %p127
      %s129 = ssub.s32 %s17, %s29
      %s130 = ssub.s32 %s18, %s25
      %s131 = sor.u32 %s129, %s130
      %p132 = scmp.eq.s32.totalorder %s131, 0
      %s134 = sadd.s32 %s133, 1
      %s135 = scalar_select %p132, %s133, %s134
      %p138 = pneg %p132
      %p139 = scmp.eq.s32.totalorder %s10, 2
      %p140 = por %p138, %p139
      %p141 = scmp.ne.s32.totalorder %s133, %s136
      %p142 = scmp.eq.s32.totalorder %s10, 0
      %p143 = por %p141, %p142
      %p144 = scmp.ne.s32.totalorder %s133, %s136
      %p145 = scmp.eq.s32.totalorder %s15, 2
      %p146 = por %p144, %p145
      %p147 = scmp.ne.s32.totalorder %s136, %s137
      %p148 = scmp.eq.s32.totalorder %s15, 0
      %p149 = por %p147, %p148
      %p150 = scmp.ne.s32.totalorder %s136, %s137
      %p151 = scmp.eq.s32.totalorder %s16, 2
      %p152 = por %p150, %p151
      %p154 = scmp.ne.s32.totalorder %s137, %s153
      %p155 = scmp.eq.s32.totalorder %s16, 0
      %p156 = por %p154, %p155
      %p157 = scmp.le.s32.totalorder 1, %s10
      %p158 = scmp.lt.s32.totalorder %s10, 4
      %p159 = pnand %p157, %p158
      %p160 = pneg %p159
      // Predicated region
      $region9: #{hawk_forward.16} parent=5 // pred_check
        _
      $region10: #{hawk_forward.16} parent=5 // pred_check_branch
        %162 = sbr.rel (%p159) target = $region12
      $region11: #{hawk_forward.16} parent=5 // pred_region
        %s163 = ssub.s32 %s10, 1
        // Predicated region
        $region13: #{hawk_forward.16} parent=11 // pred_check
          %p164 = pneg %p48
        $region14: #{hawk_forward.16} parent=11 // pred_check_branch
          %166 = sbr.rel (%p164) target = $region16
        $region15: #{hawk_forward.16} parent=11 // pred_region
          %s167 = smul.u32 2, %s19
          %p168 = scmp.lt.s32.totalorder %s167, 1
          %s169 = scalar_select %p168, %s167, 1
          %s170 = smul.addr %s169, 8
          %s171 = scalar_lea.vmem %s0, %s170
          %s172 = smul.u32 2, %s19
        $region16: #{hawk_forward.16} parent=11 // pred_fallthru
          _
        // Predicated region
        $region17: #{hawk_forward.16} parent=11 // pred_check
          %p173 = pneg %p69
        $region18: #{hawk_forward.16} parent=11 // pred_check_branch
          %175 = sbr.rel (%p173) target = $region20
        $region19: #{hawk_forward.16} parent=11 // pred_region
          _
        $region20: #{hawk_forward.16} parent=11 // pred_fallthru
          _
      $region12: #{hawk_forward.16} parent=5 // pred_fallthru
        _
      %p176 = scmp.lt.s32.totalorder %s10, 3
      // Predicated region
      $region21: #{hawk_forward.16} parent=5 // pred_check
        %p177 = pneg %p176
      $region22: #{hawk_forward.16} parent=5 // pred_check_branch
        %179 = sbr.rel (%p177) target = $region24
      $region23: #{hawk_forward.16} parent=5 // pred_region
        // Predicated region
        $region25: #{hawk_forward.16} parent=23 // pred_check
          %p180 = pneg %p89
        $region26: #{hawk_forward.16} parent=23 // pred_check_branch
          %182 = sbr.rel (%p180) target = $region28
        $region27: #{hawk_forward.16} parent=23 // pred_region
          %s183 = sand.u32 %s79, 1
          %s184 = sand.u32 %s79, 1
          %s185 = smul.addr %s184, 64
          %s186 = scalar_lea.vmem [#allocation2], %s185
          %s187 = smul.addr %s18, 4
          %s188 = scalar_lea.vmem %s2, %s187
          // Predicated region
          $region29: #{hawk_forward.16} parent=27 // pred_check
            _
          $region30: #{hawk_forward.16} parent=27 // pred_check_branch
            %190 = sbr.rel (0) target = $region32
          $region31: #{hawk_forward.16} parent=27 // pred_region
            // Predicated region
            $region33: #{hawk_forward.16} parent=31 // pred_check
              _
            $region34: #{hawk_forward.16} parent=31 // pred_check_branch
              %192 = sbr.rel target = $region36
            $region35: #{hawk_forward.16} parent=31 // pred_region
              // Predicated region
              $region48: #{hawk_forward.16} parent=35 // pred_check
                _
              $region49: #{hawk_forward.16} parent=35 // pred_check_branch
                %237 = sbr.rel (0) target = $region51
              $region50: #{hawk_forward.16} parent=35 // pred_region
                loop: start=0, step=1, limit=1
                $region52: #{hawk_forward.16} parent=50 // loop_pre_header
                  _
                $region53: #{hawk_forward.16} parent=50 // loop_header
                  %s239 = sphi 0, %s243
                  %p240 = scmp.ge.s32.totalorder %s239, 1
                  %s244 = sphi %s188, %s188
                  %s245 = sphi %s186, %s186
                $region54: #{hawk_forward.16} parent=50 // loop_header_branch
                  %242 = sbr.rel (%p240) target = $region58
                $region55: #{hawk_forward.16} parent=50 // loop_body
                  _
                $region56: #{hawk_forward.16} parent=50 // loop_footer
                  %s243 = sadd.s32 1, %s239
                $region57: #{hawk_forward.16} parent=50 // loop_footer_branch
                  %238 = sbr.rel target = $region53
                $region58: #{hawk_forward.16} parent=50 // loop_exit
                  _
                loop: start=0, step=1, limit=1
                $region59: #{hawk_forward.16} parent=50 // loop_pre_header
                  _
                $region60: #{hawk_forward.16} parent=50 // loop_header
                  %s248 = sphi 0, %s252
                  %p249 = scmp.ge.s32.totalorder %s248, 1
                  %s253 = sphi %s188, %s188
                  %s254 = sphi %s186, %s186
                $region61: #{hawk_forward.16} parent=50 // loop_header_branch
                  %251 = sbr.rel (%p249) target = $region65
                $region62: #{hawk_forward.16} parent=50 // loop_body
                  %v255 = vld [vmem:[%s253] sm:$0xf]
                  %256 = vst [vmem:[%s254] sm:$0xf] %v255
                  %v257 = vld [vmem:[%s253 + $0xc] sm:$0xf]
                  %258 = vst [vmem:[%s254 + $0x4] sm:$0xf] %v257
                  %v259 = vld [vmem:[%s253 + $0x18] sm:$0xf]
                  %260 = vst [vmem:[%s254 + $0x8] sm:$0xf] %v259
                  %v261 = vld [vmem:[%s253 + $0x24] sm:$0xf]
                  %262 = vst [vmem:[%s254 + $0xc] sm:$0xf] %v261
                  %v263 = vld [vmem:[%s253 + $0x30] sm:$0xf]
                  %264 = vst [vmem:[%s254 + $0x10] sm:$0xf] %v263
                  %v265 = vld [vmem:[%s253 + $0x3c] sm:$0xf]
                  %266 = vst [vmem:[%s254 + $0x14] sm:$0xf] %v265
                  %v267 = vld [vmem:[%s253 + $0x48] sm:$0xf]
                  %268 = vst [vmem:[%s254 + $0x18] sm:$0xf] %v267
                  %v269 = vld [vmem:[%s253 + $0x54] sm:$0xf]
                  %270 = vst [vmem:[%s254 + $0x1c] sm:$0xf] %v269
                  %v271 = vld [vmem:[%s253 + $0x60] sm:$0xf]
                  %272 = vst [vmem:[%s254 + $0x20] sm:$0xf] %v271
                  %v273 = vld [vmem:[%s253 + $0x6c] sm:$0xf]
                  %274 = vst [vmem:[%s254 + $0x24] sm:$0xf] %v273
                  %v275 = vld [vmem:[%s253 + $0x78] sm:$0xf]
                  %276 = vst [vmem:[%s254 + $0x28] sm:$0xf] %v275
                  %v277 = vld [vmem:[%s253 + $0x84] sm:$0xf]
                  %278 = vst [vmem:[%s254 + $0x2c] sm:$0xf] %v277
                  %v279 = vld [vmem:[%s253 + $0x90] sm:$0xf]
                  %280 = vst [vmem:[%s254 + $0x30] sm:$0xf] %v279
                  %v281 = vld [vmem:[%s253 + $0x9c] sm:$0xf]
                  %282 = vst [vmem:[%s254 + $0x34] sm:$0xf] %v281
                  %v283 = vld [vmem:[%s253 + $0xa8] sm:$0xf]
                  %284 = vst [vmem:[%s254 + $0x38] sm:$0xf] %v283
                  %v285 = vld [vmem:[%s253 + $0xb4] sm:$0xf]
                  %286 = vst [vmem:[%s254 + $0x3c] sm:$0xf] %v285
                $region63: #{hawk_forward.16} parent=50 // loop_footer
                  %s252 = sadd.s32 1, %s248
                $region64: #{hawk_forward.16} parent=50 // loop_footer_branch
                  %247 = sbr.rel target = $region60
                $region65: #{hawk_forward.16} parent=50 // loop_exit
                  _
              $region51: #{hawk_forward.16} parent=35 // pred_fallthru
                _
            $region36: #{hawk_forward.16} parent=31 // pred_fallthru
              _
            // Predicated region
            $region37: #{hawk_forward.16} parent=31 // pred_check
              _
            $region38: #{hawk_forward.16} parent=31 // pred_check_branch
              %194 = sbr.rel (0) target = $region40
            $region39: #{hawk_forward.16} parent=31 // pred_region
              loop: start=0, step=1, limit=1
              $region41: #{hawk_forward.16} parent=39 // loop_pre_header
                _
              $region42: #{hawk_forward.16} parent=39 // loop_header
                %s197 = sphi 0, %s201
                %p198 = scmp.ge.s32.totalorder %s197, 1
                %s202 = sphi %s188, %s188
                %s203 = sphi %s186, %s186
              $region43: #{hawk_forward.16} parent=39 // loop_header_branch
                %200 = sbr.rel (%p198) target = $region47
              $region44: #{hawk_forward.16} parent=39 // loop_body
                %v204 = vld [vmem:[%s202] sm:$0xf]
                %205 = vst [vmem:[%s203] sm:$0xf] %v204
                %v206 = vld [vmem:[%s202 + $0xc] sm:$0xf]
                %207 = vst [vmem:[%s203 + $0x4] sm:$0xf] %v206
                %v208 = vld [vmem:[%s202 + $0x18] sm:$0xf]
                %209 = vst [vmem:[%s203 + $0x8] sm:$0xf] %v208
                %v210 = vld [vmem:[%s202 + $0x24] sm:$0xf]
                %211 = vst [vmem:[%s203 + $0xc] sm:$0xf] %v210
                %v212 = vld [vmem:[%s202 + $0x30] sm:$0xf]
                %213 = vst [vmem:[%s203 + $0x10] sm:$0xf] %v212
                %v214 = vld [vmem:[%s202 + $0x3c] sm:$0xf]
                %215 = vst [vmem:[%s203 + $0x14] sm:$0xf] %v214
                %v216 = vld [vmem:[%s202 + $0x48] sm:$0xf]
                %217 = vst [vmem:[%s203 + $0x18] sm:$0xf] %v216
                %v218 = vld [vmem:[%s202 + $0x54] sm:$0xf]
                %219 = vst [vmem:[%s203 + $0x1c] sm:$0xf] %v218
                %v220 = vld [vmem:[%s202 + $0x60] sm:$0xf]
                %221 = vst [vmem:[%s203 + $0x20] sm:$0xf] %v220
                %v222 = vld [vmem:[%s202 + $0x6c] sm:$0xf]
                %223 = vst [vmem:[%s203 + $0x24] sm:$0xf] %v222
                %v224 = vld [vmem:[%s202 + $0x78] sm:$0xf]
                %225 = vst [vmem:[%s203 + $0x28] sm:$0xf] %v224
                %v226 = vld [vmem:[%s202 + $0x84] sm:$0xf]
                %227 = vst [vmem:[%s203 + $0x2c] sm:$0xf] %v226
                %v228 = vld [vmem:[%s202 + $0x90] sm:$0xf]
                %229 = vst [vmem:[%s203 + $0x30] sm:$0xf] %v228
                %v230 = vld [vmem:[%s202 + $0x9c] sm:$0xf]
                %231 = vst [vmem:[%s203 + $0x34] sm:$0xf] %v230
                %v232 = vld [vmem:[%s202 + $0xa8] sm:$0xf]
                %233 = vst [vmem:[%s203 + $0x38] sm:$0xf] %v232
                %v234 = vld [vmem:[%s202 + $0xb4] sm:$0xf]
                %235 = vst [vmem:[%s203 + $0x3c] sm:$0xf] %v234
              $region45: #{hawk_forward.16} parent=39 // loop_footer
                %s201 = sadd.s32 1, %s197
              $region46: #{hawk_forward.16} parent=39 // loop_footer_branch
                %196 = sbr.rel target = $region42
              $region47: #{hawk_forward.16} parent=39 // loop_exit
                _
            $region40: #{hawk_forward.16} parent=31 // pred_fallthru
              _
          $region32: #{hawk_forward.16} parent=27 // pred_fallthru
            _
          %287 = vnop
        $region28: #{hawk_forward.16} parent=23 // pred_fallthru
          _
        // Predicated region
        $region66: #{hawk_forward.16} parent=23 // pred_check
          %p288 = pneg %p115
        $region67: #{hawk_forward.16} parent=23 // pred_check_branch
          %290 = sbr.rel (%p288) target = $region69
        $region68: #{hawk_forward.16} parent=23 // pred_region
          %s291 = sand.u32 %s105, 1
          %s292 = sand.u32 %s105, 1
          %s293 = smul.addr %s292, 64
          %s294 = scalar_lea.vmem [#allocation3], %s293
          %s295 = smul.addr %s18, 4
          %s296 = scalar_lea.vmem %s3, %s295
          // Predicated region
          $region70: #{hawk_forward.16} parent=68 // pred_check
            _
          $region71: #{hawk_forward.16} parent=68 // pred_check_branch
            %298 = sbr.rel (0) target = $region73
          $region72: #{hawk_forward.16} parent=68 // pred_region
            // Predicated region
            $region74: #{hawk_forward.16} parent=72 // pred_check
              _
            $region75: #{hawk_forward.16} parent=72 // pred_check_branch
              %300 = sbr.rel target = $region77
            $region76: #{hawk_forward.16} parent=72 // pred_region
              // Predicated region
              $region89: #{hawk_forward.16} parent=76 // pred_check
                _
              $region90: #{hawk_forward.16} parent=76 // pred_check_branch
                %345 = sbr.rel (0) target = $region92
              $region91: #{hawk_forward.16} parent=76 // pred_region
                loop: start=0, step=1, limit=1
                $region93: #{hawk_forward.16} parent=91 // loop_pre_header
                  _
                $region94: #{hawk_forward.16} parent=91 // loop_header
                  %s347 = sphi 0, %s351
                  %p348 = scmp.ge.s32.totalorder %s347, 1
                  %s352 = sphi %s296, %s296
                  %s353 = sphi %s294, %s294
                $region95: #{hawk_forward.16} parent=91 // loop_header_branch
                  %350 = sbr.rel (%p348) target = $region99
                $region96: #{hawk_forward.16} parent=91 // loop_body
                  _
                $region97: #{hawk_forward.16} parent=91 // loop_footer
                  %s351 = sadd.s32 1, %s347
                $region98: #{hawk_forward.16} parent=91 // loop_footer_branch
                  %346 = sbr.rel target = $region94
                $region99: #{hawk_forward.16} parent=91 // loop_exit
                  _
                loop: start=0, step=1, limit=1
                $region100: #{hawk_forward.16} parent=91 // loop_pre_header
                  _
                $region101: #{hawk_forward.16} parent=91 // loop_header
                  %s356 = sphi 0, %s360
                  %p357 = scmp.ge.s32.totalorder %s356, 1
                  %s361 = sphi %s296, %s296
                  %s362 = sphi %s294, %s294
                $region102: #{hawk_forward.16} parent=91 // loop_header_branch
                  %359 = sbr.rel (%p357) target = $region106
                $region103: #{hawk_forward.16} parent=91 // loop_body
                  %v363 = vld [vmem:[%s361] sm:$0xf]
                  %364 = vst [vmem:[%s362] sm:$0xf] %v363
                  %v365 = vld [vmem:[%s361 + $0xc] sm:$0xf]
                  %366 = vst [vmem:[%s362 + $0x4] sm:$0xf] %v365
                  %v367 = vld [vmem:[%s361 + $0x18] sm:$0xf]
                  %368 = vst [vmem:[%s362 + $0x8] sm:$0xf] %v367
                  %v369 = vld [vmem:[%s361 + $0x24] sm:$0xf]
                  %370 = vst [vmem:[%s362 + $0xc] sm:$0xf] %v369
                  %v371 = vld [vmem:[%s361 + $0x30] sm:$0xf]
                  %372 = vst [vmem:[%s362 + $0x10] sm:$0xf] %v371
                  %v373 = vld [vmem:[%s361 + $0x3c] sm:$0xf]
                  %374 = vst [vmem:[%s362 + $0x14] sm:$0xf] %v373
                  %v375 = vld [vmem:[%s361 + $0x48] sm:$0xf]
                  %376 = vst [vmem:[%s362 + $0x18] sm:$0xf] %v375
                  %v377 = vld [vmem:[%s361 + $0x54] sm:$0xf]
                  %378 = vst [vmem:[%s362 + $0x1c] sm:$0xf] %v377
                  %v379 = vld [vmem:[%s361 + $0x60] sm:$0xf]
                  %380 = vst [vmem:[%s362 + $0x20] sm:$0xf] %v379
                  %v381 = vld [vmem:[%s361 + $0x6c] sm:$0xf]
                  %382 = vst [vmem:[%s362 + $0x24] sm:$0xf] %v381
                  %v383 = vld [vmem:[%s361 + $0x78] sm:$0xf]
                  %384 = vst [vmem:[%s362 + $0x28] sm:$0xf] %v383
                  %v385 = vld [vmem:[%s361 + $0x84] sm:$0xf]
                  %386 = vst [vmem:[%s362 + $0x2c] sm:$0xf] %v385
                  %v387 = vld [vmem:[%s361 + $0x90] sm:$0xf]
                  %388 = vst [vmem:[%s362 + $0x30] sm:$0xf] %v387
                  %v389 = vld [vmem:[%s361 + $0x9c] sm:$0xf]
                  %390 = vst [vmem:[%s362 + $0x34] sm:$0xf] %v389
                  %v391 = vld [vmem:[%s361 + $0xa8] sm:$0xf]
                  %392 = vst [vmem:[%s362 + $0x38] sm:$0xf] %v391
                  %v393 = vld [vmem:[%s361 + $0xb4] sm:$0xf]
                  %394 = vst [vmem:[%s362 + $0x3c] sm:$0xf] %v393
                $region104: #{hawk_forward.16} parent=91 // loop_footer
                  %s360 = sadd.s32 1, %s356
                $region105: #{hawk_forward.16} parent=91 // loop_footer_branch
                  %355 = sbr.rel target = $region101
                $region106: #{hawk_forward.16} parent=91 // loop_exit
                  _
              $region92: #{hawk_forward.16} parent=76 // pred_fallthru
                _
            $region77: #{hawk_forward.16} parent=72 // pred_fallthru
              _
            // Predicated region
            $region78: #{hawk_forward.16} parent=72 // pred_check
              _
            $region79: #{hawk_forward.16} parent=72 // pred_check_branch
              %302 = sbr.rel (0) target = $region81
            $region80: #{hawk_forward.16} parent=72 // pred_region
              loop: start=0, step=1, limit=1
              $region82: #{hawk_forward.16} parent=80 // loop_pre_header
                _
              $region83: #{hawk_forward.16} parent=80 // loop_header
                %s305 = sphi 0, %s309
                %p306 = scmp.ge.s32.totalorder %s305, 1
                %s310 = sphi %s296, %s296
                %s311 = sphi %s294, %s294
              $region84: #{hawk_forward.16} parent=80 // loop_header_branch
                %308 = sbr.rel (%p306) target = $region88
              $region85: #{hawk_forward.16} parent=80 // loop_body
                %v312 = vld [vmem:[%s310] sm:$0xf]
                %313 = vst [vmem:[%s311] sm:$0xf] %v312
                %v314 = vld [vmem:[%s310 + $0xc] sm:$0xf]
                %315 = vst [vmem:[%s311 + $0x4] sm:$0xf] %v314
                %v316 = vld [vmem:[%s310 + $0x18] sm:$0xf]
                %317 = vst [vmem:[%s311 + $0x8] sm:$0xf] %v316
                %v318 = vld [vmem:[%s310 + $0x24] sm:$0xf]
                %319 = vst [vmem:[%s311 + $0xc] sm:$0xf] %v318
                %v320 = vld [vmem:[%s310 + $0x30] sm:$0xf]
                %321 = vst [vmem:[%s311 + $0x10] sm:$0xf] %v320
                %v322 = vld [vmem:[%s310 + $0x3c] sm:$0xf]
                %323 = vst [vmem:[%s311 + $0x14] sm:$0xf] %v322
                %v324 = vld [vmem:[%s310 + $0x48] sm:$0xf]
                %325 = vst [vmem:[%s311 + $0x18] sm:$0xf] %v324
                %v326 = vld [vmem:[%s310 + $0x54] sm:$0xf]
                %327 = vst [vmem:[%s311 + $0x1c] sm:$0xf] %v326
                %v328 = vld [vmem:[%s310 + $0x60] sm:$0xf]
                %329 = vst [vmem:[%s311 + $0x20] sm:$0xf] %v328
                %v330 = vld [vmem:[%s310 + $0x6c] sm:$0xf]
                %331 = vst [vmem:[%s311 + $0x24] sm:$0xf] %v330
                %v332 = vld [vmem:[%s310 + $0x78] sm:$0xf]
                %333 = vst [vmem:[%s311 + $0x28] sm:$0xf] %v332
                %v334 = vld [vmem:[%s310 + $0x84] sm:$0xf]
                %335 = vst [vmem:[%s311 + $0x2c] sm:$0xf] %v334
                %v336 = vld [vmem:[%s310 + $0x90] sm:$0xf]
                %337 = vst [vmem:[%s311 + $0x30] sm:$0xf] %v336
                %v338 = vld [vmem:[%s310 + $0x9c] sm:$0xf]
                %339 = vst [vmem:[%s311 + $0x34] sm:$0xf] %v338
                %v340 = vld [vmem:[%s310 + $0xa8] sm:$0xf]
                %341 = vst [vmem:[%s311 + $0x38] sm:$0xf] %v340
                %v342 = vld [vmem:[%s310 + $0xb4] sm:$0xf]
                %343 = vst [vmem:[%s311 + $0x3c] sm:$0xf] %v342
              $region86: #{hawk_forward.16} parent=80 // loop_footer
                %s309 = sadd.s32 1, %s305
              $region87: #{hawk_forward.16} parent=80 // loop_footer_branch
                %304 = sbr.rel target = $region83
              $region88: #{hawk_forward.16} parent=80 // loop_exit
                _
            $region81: #{hawk_forward.16} parent=72 // pred_fallthru
              _
          $region73: #{hawk_forward.16} parent=68 // pred_fallthru
            _
          %395 = vnop
        $region69: #{hawk_forward.16} parent=23 // pred_fallthru
          _
      $region24: #{hawk_forward.16} parent=5 // pred_fallthru
        _
      %p396 = scmp.le.s32.totalorder 1, %s10
      %p397 = scmp.lt.s32.totalorder %s10, 4
      %p398 = pnand %p396, %p397
      %p399 = pneg %p398
      // Predicated region
      $region107: #{hawk_forward.16} parent=5 // pred_check
        _
      $region108: #{hawk_forward.16} parent=5 // pred_check_branch
        %401 = sbr.rel (%p398) target = $region110
      $region109: #{hawk_forward.16} parent=5 // pred_region
        %s402 = ssub.s32 %s10, 1
        %s403 = sand.u32 %s82, 1
        %s404 = sand.u32 %s82, 1
        %s405 = smul.addr %s404, 64
        %s406 = scalar_lea.vmem [#allocation2], %s405
        // Predicated region
        $region111: #{hawk_forward.16} parent=109 // pred_check
          %p407 = pneg %p95
        $region112: #{hawk_forward.16} parent=109 // pred_check_branch
          %409 = sbr.rel (%p407) target = $region114
        $region113: #{hawk_forward.16} parent=109 // pred_region
          _
        $region114: #{hawk_forward.16} parent=109 // pred_fallthru
          _
        %s410 = sand.u32 %s108, 1
        %s411 = sand.u32 %s108, 1
        %s412 = smul.addr %s411, 64
        %s413 = scalar_lea.vmem [#allocation3], %s412
        // Predicated region
        $region115: #{hawk_forward.16} parent=109 // pred_check
          %p414 = pneg %p121
        $region116: #{hawk_forward.16} parent=109 // pred_check_branch
          %416 = sbr.rel (%p414) target = $region118
        $region117: #{hawk_forward.16} parent=109 // pred_region
          _
        $region118: #{hawk_forward.16} parent=109 // pred_fallthru
          _
        %s417 = smul.u32 2, %s19
        %p418 = scmp.lt.s32.totalorder %s417, 1
        %s419 = scalar_select %p418, %s417, 1
        %s420 = smul.addr %s419, 8
        %s421 = scalar_lea.vmem %s0, %s420
        %p422 = pneg %p48
        %p423 = pneg %p45
        %p424 = pneg %p69
        %p425 = pneg %p66
        %s426 = sand.u32 %s82, 1
        %s427 = sand.u32 %s82, 1
        %s428 = smul.addr %s427, 64
        %s429 = scalar_lea.vmem [#allocation2], %s428
        %p430 = pneg %p95
        %p431 = pneg %p92
        %s432 = sand.u32 %s108, 1
        %s433 = sand.u32 %s108, 1
        %s434 = smul.addr %s433, 64
        %s435 = scalar_lea.vmem [#allocation3], %s434
        %p436 = pneg %p121
        %p437 = pneg %p118
        %p438 = pneg %p149
        %p439 = pneg %p146
        %s440 = sand.u32 %s136, 1
        %s441 = sand.u32 %s136, 1
        %s442 = smul.addr %s441, 16
        %s443 = scalar_lea.vmem [#allocation4], %s442
        %s444 = smul.u32 2, %s19
        %p445 = scmp.lt.s32.totalorder %s444, 1
        %s446 = scalar_select %p445, %s444, 1
        %s447 = smul.addr %s446, 8
        %s448 = scalar_lea.vmem %s0, %s447
        %s449 = smul.u32 2, %s19
        %s450 = smul.u32 2, %s19
        %v452 = vld [vmem:[%s448] sm:$0xff]
        %v453 = vld [vmem:[%s448 + $0x8] sm:$0xff]
        %v454 = vmul.f32 %v452, %v452
        %v455 = vmul.f32 %v453, %v453
        %456 = vadd.xlane.f32.xlu0 %v454
        %v457 = vpop.xlane.xlu0 %456
        %458 = vadd.xlane.f32.xlu0 %v455
        %v459 = vpop.xlane.xlu0 %458
        %v460 = vrcp.pop 128.0
        %v461 = vmul.f32 %v457, %v460
        %v462 = vmul.f32 %v459, %v460
        %v463 = vadd.f32 %v461, 1e-05
        %v464 = vadd.f32 %v462, 1e-05
        %v465 = vrsqrt.pop %v463
        %v466 = vrsqrt.pop %v464
        %v467 = vmul.f32 %v452, %v465
        %v468 = vmul.f32 %v453, %v466
        %v469 = vld [vmem:[%s1] sm:$0x1]
        %v471 = vlaneseq
        %v472 = vshrl.u32 %v471, 7
        %v473 = vsub.s32 0, %v472
        %v474 = vrot.slane %v469, %v473
        %v476 = vmul.f32 %v467, %v474
        %v477 = vmul.f32 %v468, %v474
        %v478 = vpack.c.bf16 %v477, %v476
        %v479 = vld [vmem:[%s406] sm:$0xf]
        %v480 = vld [vmem:[%s406 + $0x4] sm:$0xf]
        %v481 = vld [vmem:[%s406 + $0x8] sm:$0xf]
        %v482 = vld [vmem:[%s406 + $0xc] sm:$0xf]
        %v483 = vld [vmem:[%s406 + $0x10] sm:$0xf]
        %v484 = vld [vmem:[%s406 + $0x14] sm:$0xf]
        %v485 = vld [vmem:[%s406 + $0x18] sm:$0xf]
        %v486 = vld [vmem:[%s406 + $0x1c] sm:$0xf]
        %v487 = vld [vmem:[%s406 + $0x20] sm:$0xf]
        %v488 = vld [vmem:[%s406 + $0x24] sm:$0xf]
        %v489 = vld [vmem:[%s406 + $0x28] sm:$0xf]
        %v490 = vld [vmem:[%s406 + $0x2c] sm:$0xf]
        %v491 = vld [vmem:[%s406 + $0x30] sm:$0xf]
        %v492 = vld [vmem:[%s406 + $0x34] sm:$0xf]
        %v493 = vld [vmem:[%s406 + $0x38] sm:$0xf]
        %v494 = vld [vmem:[%s406 + $0x3c] sm:$0xf]
        %v511 = vunpack.c.l.b16 %v479
        %v512 = vunpack.c.l.b16 %v480
        %v513 = vunpack.c.l.b16 %v481
        %v514 = vunpack.c.l.b16 %v482
        %v515 = vunpack.c.l.b16 %v483
        %v516 = vunpack.c.l.b16 %v484
        %v517 = vunpack.c.l.b16 %v485
        %v518 = vunpack.c.l.b16 %v486
        %v519 = vunpack.c.l.b16 %v487
        %v520 = vunpack.c.l.b16 %v488
        %v521 = vunpack.c.l.b16 %v489
        %v522 = vunpack.c.l.b16 %v490
        %v523 = vunpack.c.l.b16 %v491
        %v524 = vunpack.c.l.b16 %v492
        %v525 = vunpack.c.l.b16 %v493
        %v526 = vunpack.c.l.b16 %v494
        %v527 = vpack.c.b16 %v512, %v511
        %v528 = vpack.c.b16 %v514, %v513
        %v529 = vpack.c.b16 %v516, %v515
        %v530 = vpack.c.b16 %v518, %v517
        %v531 = vpack.c.b16 %v520, %v519
        %v532 = vpack.c.b16 %v522, %v521
        %v533 = vpack.c.b16 %v524, %v523
        %v534 = vpack.c.b16 %v526, %v525
        %543 = vmatprep.subr.bf16.mxu0 0
        %544 = vmatpush1.bf16.msra.mxu0 %v527
        %545 = vmatprep.subr.bf16.mxu0 0
        %546 = vmatpush1.bf16.msra.mxu0 %v528
        %547 = vmatprep.subr.bf16.mxu0 0
        %548 = vmatpush1.bf16.msra.mxu0 %v529
        %549 = vmatprep.subr.bf16.mxu0 0
        %550 = vmatpush1.bf16.msra.mxu0 %v530
        %551 = vmatprep.subr.bf16.mxu0 0
        %552 = vmatpush1.bf16.msra.mxu0 %v531
        %553 = vmatprep.subr.bf16.mxu0 0
        %554 = vmatpush1.bf16.msra.mxu0 %v532
        %555 = vmatprep.subr.bf16.mxu0 0
        %556 = vmatpush1.bf16.msra.mxu0 %v533
        %557 = vmatprep.subr.bf16.mxu0 0
        %558 = vmatpush1.bf16.msra.mxu0 %v534
        %559 = vmatprep.subr.bf16.mxu0 0
        %560 = vmatpush1.bf16.msra.mxu0 0
        %561 = vmatprep.subr.bf16.mxu0 0
        %562 = vmatpush1.bf16.msra.mxu0 0
        %563 = vmatprep.subr.bf16.mxu0 0
        %564 = vmatpush1.bf16.msra.mxu0 0
        %565 = vmatprep.subr.bf16.mxu0 0
        %566 = vmatpush1.bf16.msra.mxu0 0
        %567 = vmatprep.subr.bf16.mxu0 0
        %568 = vmatpush1.bf16.msra.mxu0 0
        %569 = vmatprep.subr.bf16.mxu0 0
        %570 = vmatpush1.bf16.msra.mxu0 0
        %571 = vmatprep.subr.bf16.mxu0 0
        %572 = vmatpush1.bf16.msra.mxu0 0
        %573 = vmatprep.subr.bf16.mxu0 0
        %574 = vmatpush1.bf16.msra.mxu0 0
        %575 = vmatprep.mubr.bf16.mxu0 0
        %576 = vmatmul.mubr.bf16.gmra.mrb[0].mxu0 %v478
        %v577 = vpop.f32.mrb[0].mxu0
        %v578 = vadd.f32 0.0, %v577
        %v579 = vpop.f32.mrb[0].mxu0
        %v580 = vpop.f32.mrb[0].mxu0
        %v581 = vadd.f32 0.0, %v580
        %v582 = vpop.f32.mrb[0].mxu0
        %583 = vdwg.mxu0
        %v584 = vld [vmem:[%s413] sm:$0xf]
        %v585 = vld [vmem:[%s413 + $0x4] sm:$0xf]
        %v586 = vld [vmem:[%s413 + $0x8] sm:$0xf]
        %v587 = vld [vmem:[%s413 + $0xc] sm:$0xf]
        %v588 = vld [vmem:[%s413 + $0x10] sm:$0xf]
        %v589 = vld [vmem:[%s413 + $0x14] sm:$0xf]
        %v590 = vld [vmem:[%s413 + $0x18] sm:$0xf]
        %v591 = vld [vmem:[%s413 + $0x1c] sm:$0xf]
        %v592 = vld [vmem:[%s413 + $0x20] sm:$0xf]
        %v593 = vld [vmem:[%s413 + $0x24] sm:$0xf]
        %v594 = vld [vmem:[%s413 + $0x28] sm:$0xf]
        %v595 = vld [vmem:[%s413 + $0x2c] sm:$0xf]
        %v596 = vld [vmem:[%s413 + $0x30] sm:$0xf]
        %v597 = vld [vmem:[%s413 + $0x34] sm:$0xf]
        %v598 = vld [vmem:[%s413 + $0x38] sm:$0xf]
        %v599 = vld [vmem:[%s413 + $0x3c] sm:$0xf]
        %v616 = vunpack.c.l.b16 %v584
        %v617 = vunpack.c.l.b16 %v585
        %v618 = vunpack.c.l.b16 %v586
        %v619 = vunpack.c.l.b16 %v587
        %v620 = vunpack.c.l.b16 %v588
        %v621 = vunpack.c.l.b16 %v589
        %v622 = vunpack.c.l.b16 %v590
        %v623 = vunpack.c.l.b16 %v591
        %v624 = vunpack.c.l.b16 %v592
        %v625 = vunpack.c.l.b16 %v593
        %v626 = vunpack.c.l.b16 %v594
        %v627 = vunpack.c.l.b16 %v595
        %v628 = vunpack.c.l.b16 %v596
        %v629 = vunpack.c.l.b16 %v597
        %v630 = vunpack.c.l.b16 %v598
        %v631 = vunpack.c.l.b16 %v599
        %v632 = vpack.c.b16 %v617, %v616
        %v633 = vpack.c.b16 %v619, %v618
        %v634 = vpack.c.b16 %v621, %v620
        %v635 = vpack.c.b16 %v623, %v622
        %v636 = vpack.c.b16 %v625, %v624
        %v637 = vpack.c.b16 %v627, %v626
        %v638 = vpack.c.b16 %v629, %v628
        %v639 = vpack.c.b16 %v631, %v630
        %648 = vmatprep.subr.bf16.mxu0 0
        %649 = vmatpush1.bf16.msra.mxu0 %v632
        %650 = vmatprep.subr.bf16.mxu0 0
        %651 = vmatpush1.bf16.msra.mxu0 %v633
        %652 = vmatprep.subr.bf16.mxu0 0
        %653 = vmatpush1.bf16.msra.mxu0 %v634
        %654 = vmatprep.subr.bf16.mxu0 0
        %655 = vmatpush1.bf16.msra.mxu0 %v635
        %656 = vmatprep.subr.bf16.mxu0 0
        %657 = vmatpush1.bf16.msra.mxu0 %v636
        %658 = vmatprep.subr.bf16.mxu0 0
        %659 = vmatpush1.bf16.msra.mxu0 %v637
        %660 = vmatprep.subr.bf16.mxu0 0
        %661 = vmatpush1.bf16.msra.mxu0 %v638
        %662 = vmatprep.subr.bf16.mxu0 0
        %663 = vmatpush1.bf16.msra.mxu0 %v639
        %664 = vmatprep.subr.bf16.mxu0 0
        %665 = vmatpush1.bf16.msra.mxu0 0
        %666 = vmatprep.subr.bf16.mxu0 0
        %667 = vmatpush1.bf16.msra.mxu0 0
        %668 = vmatprep.subr.bf16.mxu0 0
        %669 = vmatpush1.bf16.msra.mxu0 0
        %670 = vmatprep.subr.bf16.mxu0 0
        %671 = vmatpush1.bf16.msra.mxu0 0
        %672 = vmatprep.subr.bf16.mxu0 0
        %673 = vmatpush1.bf16.msra.mxu0 0
        %674 = vmatprep.subr.bf16.mxu0 0
        %675 = vmatpush1.bf16.msra.mxu0 0
        %676 = vmatprep.subr.bf16.mxu0 0
        %677 = vmatpush1.bf16.msra.mxu0 0
        %678 = vmatprep.subr.bf16.mxu0 0
        %679 = vmatpush1.bf16.msra.mxu0 0
        %680 = vmatprep.mubr.bf16.mxu0 0
        %681 = vmatmul.mubr.bf16.gmra.mrb[0].mxu0 %v478
        %v682 = vpop.f32.mrb[0].mxu0
        %v683 = vadd.f32 0.0, %v682
        %v684 = vpop.f32.mrb[0].mxu0
        %v685 = vpop.f32.mrb[0].mxu0
        %v686 = vadd.f32 0.0, %v685
        %v687 = vpop.f32.mrb[0].mxu0
        %688 = vdwg.mxu0
        %v689 = vxor.u32 %v578, 2147483648
        %v690 = vxor.u32 %v581, 2147483648
        %v691 = vmul.f32 %v689, 1.442695
        %v692 = vpow.pop %v691
        %v693 = vmul.f32 %v690, 1.442695
        %v694 = vpow.pop %v693
        %v695 = vadd.f32 %v692, 1.0
        %v696 = vadd.f32 %v694, 1.0
        %v697 = vrcp.pop %v695
        %v698 = vmul.f32 1.0, %v697
        %v699 = vrcp.pop %v696
        %v700 = vmul.f32 1.0, %v699
        %v701 = vmul.f32 %v578, %v698
        %v702 = vmul.f32 %v581, %v700
        %v703 = vmul.f32 %v701, %v683
        %v704 = vmul.f32 %v702, %v686
        %705 = vst [vmem:[%s443] sm:$0xff] %v703
        %706 = vst [vmem:[%s443 + $0x8] sm:$0xff] %v704
        %s707 = sand.u32 %s136, 1
        %s708 = sand.u32 %s136, 1
        %s709 = smul.addr %s708, 16
        %s710 = scalar_lea.vmem [#allocation4], %s709
        // Predicated region
        $region119: #{hawk_forward.16} parent=109 // pred_check
          %p711 = pneg %p146
        $region120: #{hawk_forward.16} parent=109 // pred_check_branch
          %713 = sbr.rel (%p711) target = $region122
        $region121: #{hawk_forward.16} parent=109 // pred_region
          %s714 = smul.u32 2, %s19
          %s715 = smul.addr %s714, 3
          %s716 = sadd.s32 %s20, %s715
          %s717 = smul.addr %s716, 8
          %s718 = scalar_lea.vmem %s4, %s717
          // Predicated region
          $region123: #{hawk_forward.16} parent=121 // pred_check
            _
          $region124: #{hawk_forward.16} parent=121 // pred_check_branch
            %720 = sbr.rel (0) target = $region126
          $region125: #{hawk_forward.16} parent=121 // pred_region
            // Predicated region
            $region127: #{hawk_forward.16} parent=125 // pred_check
              _
            $region128: #{hawk_forward.16} parent=125 // pred_check_branch
              %722 = sbr.rel (0) target = $region130
            $region129: #{hawk_forward.16} parent=125 // pred_region
              // Predicated region
              $region142: #{hawk_forward.16} parent=129 // pred_check
                _
              $region143: #{hawk_forward.16} parent=129 // pred_check_branch
                %739 = sbr.rel (0) target = $region145
              $region144: #{hawk_forward.16} parent=129 // pred_region
                loop: start=0, step=1, limit=1
                $region146: #{hawk_forward.16} parent=144 // loop_pre_header
                  _
                $region147: #{hawk_forward.16} parent=144 // loop_header
                  %s741 = sphi 0, %s745
                  %p742 = scmp.ge.s32.totalorder %s741, 1
                  %s746 = sphi %s710, %s710
                  %s747 = sphi %s718, %s718
                $region148: #{hawk_forward.16} parent=144 // loop_header_branch
                  %744 = sbr.rel (%p742) target = $region152
                $region149: #{hawk_forward.16} parent=144 // loop_body
                  %v748 = vld [vmem:[%s746] sm:$0xff]
                  %749 = vst [vmem:[%s747] sm:$0xff] %v748
                  %v750 = vld [vmem:[%s746 + $0x8] sm:$0xff]
                  %751 = vst [vmem:[%s747 + $0x18] sm:$0xff] %v750
                $region150: #{hawk_forward.16} parent=144 // loop_footer
                  %s745 = sadd.s32 1, %s741
                $region151: #{hawk_forward.16} parent=144 // loop_footer_branch
                  %740 = sbr.rel target = $region147
                $region152: #{hawk_forward.16} parent=144 // loop_exit
                  _
              $region145: #{hawk_forward.16} parent=129 // pred_fallthru
                _
              // Predicated region
              $region153: #{hawk_forward.16} parent=129 // pred_check
                _
              $region154: #{hawk_forward.16} parent=129 // pred_check_branch
                %753 = sbr.rel target = $region156
              $region155: #{hawk_forward.16} parent=129 // pred_region
                _
              $region156: #{hawk_forward.16} parent=129 // pred_fallthru
                _
            $region130: #{hawk_forward.16} parent=125 // pred_fallthru
              _
            // Predicated region
            $region131: #{hawk_forward.16} parent=125 // pred_check
              _
            $region132: #{hawk_forward.16} parent=125 // pred_check_branch
              %724 = sbr.rel target = $region134
            $region133: #{hawk_forward.16} parent=125 // pred_region
              loop: start=0, step=1, limit=1
              $region135: #{hawk_forward.16} parent=133 // loop_pre_header
                _
              $region136: #{hawk_forward.16} parent=133 // loop_header
                %s727 = sphi 0, %s731
                %p728 = scmp.ge.s32.totalorder %s727, 1
                %s732 = sphi %s710, %s710
                %s733 = sphi %s718, %s718
              $region137: #{hawk_forward.16} parent=133 // loop_header_branch
                %730 = sbr.rel (%p728) target = $region141
              $region138: #{hawk_forward.16} parent=133 // loop_body
                %v734 = vld [vmem:[%s732] sm:$0xff]
                %735 = vst [vmem:[%s733] sm:$0xff] %v734
                %v736 = vld [vmem:[%s732 + $0x8] sm:$0xff]
                %737 = vst [vmem:[%s733 + $0x18] sm:$0xff] %v736
              $region139: #{hawk_forward.16} parent=133 // loop_footer
                %s731 = sadd.s32 1, %s727
              $region140: #{hawk_forward.16} parent=133 // loop_footer_branch
                %726 = sbr.rel target = $region136
              $region141: #{hawk_forward.16} parent=133 // loop_exit
                _
            $region134: #{hawk_forward.16} parent=125 // pred_fallthru
              _
          $region126: #{hawk_forward.16} parent=121 // pred_fallthru
            _
          %754 = vnop
        $region122: #{hawk_forward.16} parent=109 // pred_fallthru
          _
      $region110: #{hawk_forward.16} parent=5 // pred_fallthru
        _
      %p755 = scmp.le.s32.totalorder 2, %s10
      // Predicated region
      $region157: #{hawk_forward.16} parent=5 // pred_check
        %p756 = pneg %p755
      $region158: #{hawk_forward.16} parent=5 // pred_check_branch
        %758 = sbr.rel (%p756) target = $region160
      $region159: #{hawk_forward.16} parent=5 // pred_region
        %s759 = ssub.s32 %s10, 2
        // Predicated region
        $region161: #{hawk_forward.16} parent=159 // pred_check
          %p760 = pneg %p152
        $region162: #{hawk_forward.16} parent=159 // pred_check_branch
          %762 = sbr.rel (%p760) target = $region164
        $region163: #{hawk_forward.16} parent=159 // pred_region
          %s763 = sand.u32 %s137, 1
          %s764 = sand.u32 %s137, 1
          %s765 = smul.addr %s764, 16
          %s766 = scalar_lea.vmem [#allocation4], %s765
        $region164: #{hawk_forward.16} parent=159 // pred_fallthru
          _
      $region160: #{hawk_forward.16} parent=5 // pred_fallthru
        _
    $region6: #{hawk_forward.16} parent=1 // loop_footer
      %s14 = sadd.s32 1, %s10
    $region7: #{hawk_forward.16} parent=1 // loop_footer_branch
      %9 = sbr.rel target = $region3
    $region8: #{hawk_forward.16} parent=1 // loop_exit
      _

// kernel: hawk_forward.18
$region0: #{hawk_forward.18}
  #allocation0 [shape = 'u32[]', space=smem, size = 0x4, offset = 0x4, fixed_abs, tag = 'smem constant byte address 0x4 - core index']
  #allocation1 [shape = 'u32[144,128]{1,0:T(1,128)}', space=vmem, size = 0x12000, scoped, tag = 'internal scratch']
  %s0 = inlined_call_operand.vmem [shape: f32[16,128], index: 0, kind: input, shape index: {}]
  %s1 = inlined_call_operand.vmem [shape: f32[1,128], index: 1, kind: input, shape index: {}]
  %s2 = inlined_call_operand.vmem [shape: bf16[128,256], index: 2, kind: input, shape index: {}]
  %s3 = inlined_call_operand.vmem [shape: bf16[128,256], index: 3, kind: input, shape index: {}]
  %s4 = inlined_call_operand.vmem [shape: f32[16,256], index: 4, kind: output, shape index: {0}]
  %s5 = inlined_call_operand.vmem [shape: f32[16,256], index: 5, kind: output, shape index: {1}]
  %s6 = inlined_call_operand.vmem [shape: f32[16,128], index: 6, kind: output, shape index: {2}]
  %7 = xla_tuple %s4, %s5, %s6
  %s8 = sld [smem:[#allocation0]]
  $region46: #{hawk_forward.18} parent=0
    _
  %s10 = ssub.s32 1, %s8
  %s11 = scalar_select 0, %s10, %s8
  // Predicated region
  $region2: #{hawk_forward.18} parent=0 // pred_check
    _
  $region3: #{hawk_forward.18} parent=0 // pred_check_branch
    %13 = sbr.rel (0) target = $region5
  $region4: #{hawk_forward.18} parent=0 // pred_region
    _
  $region5: #{hawk_forward.18} parent=0 // pred_fallthru
    _
  // Predicated region
  $region6: #{hawk_forward.18} parent=0 // pred_check
    _
  $region7: #{hawk_forward.18} parent=0 // pred_check_branch
    %15 = sbr.rel (0) target = $region9
  $region8: #{hawk_forward.18} parent=0 // pred_region
    _
  $region9: #{hawk_forward.18} parent=0 // pred_fallthru
    _
  // Predicated region
  $region10: #{hawk_forward.18} parent=0 // pred_check
    _
  $region11: #{hawk_forward.18} parent=0 // pred_check_branch
    %17 = sbr.rel (0) target = $region13
  $region12: #{hawk_forward.18} parent=0 // pred_region
    _
  $region13: #{hawk_forward.18} parent=0 // pred_fallthru
    _
  // Predicated region
  $region14: #{hawk_forward.18} parent=0 // pred_check
    _
  $region15: #{hawk_forward.18} parent=0 // pred_check_branch
    %19 = sbr.rel (0) target = $region17
  $region16: #{hawk_forward.18} parent=0 // pred_region
    _
  $region17: #{hawk_forward.18} parent=0 // pred_fallthru
    _
  %v21 = vld [vmem:[%s0] sm:$0xff]
  %v22 = vld [vmem:[%s0 + $0x8] sm:$0xff]
  %v23 = vmul.f32 %v21, %v21
  %v24 = vmul.f32 %v22, %v22
  %25 = vadd.xlane.f32.xlu0 %v23
  %v26 = vpop.xlane.xlu0 %25
  %27 = vadd.xlane.f32.xlu0 %v24
  %v28 = vpop.xlane.xlu0 %27
  %v29 = vrcp.pop 128.0
  %v30 = vmul.f32 %v26, %v29
  %v31 = vmul.f32 %v28, %v29
  %v32 = vadd.f32 %v30, 1e-05
  %v33 = vadd.f32 %v31, 1e-05
  %v34 = vrsqrt.pop %v32
  %v35 = vrsqrt.pop %v33
  %v36 = vmul.f32 %v21, %v34
  %v37 = vmul.f32 %v22, %v35
  %v38 = vld [vmem:[%s1] sm:$0x1]
  %v40 = vlaneseq
  %v41 = vshrl.u32 %v40, 7
  %v42 = vsub.s32 0, %v41
  %v43 = vrot.slane %v38, %v42
  %v45 = vmul.f32 %v36, %v43
  %v46 = vmul.f32 %v37, %v43
  %p47 = scmp.eq.s32.totalorder 0, 0
  // Predicated region
  $region18: #{hawk_forward.18} parent=0 // pred_check
    %p48 = pneg %p47
  $region19: #{hawk_forward.18} parent=0 // pred_check_branch
    %50 = sbr.rel (%p48) target = $region21
  $region20: #{hawk_forward.18} parent=0 // pred_region
    %51 = vst [vmem:[%s6] sm:$0xff] %v45
    %52 = vst [vmem:[%s6 + $0x8] sm:$0xff] %v46
  $region21: #{hawk_forward.18} parent=0 // pred_fallthru
    _
  %v53 = vpack.c.bf16 %v46, %v45
  %v54 = vld [vmem:[%s2] sm:$0xff]
  %v55 = vld [vmem:[%s2 + $0x8] sm:$0xff]
  %v56 = vld [vmem:[%s2 + $0x10] sm:$0xff]
  %v57 = vld [vmem:[%s2 + $0x18] sm:$0xff]
  %v58 = vld [vmem:[%s2 + $0x20] sm:$0xff]
  %v59 = vld [vmem:[%s2 + $0x28] sm:$0xff]
  %v60 = vld [vmem:[%s2 + $0x30] sm:$0xff]
  %v61 = vld [vmem:[%s2 + $0x38] sm:$0xff]
  %v62 = vld [vmem:[%s2 + $0x40] sm:$0xff]
  %v63 = vld [vmem:[%s2 + $0x48] sm:$0xff]
  %v64 = vld [vmem:[%s2 + $0x50] sm:$0xff]
  %v65 = vld [vmem:[%s2 + $0x58] sm:$0xff]
  %v66 = vld [vmem:[%s2 + $0x60] sm:$0xff]
  %v67 = vld [vmem:[%s2 + $0x68] sm:$0xff]
  %v68 = vld [vmem:[%s2 + $0x70] sm:$0xff]
  %v69 = vld [vmem:[%s2 + $0x78] sm:$0xff]
  %v86 = vunpack.c.l.b16 %v54
  %v87 = vunpack.c.h.b16 %v54
  %v88 = vunpack.c.l.b16 %v55
  %v89 = vunpack.c.h.b16 %v55
  %v90 = vunpack.c.l.b16 %v56
  %v91 = vunpack.c.h.b16 %v56
  %v92 = vunpack.c.l.b16 %v57
  %v93 = vunpack.c.h.b16 %v57
  %v94 = vunpack.c.l.b16 %v58
  %v95 = vunpack.c.h.b16 %v58
  %v96 = vunpack.c.l.b16 %v59
  %v97 = vunpack.c.h.b16 %v59
  %v98 = vunpack.c.l.b16 %v60
  %v99 = vunpack.c.h.b16 %v60
  %v100 = vunpack.c.l.b16 %v61
  %v101 = vunpack.c.h.b16 %v61
  %v102 = vunpack.c.l.b16 %v62
  %v103 = vunpack.c.h.b16 %v62
  %v104 = vunpack.c.l.b16 %v63
  %v105 = vunpack.c.h.b16 %v63
  %v106 = vunpack.c.l.b16 %v64
  %v107 = vunpack.c.h.b16 %v64
  %v108 = vunpack.c.l.b16 %v65
  %v109 = vunpack.c.h.b16 %v65
  %v110 = vunpack.c.l.b16 %v66
  %v111 = vunpack.c.h.b16 %v66
  %v112 = vunpack.c.l.b16 %v67
  %v113 = vunpack.c.h.b16 %v67
  %v114 = vunpack.c.l.b16 %v68
  %v115 = vunpack.c.h.b16 %v68
  %v116 = vunpack.c.l.b16 %v69
  %v117 = vunpack.c.h.b16 %v69
  %v118 = vpack.c.b16 %v88, %v86
  %v119 = vpack.c.b16 %v89, %v87
  %v120 = vpack.c.b16 %v92, %v90
  %v121 = vpack.c.b16 %v93, %v91
  %v122 = vpack.c.b16 %v96, %v94
  %v123 = vpack.c.b16 %v97, %v95
  %v124 = vpack.c.b16 %v100, %v98
  %v125 = vpack.c.b16 %v101, %v99
  %v126 = vpack.c.b16 %v104, %v102
  %v127 = vpack.c.b16 %v105, %v103
  %v128 = vpack.c.b16 %v108, %v106
  %v129 = vpack.c.b16 %v109, %v107
  %v130 = vpack.c.b16 %v112, %v110
  %v131 = vpack.c.b16 %v113, %v111
  %v132 = vpack.c.b16 %v116, %v114
  %v133 = vpack.c.b16 %v117, %v115
  %150 = vmatprep.subr.bf16.mxu0 %v119
  %151 = vmatpush1.bf16.msra.mxu0 %v118
  %152 = vmatprep.subr.bf16.mxu0 %v121
  %153 = vmatpush1.bf16.msra.mxu0 %v120
  %154 = vmatprep.subr.bf16.mxu0 %v123
  %155 = vmatpush1.bf16.msra.mxu0 %v122
  %156 = vmatprep.subr.bf16.mxu0 %v125
  %157 = vmatpush1.bf16.msra.mxu0 %v124
  %158 = vmatprep.subr.bf16.mxu0 %v127
  %159 = vmatpush1.bf16.msra.mxu0 %v126
  %160 = vmatprep.subr.bf16.mxu0 %v129
  %161 = vmatpush1.bf16.msra.mxu0 %v128
  %162 = vmatprep.subr.bf16.mxu0 %v131
  %163 = vmatpush1.bf16.msra.mxu0 %v130
  %164 = vmatprep.subr.bf16.mxu0 %v133
  %165 = vmatpush1.bf16.msra.mxu0 %v132
  %166 = vmatprep.subr.bf16.mxu0 0
  %167 = vmatpush1.bf16.msra.mxu0 0
  %168 = vmatprep.subr.bf16.mxu0 0
  %169 = vmatpush1.bf16.msra.mxu0 0
  %170 = vmatprep.subr.bf16.mxu0 0
  %171 = vmatpush1.bf16.msra.mxu0 0
  %172 = vmatprep.subr.bf16.mxu0 0
  %173 = vmatpush1.bf16.msra.mxu0 0
  %174 = vmatprep.subr.bf16.mxu0 0
  %175 = vmatpush1.bf16.msra.mxu0 0
  %176 = vmatprep.subr.bf16.mxu0 0
  %177 = vmatpush1.bf16.msra.mxu0 0
  %178 = vmatprep.subr.bf16.mxu0 0
  %179 = vmatpush1.bf16.msra.mxu0 0
  %180 = vmatprep.subr.bf16.mxu0 0
  %181 = vmatpush1.bf16.msra.mxu0 0
  %182 = vmatprep.mubr.bf16.mxu0 0
  %183 = vmatmul.mubr.bf16.gmra.mrb[0].mxu0 %v53
  %v184 = vpop.f32.mrb[0].mxu0
  %v185 = vadd.f32 0.0, %v184
  %v186 = vpop.f32.mrb[0].mxu0
  %v187 = vadd.f32 0.0, %v186
  %v188 = vpop.f32.mrb[0].mxu0
  %v189 = vadd.f32 0.0, %v188
  %v190 = vpop.f32.mrb[0].mxu0
  %v191 = vadd.f32 0.0, %v190
  %192 = vdwg.mxu0
  %193 = vst [vmem:[%s4] sm:$0xff] %v185
  %194 = vst [vmem:[%s4 + $0x8] sm:$0xff] %v187
  %195 = vst [vmem:[%s4 + $0x10] sm:$0xff] %v189
  %196 = vst [vmem:[%s4 + $0x18] sm:$0xff] %v191
  %v197 = vld [vmem:[%s3] sm:$0xff]
  %v198 = vld [vmem:[%s3 + $0x8] sm:$0xff]
  %v199 = vld [vmem:[%s3 + $0x10] sm:$0xff]
  %v200 = vld [vmem:[%s3 + $0x18] sm:$0xff]
  %v201 = vld [vmem:[%s3 + $0x20] sm:$0xff]
  %v202 = vld [vmem:[%s3 + $0x28] sm:$0xff]
  %v203 = vld [vmem:[%s3 + $0x30] sm:$0xff]
  %v204 = vld [vmem:[%s3 + $0x38] sm:$0xff]
  %v205 = vld [vmem:[%s3 + $0x40] sm:$0xff]
  %v206 = vld [vmem:[%s3 + $0x48] sm:$0xff]
  %v207 = vld [vmem:[%s3 + $0x50] sm:$0xff]
  %v208 = vld [vmem:[%s3 + $0x58] sm:$0xff]
  %v209 = vld [vmem:[%s3 + $0x60] sm:$0xff]
  %v210 = vld [vmem:[%s3 + $0x68] sm:$0xff]
  %v211 = vld [vmem:[%s3 + $0x70] sm:$0xff]
  %v212 = vld [vmem:[%s3 + $0x78] sm:$0xff]
  %v229 = vunpack.c.l.b16 %v197
  %v230 = vunpack.c.h.b16 %v197
  %v231 = vunpack.c.l.b16 %v198
  %v232 = vunpack.c.h.b16 %v198
  %v233 = vunpack.c.l.b16 %v199
  %v234 = vunpack.c.h.b16 %v199
  %v235 = vunpack.c.l.b16 %v200
  %v236 = vunpack.c.h.b16 %v200
  %v237 = vunpack.c.l.b16 %v201
  %v238 = vunpack.c.h.b16 %v201
  %v239 = vunpack.c.l.b16 %v202
  %v240 = vunpack.c.h.b16 %v202
  %v241 = vunpack.c.l.b16 %v203
  %v242 = vunpack.c.h.b16 %v203
  %v243 = vunpack.c.l.b16 %v204
  %v244 = vunpack.c.h.b16 %v204
  %v245 = vunpack.c.l.b16 %v205
  %v246 = vunpack.c.h.b16 %v205
  %v247 = vunpack.c.l.b16 %v206
  %v248 = vunpack.c.h.b16 %v206
  %v249 = vunpack.c.l.b16 %v207
  %v250 = vunpack.c.h.b16 %v207
  %v251 = vunpack.c.l.b16 %v208
  %v252 = vunpack.c.h.b16 %v208
  %v253 = vunpack.c.l.b16 %v209
  %v254 = vunpack.c.h.b16 %v209
  %v255 = vunpack.c.l.b16 %v210
  %v256 = vunpack.c.h.b16 %v210
  %v257 = vunpack.c.l.b16 %v211
  %v258 = vunpack.c.h.b16 %v211
  %v259 = vunpack.c.l.b16 %v212
  %v260 = vunpack.c.h.b16 %v212
  %v261 = vpack.c.b16 %v231, %v229
  %v262 = vpack.c.b16 %v232, %v230
  %v263 = vpack.c.b16 %v235, %v233
  %v264 = vpack.c.b16 %v236, %v234
  %v265 = vpack.c.b16 %v239, %v237
  %v266 = vpack.c.b16 %v240, %v238
  %v267 = vpack.c.b16 %v243, %v241
  %v268 = vpack.c.b16 %v244, %v242
  %v269 = vpack.c.b16 %v247, %v245
  %v270 = vpack.c.b16 %v248, %v246
  %v271 = vpack.c.b16 %v251, %v249
  %v272 = vpack.c.b16 %v252, %v250
  %v273 = vpack.c.b16 %v255, %v253
  %v274 = vpack.c.b16 %v256, %v254
  %v275 = vpack.c.b16 %v259, %v257
  %v276 = vpack.c.b16 %v260, %v258
  %293 = vmatprep.subr.bf16.mxu0 %v262
  %294 = vmatpush1.bf16.msra.mxu0 %v261
  %295 = vmatprep.subr.bf16.mxu0 %v264
  %296 = vmatpush1.bf16.msra.mxu0 %v263
  %297 = vmatprep.subr.bf16.mxu0 %v266
  %298 = vmatpush1.bf16.msra.mxu0 %v265
  %299 = vmatprep.subr.bf16.mxu0 %v268
  %300 = vmatpush1.bf16.msra.mxu0 %v267
  %301 = vmatprep.subr.bf16.mxu0 %v270
  %302 = vmatpush1.bf16.msra.mxu0 %v269
  %303 = vmatprep.subr.bf16.mxu0 %v272
  %304 = vmatpush1.bf16.msra.mxu0 %v271
  %305 = vmatprep.subr.bf16.mxu0 %v274
  %306 = vmatpush1.bf16.msra.mxu0 %v273
  %307 = vmatprep.subr.bf16.mxu0 %v276
  %308 = vmatpush1.bf16.msra.mxu0 %v275
  %309 = vmatprep.subr.bf16.mxu0 0
  %310 = vmatpush1.bf16.msra.mxu0 0
  %311 = vmatprep.subr.bf16.mxu0 0
  %312 = vmatpush1.bf16.msra.mxu0 0
  %313 = vmatprep.subr.bf16.mxu0 0
  %314 = vmatpush1.bf16.msra.mxu0 0
  %315 = vmatprep.subr.bf16.mxu0 0
  %316 = vmatpush1.bf16.msra.mxu0 0
  %317 = vmatprep.subr.bf16.mxu0 0
  %318 = vmatpush1.bf16.msra.mxu0 0
  %319 = vmatprep.subr.bf16.mxu0 0
  %320 = vmatpush1.bf16.msra.mxu0 0
  %321 = vmatprep.subr.bf16.mxu0 0
  %322 = vmatpush1.bf16.msra.mxu0 0
  %323 = vmatprep.subr.bf16.mxu0 0
  %324 = vmatpush1.bf16.msra.mxu0 0
  %325 = vmatprep.mubr.bf16.mxu0 0
  %326 = vmatmul.mubr.bf16.gmra.mrb[0].mxu0 %v53
  %v327 = vpop.f32.mrb[0].mxu0
  %v328 = vadd.f32 0.0, %v327
  %v329 = vpop.f32.mrb[0].mxu0
  %v330 = vadd.f32 0.0, %v329
  %v331 = vpop.f32.mrb[0].mxu0
  %v332 = vadd.f32 0.0, %v331
  %v333 = vpop.f32.mrb[0].mxu0
  %v334 = vadd.f32 0.0, %v333
  %335 = vdwg.mxu0
  %v336 = vxor.u32 %v328, 2147483648
  %v337 = vxor.u32 %v330, 2147483648
  %v338 = vxor.u32 %v332, 2147483648
  %v339 = vxor.u32 %v334, 2147483648
  %v340 = vmul.f32 %v336, 1.442695
  %v341 = vpow.pop %v340
  %v342 = vmul.f32 %v337, 1.442695
  %v343 = vpow.pop %v342
  %v344 = vmul.f32 %v338, 1.442695
  %v345 = vpow.pop %v344
  %v346 = vmul.f32 %v339, 1.442695
  %v347 = vpow.pop %v346
  %v348 = vadd.f32 %v341, 1.0
  %v349 = vadd.f32 %v343, 1.0
  %v350 = vadd.f32 %v345, 1.0
  %v351 = vadd.f32 %v347, 1.0
  %v352 = vrcp.pop %v348
  %v353 = vmul.f32 1.0, %v352
  %v354 = vrcp.pop %v349
  %v355 = vmul.f32 1.0, %v354
  %v356 = vrcp.pop %v350
  %v357 = vmul.f32 1.0, %v356
  %v358 = vrcp.pop %v351
  %v359 = vmul.f32 1.0, %v358
  %v360 = vmul.f32 %v328, %v353
  %v361 = vmul.f32 %v330, %v355
  %v362 = vmul.f32 %v332, %v357
  %v363 = vmul.f32 %v334, %v359
  %364 = vst [vmem:[%s5] sm:$0xff] %v360
  %365 = vst [vmem:[%s5 + $0x8] sm:$0xff] %v361
  %366 = vst [vmem:[%s5 + $0x10] sm:$0xff] %v362
  %367 = vst [vmem:[%s5 + $0x18] sm:$0xff] %v363
  // Predicated region
  $region22: #{hawk_forward.18} parent=0 // pred_check
    _
  $region23: #{hawk_forward.18} parent=0 // pred_check_branch
    %369 = sbr.rel (0) target = $region25
  $region24: #{hawk_forward.18} parent=0 // pred_region
    _
  $region25: #{hawk_forward.18} parent=0 // pred_fallthru
    _
  // Predicated region
  $region26: #{hawk_forward.18} parent=0 // pred_check
    _
  $region27: #{hawk_forward.18} parent=0 // pred_check_branch
    %371 = sbr.rel (0) target = $region29
  $region28: #{hawk_forward.18} parent=0 // pred_region
    _
  $region29: #{hawk_forward.18} parent=0 // pred_fallthru
    _
  // Predicated region
  $region30: #{hawk_forward.18} parent=0 // pred_check
    _
  $region31: #{hawk_forward.18} parent=0 // pred_check_branch
    %373 = sbr.rel (0) target = $region33
  $region32: #{hawk_forward.18} parent=0 // pred_region
    _
  $region33: #{hawk_forward.18} parent=0 // pred_fallthru
    _
  // Predicated region
  $region34: #{hawk_forward.18} parent=0 // pred_check
    _
  $region35: #{hawk_forward.18} parent=0 // pred_check_branch
    %375 = sbr.rel (0) target = $region37
  $region36: #{hawk_forward.18} parent=0 // pred_region
    _
  $region37: #{hawk_forward.18} parent=0 // pred_fallthru
    _
  // Predicated region
  $region38: #{hawk_forward.18} parent=0 // pred_check
    _
  $region39: #{hawk_forward.18} parent=0 // pred_check_branch
    %377 = sbr.rel (0) target = $region41
  $region40: #{hawk_forward.18} parent=0 // pred_region
    _
  $region41: #{hawk_forward.18} parent=0 // pred_fallthru
    _
  // Predicated region
  $region42: #{hawk_forward.18} parent=0 // pred_check
    _
  $region43: #{hawk_forward.18} parent=0 // pred_check_branch
    %379 = sbr.rel (0) target = $region45
  $region44: #{hawk_forward.18} parent=0 // pred_region
    _
  $region45: #{hawk_forward.18} parent=0 // pred_fallthru
    _

// kernel: hawk_forward.19
$region0: #{hawk_forward.19}
  #allocation0 [shape = 'u32[]', space=smem, size = 0x4, offset = 0x4, fixed_abs, tag = 'smem constant byte address 0x4 - core index']
  #allocation1 [shape = 'u32[144,128]{1,0:T(1,128)}', space=vmem, size = 0x12000, scoped, tag = 'internal scratch']
  %s0 = inlined_call_operand.vmem [shape: f32[16,256], index: 0, kind: input, shape index: {}, may-alias: {0,3}]
  %s1 = inlined_call_operand.vmem [shape: bf16[256,256], index: 1, kind: input, shape index: {}]
  %s2 = inlined_call_operand.vmem [shape: bf16[256,256], index: 2, kind: input, shape index: {}]
  %s3 = inlined_call_operand.vmem [shape: f32[16,256], index: 3, kind: input, shape index: {}, may-alias: {0,3}]
  %s4 = inlined_call_operand.vmem [shape: f32[1,256], index: 4, kind: input, shape index: {}]
  %s5 = inlined_call_operand.vmem [shape: f32[16,256], index: 5, kind: output, shape index: {0}]
  %s6 = inlined_call_operand.vmem [shape: f32[16,256], index: 6, kind: output, shape index: {1}]
  %7 = xla_tuple %s5, %s6
  %s8 = sld [smem:[#allocation0]]
  $region46: #{hawk_forward.19} parent=0
    _
  %s10 = ssub.s32 1, %s8
  %s11 = scalar_select 0, %s10, %s8
  // Predicated region
  $region2: #{hawk_forward.19} parent=0 // pred_check
    _
  $region3: #{hawk_forward.19} parent=0 // pred_check_branch
    %13 = sbr.rel (0) target = $region5
  $region4: #{hawk_forward.19} parent=0 // pred_region
    _
  $region5: #{hawk_forward.19} parent=0 // pred_fallthru
    _
  // Predicated region
  $region6: #{hawk_forward.19} parent=0 // pred_check
    _
  $region7: #{hawk_forward.19} parent=0 // pred_check_branch
    %15 = sbr.rel (0) target = $region9
  $region8: #{hawk_forward.19} parent=0 // pred_region
    _
  $region9: #{hawk_forward.19} parent=0 // pred_fallthru
    _
  // Predicated region
  $region10: #{hawk_forward.19} parent=0 // pred_check
    _
  $region11: #{hawk_forward.19} parent=0 // pred_check_branch
    %17 = sbr.rel (0) target = $region13
  $region12: #{hawk_forward.19} parent=0 // pred_region
    _
  $region13: #{hawk_forward.19} parent=0 // pred_fallthru
    _
  // Predicated region
  $region14: #{hawk_forward.19} parent=0 // pred_check
    _
  $region15: #{hawk_forward.19} parent=0 // pred_check_branch
    %19 = sbr.rel (0) target = $region17
  $region16: #{hawk_forward.19} parent=0 // pred_region
    _
  $region17: #{hawk_forward.19} parent=0 // pred_fallthru
    _
  // Predicated region
  $region18: #{hawk_forward.19} parent=0 // pred_check
    _
  $region19: #{hawk_forward.19} parent=0 // pred_check_branch
    %21 = sbr.rel (0) target = $region21
  $region20: #{hawk_forward.19} parent=0 // pred_region
    _
  $region21: #{hawk_forward.19} parent=0 // pred_fallthru
    _
  %p22 = scmp.eq.s32.totalorder 0, 0
  // Predicated region
  $region22: #{hawk_forward.19} parent=0 // pred_check
    %p23 = pneg %p22
  $region23: #{hawk_forward.19} parent=0 // pred_check_branch
    %25 = sbr.rel (%p23) target = $region25
  $region24: #{hawk_forward.19} parent=0 // pred_region
    %26 = vst [vmem:[%s5] sm:$0xff] 0.0
    %27 = vst [vmem:[%s5 + $0x8] sm:$0xff] 0.0
    %28 = vst [vmem:[%s5 + $0x10] sm:$0xff] 0.0
    %29 = vst [vmem:[%s5 + $0x18] sm:$0xff] 0.0
    %30 = vst [vmem:[%s6] sm:$0xff] 0.0
    %31 = vst [vmem:[%s6 + $0x8] sm:$0xff] 0.0
    %32 = vst [vmem:[%s6 + $0x10] sm:$0xff] 0.0
    %33 = vst [vmem:[%s6 + $0x18] sm:$0xff] 0.0
  $region25: #{hawk_forward.19} parent=0 // pred_fallthru
    _
  %v34 = vld [vmem:[%s0] sm:$0xff]
  %v35 = vld [vmem:[%s0 + $0x8] sm:$0xff]
  %v36 = vld [vmem:[%s0 + $0x10] sm:$0xff]
  %v37 = vld [vmem:[%s0 + $0x18] sm:$0xff]
  %v38 = vpack.c.bf16 %v36, %v34
  %v39 = vpack.c.bf16 %v37, %v35
  %v40 = vld [vmem:[%s5] sm:$0xff]
  %v41 = vld [vmem:[%s5 + $0x8] sm:$0xff]
  %v42 = vld [vmem:[%s5 + $0x10] sm:$0xff]
  %v43 = vld [vmem:[%s5 + $0x18] sm:$0xff]
  %v44 = vld [vmem:[%s1] sm:$0xff]
  %v45 = vld [vmem:[%s1 + $0x8] sm:$0xff]
  %v46 = vld [vmem:[%s1 + $0x10] sm:$0xff]
  %v47 = vld [vmem:[%s1 + $0x18] sm:$0xff]
  %v48 = vld [vmem:[%s1 + $0x20] sm:$0xff]
  %v49 = vld [vmem:[%s1 + $0x28] sm:$0xff]
  %v50 = vld [vmem:[%s1 + $0x30] sm:$0xff]
  %v51 = vld [vmem:[%s1 + $0x38] sm:$0xff]
  %v52 = vld [vmem:[%s1 + $0x40] sm:$0xff]
  %v53 = vld [vmem:[%s1 + $0x48] sm:$0xff]
  %v54 = vld [vmem:[%s1 + $0x50] sm:$0xff]
  %v55 = vld [vmem:[%s1 + $0x58] sm:$0xff]
  %v56 = vld [vmem:[%s1 + $0x60] sm:$0xff]
  %v57 = vld [vmem:[%s1 + $0x68] sm:$0xff]
  %v58 = vld [vmem:[%s1 + $0x70] sm:$0xff]
  %v59 = vld [vmem:[%s1 + $0x78] sm:$0xff]
  %v60 = vld [vmem:[%s1 + $0x80] sm:$0xff]
  %v61 = vld [vmem:[%s1 + $0x88] sm:$0xff]
  %v62 = vld [vmem:[%s1 + $0x90] sm:$0xff]
  %v63 = vld [vmem:[%s1 + $0x98] sm:$0xff]
  %v64 = vld [vmem:[%s1 + $0xa0] sm:$0xff]
  %v65 = vld [vmem:[%s1 + $0xa8] sm:$0xff]
  %v66 = vld [vmem:[%s1 + $0xb0] sm:$0xff]
  %v67 = vld [vmem:[%s1 + $0xb8] sm:$0xff]
  %v68 = vld [vmem:[%s1 + $0xc0] sm:$0xff]
  %v69 = vld [vmem:[%s1 + $0xc8] sm:$0xff]
  %v70 = vld [vmem:[%s1 + $0xd0] sm:$0xff]
  %v71 = vld [vmem:[%s1 + $0xd8] sm:$0xff]
  %v72 = vld [vmem:[%s1 + $0xe0] sm:$0xff]
  %v73 = vld [vmem:[%s1 + $0xe8] sm:$0xff]
  %v74 = vld [vmem:[%s1 + $0xf0] sm:$0xff]
  %v75 = vld [vmem:[%s1 + $0xf8] sm:$0xff]
  %v108 = vunpack.c.l.b16 %v44
  %v109 = vunpack.c.h.b16 %v44
  %v110 = vunpack.c.l.b16 %v45
  %v111 = vunpack.c.h.b16 %v45
  %v112 = vunpack.c.l.b16 %v46
  %v113 = vunpack.c.h.b16 %v46
  %v114 = vunpack.c.l.b16 %v47
  %v115 = vunpack.c.h.b16 %v47
  %v116 = vunpack.c.l.b16 %v48
  %v117 = vunpack.c.h.b16 %v48
  %v118 = vunpack.c.l.b16 %v49
  %v119 = vunpack.c.h.b16 %v49
  %v120 = vunpack.c.l.b16 %v50
  %v121 = vunpack.c.h.b16 %v50
  %v122 = vunpack.c.l.b16 %v51
  %v123 = vunpack.c.h.b16 %v51
  %v124 = vunpack.c.l.b16 %v52
  %v125 = vunpack.c.h.b16 %v52
  %v126 = vunpack.c.l.b16 %v53
  %v127 = vunpack.c.h.b16 %v53
  %v128 = vunpack.c.l.b16 %v54
  %v129 = vunpack.c.h.b16 %v54
  %v130 = vunpack.c.l.b16 %v55
  %v131 = vunpack.c.h.b16 %v55
  %v132 = vunpack.c.l.b16 %v56
  %v133 = vunpack.c.h.b16 %v56
  %v134 = vunpack.c.l.b16 %v57
  %v135 = vunpack.c.h.b16 %v57
  %v136 = vunpack.c.l.b16 %v58
  %v137 = vunpack.c.h.b16 %v58
  %v138 = vunpack.c.l.b16 %v59
  %v139 = vunpack.c.h.b16 %v59
  %v140 = vunpack.c.l.b16 %v60
  %v141 = vunpack.c.h.b16 %v60
  %v142 = vunpack.c.l.b16 %v61
  %v143 = vunpack.c.h.b16 %v61
  %v144 = vunpack.c.l.b16 %v62
  %v145 = vunpack.c.h.b16 %v62
  %v146 = vunpack.c.l.b16 %v63
  %v147 = vunpack.c.h.b16 %v63
  %v148 = vunpack.c.l.b16 %v64
  %v149 = vunpack.c.h.b16 %v64
  %v150 = vunpack.c.l.b16 %v65
  %v151 = vunpack.c.h.b16 %v65
  %v152 = vunpack.c.l.b16 %v66
  %v153 = vunpack.c.h.b16 %v66
  %v154 = vunpack.c.l.b16 %v67
  %v155 = vunpack.c.h.b16 %v67
  %v156 = vunpack.c.l.b16 %v68
  %v157 = vunpack.c.h.b16 %v68
  %v158 = vunpack.c.l.b16 %v69
  %v159 = vunpack.c.h.b16 %v69
  %v160 = vunpack.c.l.b16 %v70
  %v161 = vunpack.c.h.b16 %v70
  %v162 = vunpack.c.l.b16 %v71
  %v163 = vunpack.c.h.b16 %v71
  %v164 = vunpack.c.l.b16 %v72
  %v165 = vunpack.c.h.b16 %v72
  %v166 = vunpack.c.l.b16 %v73
  %v167 = vunpack.c.h.b16 %v73
  %v168 = vunpack.c.l.b16 %v74
  %v169 = vunpack.c.h.b16 %v74
  %v170 = vunpack.c.l.b16 %v75
  %v171 = vunpack.c.h.b16 %v75
  %v172 = vpack.c.b16 %v110, %v108
  %v173 = vpack.c.b16 %v111, %v109
  %v174 = vpack.c.b16 %v114, %v112
  %v175 = vpack.c.b16 %v115, %v113
  %v176 = vpack.c.b16 %v118, %v116
  %v177 = vpack.c.b16 %v119, %v117
  %v178 = vpack.c.b16 %v122, %v120
  %v179 = vpack.c.b16 %v123, %v121
  %v180 = vpack.c.b16 %v126, %v124
  %v181 = vpack.c.b16 %v127, %v125
  %v182 = vpack.c.b16 %v130, %v128
  %v183 = vpack.c.b16 %v131, %v129
  %v184 = vpack.c.b16 %v134, %v132
  %v185 = vpack.c.b16 %v135, %v133
  %v186 = vpack.c.b16 %v138, %v136
  %v187 = vpack.c.b16 %v139, %v137
  %v188 = vpack.c.b16 %v142, %v140
  %v189 = vpack.c.b16 %v143, %v141
  %v190 = vpack.c.b16 %v146, %v144
  %v191 = vpack.c.b16 %v147, %v145
  %v192 = vpack.c.b16 %v150, %v148
  %v193 = vpack.c.b16 %v151, %v149
  %v194 = vpack.c.b16 %v154, %v152
  %v195 = vpack.c.b16 %v155, %v153
  %v196 = vpack.c.b16 %v158, %v156
  %v197 = vpack.c.b16 %v159, %v157
  %v198 = vpack.c.b16 %v162, %v160
  %v199 = vpack.c.b16 %v163, %v161
  %v200 = vpack.c.b16 %v166, %v164
  %v201 = vpack.c.b16 %v167, %v165
  %v202 = vpack.c.b16 %v170, %v168
  %v203 = vpack.c.b16 %v171, %v169
  %236 = vmatprep.subr.bf16.mxu0 %v173
  %237 = vmatpush1.bf16.msra.mxu0 %v172
  %238 = vmatprep.subr.bf16.mxu0 %v175
  %239 = vmatpush1.bf16.msra.mxu0 %v174
  %240 = vmatprep.subr.bf16.mxu0 %v177
  %241 = vmatpush1.bf16.msra.mxu0 %v176
  %242 = vmatprep.subr.bf16.mxu0 %v179
  %243 = vmatpush1.bf16.msra.mxu0 %v178
  %244 = vmatprep.subr.bf16.mxu0 %v181
  %245 = vmatpush1.bf16.msra.mxu0 %v180
  %246 = vmatprep.subr.bf16.mxu0 %v183
  %247 = vmatpush1.bf16.msra.mxu0 %v182
  %248 = vmatprep.subr.bf16.mxu0 %v185
  %249 = vmatpush1.bf16.msra.mxu0 %v184
  %250 = vmatprep.subr.bf16.mxu0 %v187
  %251 = vmatpush1.bf16.msra.mxu0 %v186
  %252 = vmatprep.subr.bf16.mxu0 %v189
  %253 = vmatpush1.bf16.msra.mxu0 %v188
  %254 = vmatprep.subr.bf16.mxu0 %v191
  %255 = vmatpush1.bf16.msra.mxu0 %v190
  %256 = vmatprep.subr.bf16.mxu0 %v193
  %257 = vmatpush1.bf16.msra.mxu0 %v192
  %258 = vmatprep.subr.bf16.mxu0 %v195
  %259 = vmatpush1.bf16.msra.mxu0 %v194
  %260 = vmatprep.subr.bf16.mxu0 %v197
  %261 = vmatpush1.bf16.msra.mxu0 %v196
  %262 = vmatprep.subr.bf16.mxu0 %v199
  %263 = vmatpush1.bf16.msra.mxu0 %v198
  %264 = vmatprep.subr.bf16.mxu0 %v201
  %265 = vmatpush1.bf16.msra.mxu0 %v200
  %266 = vmatprep.subr.bf16.mxu0 %v203
  %267 = vmatpush1.bf16.msra.mxu0 %v202
  %268 = vmatprep.mubr.bf16.mxu0 %v39
  %269 = vmatmul.mubr.bf16.gmra.mrb[0].mxu0 %v38
  %v270 = vpop.f32.mrb[0].mxu0
  %v271 = vadd.f32 0.0, %v270
  %v272 = vpop.f32.mrb[0].mxu0
  %v273 = vadd.f32 0.0, %v272
  %v274 = vpop.f32.mrb[0].mxu0
  %v275 = vadd.f32 0.0, %v274
  %v276 = vpop.f32.mrb[0].mxu0
  %v277 = vadd.f32 0.0, %v276
  %278 = vdwg.mxu0
  %v279 = vadd.f32 %v40, %v271
  %v280 = vadd.f32 %v41, %v273
  %v281 = vadd.f32 %v42, %v275
  %v282 = vadd.f32 %v43, %v277
  %283 = vst [vmem:[%s5] sm:$0xff] %v279
  %284 = vst [vmem:[%s5 + $0x8] sm:$0xff] %v280
  %285 = vst [vmem:[%s5 + $0x10] sm:$0xff] %v281
  %286 = vst [vmem:[%s5 + $0x18] sm:$0xff] %v282
  %v287 = vld [vmem:[%s6] sm:$0xff]
  %v288 = vld [vmem:[%s6 + $0x8] sm:$0xff]
  %v289 = vld [vmem:[%s6 + $0x10] sm:$0xff]
  %v290 = vld [vmem:[%s6 + $0x18] sm:$0xff]
  %v291 = vld [vmem:[%s2] sm:$0xff]
  %v292 = vld [vmem:[%s2 + $0x8] sm:$0xff]
  %v293 = vld [vmem:[%s2 + $0x10] sm:$0xff]
  %v294 = vld [vmem:[%s2 + $0x18] sm:$0xff]
  %v295 = vld [vmem:[%s2 + $0x20] sm:$0xff]
  %v296 = vld [vmem:[%s2 + $0x28] sm:$0xff]
  %v297 = vld [vmem:[%s2 + $0x30] sm:$0xff]
  %v298 = vld [vmem:[%s2 + $0x38] sm:$0xff]
  %v299 = vld [vmem:[%s2 + $0x40] sm:$0xff]
  %v300 = vld [vmem:[%s2 + $0x48] sm:$0xff]
  %v301 = vld [vmem:[%s2 + $0x50] sm:$0xff]
  %v302 = vld [vmem:[%s2 + $0x58] sm:$0xff]
  %v303 = vld [vmem:[%s2 + $0x60] sm:$0xff]
  %v304 = vld [vmem:[%s2 + $0x68] sm:$0xff]
  %v305 = vld [vmem:[%s2 + $0x70] sm:$0xff]
  %v306 = vld [vmem:[%s2 + $0x78] sm:$0xff]
  %v307 = vld [vmem:[%s2 + $0x80] sm:$0xff]
  %v308 = vld [vmem:[%s2 + $0x88] sm:$0xff]
  %v309 = vld [vmem:[%s2 + $0x90] sm:$0xff]
  %v310 = vld [vmem:[%s2 + $0x98] sm:$0xff]
  %v311 = vld [vmem:[%s2 + $0xa0] sm:$0xff]
  %v312 = vld [vmem:[%s2 + $0xa8] sm:$0xff]
  %v313 = vld [vmem:[%s2 + $0xb0] sm:$0xff]
  %v314 = vld [vmem:[%s2 + $0xb8] sm:$0xff]
  %v315 = vld [vmem:[%s2 + $0xc0] sm:$0xff]
  %v316 = vld [vmem:[%s2 + $0xc8] sm:$0xff]
  %v317 = vld [vmem:[%s2 + $0xd0] sm:$0xff]
  %v318 = vld [vmem:[%s2 + $0xd8] sm:$0xff]
  %v319 = vld [vmem:[%s2 + $0xe0] sm:$0xff]
  %v320 = vld [vmem:[%s2 + $0xe8] sm:$0xff]
  %v321 = vld [vmem:[%s2 + $0xf0] sm:$0xff]
  %v322 = vld [vmem:[%s2 + $0xf8] sm:$0xff]
  %v355 = vunpack.c.l.b16 %v291
  %v356 = vunpack.c.h.b16 %v291
  %v357 = vunpack.c.l.b16 %v292
  %v358 = vunpack.c.h.b16 %v292
  %v359 = vunpack.c.l.b16 %v293
  %v360 = vunpack.c.h.b16 %v293
  %v361 = vunpack.c.l.b16 %v294
  %v362 = vunpack.c.h.b16 %v294
  %v363 = vunpack.c.l.b16 %v295
  %v364 = vunpack.c.h.b16 %v295
  %v365 = vunpack.c.l.b16 %v296
  %v366 = vunpack.c.h.b16 %v296
  %v367 = vunpack.c.l.b16 %v297
  %v368 = vunpack.c.h.b16 %v297
  %v369 = vunpack.c.l.b16 %v298
  %v370 = vunpack.c.h.b16 %v298
  %v371 = vunpack.c.l.b16 %v299
  %v372 = vunpack.c.h.b16 %v299
  %v373 = vunpack.c.l.b16 %v300
  %v374 = vunpack.c.h.b16 %v300
  %v375 = vunpack.c.l.b16 %v301
  %v376 = vunpack.c.h.b16 %v301
  %v377 = vunpack.c.l.b16 %v302
  %v378 = vunpack.c.h.b16 %v302
  %v379 = vunpack.c.l.b16 %v303
  %v380 = vunpack.c.h.b16 %v303
  %v381 = vunpack.c.l.b16 %v304
  %v382 = vunpack.c.h.b16 %v304
  %v383 = vunpack.c.l.b16 %v305
  %v384 = vunpack.c.h.b16 %v305
  %v385 = vunpack.c.l.b16 %v306
  %v386 = vunpack.c.h.b16 %v306
  %v387 = vunpack.c.l.b16 %v307
  %v388 = vunpack.c.h.b16 %v307
  %v389 = vunpack.c.l.b16 %v308
  %v390 = vunpack.c.h.b16 %v308
  %v391 = vunpack.c.l.b16 %v309
  %v392 = vunpack.c.h.b16 %v309
  %v393 = vunpack.c.l.b16 %v310
  %v394 = vunpack.c.h.b16 %v310
  %v395 = vunpack.c.l.b16 %v311
  %v396 = vunpack.c.h.b16 %v311
  %v397 = vunpack.c.l.b16 %v312
  %v398 = vunpack.c.h.b16 %v312
  %v399 = vunpack.c.l.b16 %v313
  %v400 = vunpack.c.h.b16 %v313
  %v401 = vunpack.c.l.b16 %v314
  %v402 = vunpack.c.h.b16 %v314
  %v403 = vunpack.c.l.b16 %v315
  %v404 = vunpack.c.h.b16 %v315
  %v405 = vunpack.c.l.b16 %v316
  %v406 = vunpack.c.h.b16 %v316
  %v407 = vunpack.c.l.b16 %v317
  %v408 = vunpack.c.h.b16 %v317
  %v409 = vunpack.c.l.b16 %v318
  %v410 = vunpack.c.h.b16 %v318
  %v411 = vunpack.c.l.b16 %v319
  %v412 = vunpack.c.h.b16 %v319
  %v413 = vunpack.c.l.b16 %v320
  %v414 = vunpack.c.h.b16 %v320
  %v415 = vunpack.c.l.b16 %v321
  %v416 = vunpack.c.h.b16 %v321
  %v417 = vunpack.c.l.b16 %v322
  %v418 = vunpack.c.h.b16 %v322
  %v419 = vpack.c.b16 %v357, %v355
  %v420 = vpack.c.b16 %v358, %v356
  %v421 = vpack.c.b16 %v361, %v359
  %v422 = vpack.c.b16 %v362, %v360
  %v423 = vpack.c.b16 %v365, %v363
  %v424 = vpack.c.b16 %v366, %v364
  %v425 = vpack.c.b16 %v369, %v367
  %v426 = vpack.c.b16 %v370, %v368
  %v427 = vpack.c.b16 %v373, %v371
  %v428 = vpack.c.b16 %v374, %v372
  %v429 = vpack.c.b16 %v377, %v375
  %v430 = vpack.c.b16 %v378, %v376
  %v431 = vpack.c.b16 %v381, %v379
  %v432 = vpack.c.b16 %v382, %v380
  %v433 = vpack.c.b16 %v385, %v383
  %v434 = vpack.c.b16 %v386, %v384
  %v435 = vpack.c.b16 %v389, %v387
  %v436 = vpack.c.b16 %v390, %v388
  %v437 = vpack.c.b16 %v393, %v391
  %v438 = vpack.c.b16 %v394, %v392
  %v439 = vpack.c.b16 %v397, %v395
  %v440 = vpack.c.b16 %v398, %v396
  %v441 = vpack.c.b16 %v401, %v399
  %v442 = vpack.c.b16 %v402, %v400
  %v443 = vpack.c.b16 %v405, %v403
  %v444 = vpack.c.b16 %v406, %v404
  %v445 = vpack.c.b16 %v409, %v407
  %v446 = vpack.c.b16 %v410, %v408
  %v447 = vpack.c.b16 %v413, %v411
  %v448 = vpack.c.b16 %v414, %v412
  %v449 = vpack.c.b16 %v417, %v415
  %v450 = vpack.c.b16 %v418, %v416
  %483 = vmatprep.subr.bf16.mxu0 %v420
  %484 = vmatpush1.bf16.msra.mxu0 %v419
  %485 = vmatprep.subr.bf16.mxu0 %v422
  %486 = vmatpush1.bf16.msra.mxu0 %v421
  %487 = vmatprep.subr.bf16.mxu0 %v424
  %488 = vmatpush1.bf16.msra.mxu0 %v423
  %489 = vmatprep.subr.bf16.mxu0 %v426
  %490 = vmatpush1.bf16.msra.mxu0 %v425
  %491 = vmatprep.subr.bf16.mxu0 %v428
  %492 = vmatpush1.bf16.msra.mxu0 %v427
  %493 = vmatprep.subr.bf16.mxu0 %v430
  %494 = vmatpush1.bf16.msra.mxu0 %v429
  %495 = vmatprep.subr.bf16.mxu0 %v432
  %496 = vmatpush1.bf16.msra.mxu0 %v431
  %497 = vmatprep.subr.bf16.mxu0 %v434
  %498 = vmatpush1.bf16.msra.mxu0 %v433
  %499 = vmatprep.subr.bf16.mxu0 %v436
  %500 = vmatpush1.bf16.msra.mxu0 %v435
  %501 = vmatprep.subr.bf16.mxu0 %v438
  %502 = vmatpush1.bf16.msra.mxu0 %v437
  %503 = vmatprep.subr.bf16.mxu0 %v440
  %504 = vmatpush1.bf16.msra.mxu0 %v439
  %505 = vmatprep.subr.bf16.mxu0 %v442
  %506 = vmatpush1.bf16.msra.mxu0 %v441
  %507 = vmatprep.subr.bf16.mxu0 %v444
  %508 = vmatpush1.bf16.msra.mxu0 %v443
  %509 = vmatprep.subr.bf16.mxu0 %v446
  %510 = vmatpush1.bf16.msra.mxu0 %v445
  %511 = vmatprep.subr.bf16.mxu0 %v448
  %512 = vmatpush1.bf16.msra.mxu0 %v447
  %513 = vmatprep.subr.bf16.mxu0 %v450
  %514 = vmatpush1.bf16.msra.mxu0 %v449
  %515 = vmatprep.mubr.bf16.mxu0 %v39
  %516 = vmatmul.mubr.bf16.gmra.mrb[0].mxu0 %v38
  %v517 = vpop.f32.mrb[0].mxu0
  %v518 = vadd.f32 0.0, %v517
  %v519 = vpop.f32.mrb[0].mxu0
  %v520 = vadd.f32 0.0, %v519
  %v521 = vpop.f32.mrb[0].mxu0
  %v522 = vadd.f32 0.0, %v521
  %v523 = vpop.f32.mrb[0].mxu0
  %v524 = vadd.f32 0.0, %v523
  %525 = vdwg.mxu0
  %v526 = vadd.f32 %v287, %v518
  %v527 = vadd.f32 %v288, %v520
  %v528 = vadd.f32 %v289, %v522
  %v529 = vadd.f32 %v290, %v524
  %530 = vst [vmem:[%s6] sm:$0xff] %v526
  %531 = vst [vmem:[%s6 + $0x8] sm:$0xff] %v527
  %532 = vst [vmem:[%s6 + $0x10] sm:$0xff] %v528
  %533 = vst [vmem:[%s6 + $0x18] sm:$0xff] %v529
  // Predicated region
  $region26: #{hawk_forward.19} parent=0 // pred_check
    %p534 = pneg %p22
  $region27: #{hawk_forward.19} parent=0 // pred_check_branch
    %536 = sbr.rel (%p534) target = $region29
  $region28: #{hawk_forward.19} parent=0 // pred_region
    %v537 = vld [vmem:[%s5] sm:$0xff]
    %v538 = vld [vmem:[%s5 + $0x8] sm:$0xff]
    %v539 = vld [vmem:[%s5 + $0x10] sm:$0xff]
    %v540 = vld [vmem:[%s5 + $0x18] sm:$0xff]
    %v541 = vxor.u32 %v537, 2147483648
    %v542 = vxor.u32 %v538, 2147483648
    %v543 = vxor.u32 %v539, 2147483648
    %v544 = vxor.u32 %v540, 2147483648
    %v545 = vmul.f32 %v541, 1.442695
    %v546 = vpow.pop %v545
    %v547 = vmul.f32 %v542, 1.442695
    %v548 = vpow.pop %v547
    %v549 = vmul.f32 %v543, 1.442695
    %v550 = vpow.pop %v549
    %v551 = vmul.f32 %v544, 1.442695
    %v552 = vpow.pop %v551
    %v553 = vadd.f32 %v546, 1.0
    %v554 = vadd.f32 %v548, 1.0
    %v555 = vadd.f32 %v550, 1.0
    %v556 = vadd.f32 %v552, 1.0
    %v557 = vrcp.pop %v553
    %v558 = vmul.f32 1.0, %v557
    %v559 = vrcp.pop %v554
    %v560 = vmul.f32 1.0, %v559
    %v561 = vrcp.pop %v555
    %v562 = vmul.f32 1.0, %v561
    %v563 = vrcp.pop %v556
    %v564 = vmul.f32 1.0, %v563
    %v565 = vld [vmem:[%s6] sm:$0xff]
    %v566 = vld [vmem:[%s6 + $0x8] sm:$0xff]
    %v567 = vld [vmem:[%s6 + $0x10] sm:$0xff]
    %v568 = vld [vmem:[%s6 + $0x18] sm:$0xff]
    %v569 = vxor.u32 %v565, 2147483648
    %v570 = vxor.u32 %v566, 2147483648
    %v571 = vxor.u32 %v567, 2147483648
    %v572 = vxor.u32 %v568, 2147483648
    %v573 = vmul.f32 %v569, 1.442695
    %v574 = vpow.pop %v573
    %v575 = vmul.f32 %v570, 1.442695
    %v576 = vpow.pop %v575
    %v577 = vmul.f32 %v571, 1.442695
    %v578 = vpow.pop %v577
    %v579 = vmul.f32 %v572, 1.442695
    %v580 = vpow.pop %v579
    %v581 = vadd.f32 %v574, 1.0
    %v582 = vadd.f32 %v576, 1.0
    %v583 = vadd.f32 %v578, 1.0
    %v584 = vadd.f32 %v580, 1.0
    %v585 = vrcp.pop %v581
    %v586 = vmul.f32 1.0, %v585
    %v587 = vrcp.pop %v582
    %v588 = vmul.f32 1.0, %v587
    %v589 = vrcp.pop %v583
    %v590 = vmul.f32 1.0, %v589
    %v591 = vrcp.pop %v584
    %v592 = vmul.f32 1.0, %v591
    %v593 = vld [vmem:[%s4] sm:$0x3]
    %v595 = vlaneseq
    %v596 = vshrl.u32 %v595, 7
    %v597 = vsub.s32 0, %v596
    %v598 = vrot.slane %v593, %v597
    %v599 = vlaneseq
    %v600 = vshrl.u32 %v599, 7
    %v601 = vsub.s32 1, %v600
    %v602 = vrot.slane %v593, %v601
    %v605 = vmul.f32 %v586, %v598
    %v606 = vmul.f32 %v588, %v602
    %v607 = vmul.f32 %v590, %v598
    %v608 = vmul.f32 %v592, %v602
    %v609 = vmul.f32 %v605, 1.442695
    %v610 = vpow.pop %v609
    %v611 = vmul.f32 %v606, 1.442695
    %v612 = vpow.pop %v611
    %v613 = vmul.f32 %v607, 1.442695
    %v614 = vpow.pop %v613
    %v615 = vmul.f32 %v608, 1.442695
    %v616 = vpow.pop %v615
    %v617 = vmul.f32 %v610, %v610
    %v618 = vmul.f32 %v612, %v612
    %v619 = vmul.f32 %v614, %v614
    %v620 = vmul.f32 %v616, %v616
    %v621 = vsub.f32 1.0, %v617
    %v622 = vsub.f32 1.0, %v618
    %v623 = vsub.f32 1.0, %v619
    %v624 = vsub.f32 1.0, %v620
    %v625 = vrsqrt.pop %v621
    %v626 = vmul.f32 %v621, %v625
    %vm627 = vcmp.eq.f32.partialorder %v621, inf
    %v628 = vsel %vm627, %v621, %v626
    %vm629 = vcmp.eq.f32.partialorder %v621, 0.0
    %v630 = vand.u32 %v621, 2147483648
    %v631 = vsel %vm629, %v630, %v628
    %v632 = vrsqrt.pop %v622
    %v633 = vmul.f32 %v622, %v632
    %vm634 = vcmp.eq.f32.partialorder %v622, inf
    %v635 = vsel %vm634, %v622, %v633
    %vm636 = vcmp.eq.f32.partialorder %v622, 0.0
    %v637 = vand.u32 %v622, 2147483648
    %v638 = vsel %vm636, %v637, %v635
    %v639 = vrsqrt.pop %v623
    %v640 = vmul.f32 %v623, %v639
    %vm641 = vcmp.eq.f32.partialorder %v623, inf
    %v642 = vsel %vm641, %v623, %v640
    %vm643 = vcmp.eq.f32.partialorder %v623, 0.0
    %v644 = vand.u32 %v623, 2147483648
    %v645 = vsel %vm643, %v644, %v642
    %v646 = vrsqrt.pop %v624
    %v647 = vmul.f32 %v624, %v646
    %vm648 = vcmp.eq.f32.partialorder %v624, inf
    %v649 = vsel %vm648, %v624, %v647
    %vm650 = vcmp.eq.f32.partialorder %v624, 0.0
    %v651 = vand.u32 %v624, 2147483648
    %v652 = vsel %vm650, %v651, %v649
    %653 = vst [vmem:[%s5] sm:$0xff] %v610
    %654 = vst [vmem:[%s5 + $0x8] sm:$0xff] %v612
    %655 = vst [vmem:[%s5 + $0x10] sm:$0xff] %v614
    %656 = vst [vmem:[%s5 + $0x18] sm:$0xff] %v616
    %v657 = vmul.f32 %v631, %v558
    %v658 = vmul.f32 %v638, %v560
    %v659 = vmul.f32 %v645, %v562
    %v660 = vmul.f32 %v652, %v564
    %v661 = vld [vmem:[%s3] sm:$0xff]
    %v662 = vld [vmem:[%s3 + $0x8] sm:$0xff]
    %v663 = vld [vmem:[%s3 + $0x10] sm:$0xff]
    %v664 = vld [vmem:[%s3 + $0x18] sm:$0xff]
    %v665 = vmul.f32 %v657, %v661
    %v666 = vmul.f32 %v658, %v662
    %v667 = vmul.f32 %v659, %v663
    %v668 = vmul.f32 %v660, %v664
    %669 = vst [vmem:[%s6] sm:$0xff] %v665
    %670 = vst [vmem:[%s6 + $0x8] sm:$0xff] %v666
    %671 = vst [vmem:[%s6 + $0x10] sm:$0xff] %v667
    %672 = vst [vmem:[%s6 + $0x18] sm:$0xff] %v668
  $region29: #{hawk_forward.19} parent=0 // pred_fallthru
    _
  // Predicated region
  $region30: #{hawk_forward.19} parent=0 // pred_check
    _
  $region31: #{hawk_forward.19} parent=0 // pred_check_branch
    %674 = sbr.rel (0) target = $region33
  $region32: #{hawk_forward.19} parent=0 // pred_region
    _
  $region33: #{hawk_forward.19} parent=0 // pred_fallthru
    _
  // Predicated region
  $region34: #{hawk_forward.19} parent=0 // pred_check
    _
  $region35: #{hawk_forward.19} parent=0 // pred_check_branch
    %676 = sbr.rel (0) target = $region37
  $region36: #{hawk_forward.19} parent=0 // pred_region
    _
  $region37: #{hawk_forward.19} parent=0 // pred_fallthru
    _
  // Predicated region
  $region38: #{hawk_forward.19} parent=0 // pred_check
    _
  $region39: #{hawk_forward.19} parent=0 // pred_check_branch
    %678 = sbr.rel (0) target = $region41
  $region40: #{hawk_forward.19} parent=0 // pred_region
    _
  $region41: #{hawk_forward.19} parent=0 // pred_fallthru
    _
  // Predicated region
  $region42: #{hawk_forward.19} parent=0 // pred_check
    _
  $region43: #{hawk_forward.19} parent=0 // pred_check_branch
    %680 = sbr.rel (0) target = $region45
  $region44: #{hawk_forward.19} parent=0 // pred_region
    _
  $region45: #{hawk_forward.19} parent=0 // pred_fallthru
    _

// kernel: hawk_forward.23
$region0: #{hawk_forward.23}
  #allocation0 [shape = 'u32[]', space=smem, size = 0x4, offset = 0x4, fixed_abs, tag = 'smem constant byte address 0x4 - core index']
  #allocation1 [shape = 'u32[144,128]{1,0:T(1,128)}', space=vmem, size = 0x12000, scoped, tag = 'internal scratch']
  %s0 = inlined_call_operand.vmem [shape: f32[16,384], index: 0, kind: input, shape index: {}]
  %s1 = inlined_call_operand.vmem [shape: bf16[384,128], index: 1, kind: input, shape index: {}]
  %s2 = inlined_call_operand.vmem [shape: f32[16,128], index: 2, kind: input, shape index: {}]
  %s3 = inlined_call_operand.hbm [shape: f32[16,128], index: 3, kind: output, shape index: {}]
  %s4 = sld [smem:[#allocation0]]
  $region26: #{hawk_forward.23} parent=0
    _
  %s6 = ssub.s32 1, %s4
  %s7 = scalar_select 0, %s6, %s4
  $region1: #{hawk_forward.23} parent=0
    #allocation2 [shape = 'u8[8192]{0}', space=vmem, size = 0x2000, scoped, tag = 'output window, operand 0, single buffered']
    #allocation3 [shape = 's32[1]{0}', space=sflag, size = 0x4, scoped, tag = 'scoped memory for hawk_forward.23']
    %8 = vsyncpa [#allocation3], 0
    // Predicated region
    $region2: #{hawk_forward.23} parent=1 // pred_check
      _
    $region3: #{hawk_forward.23} parent=1 // pred_check_branch
      %10 = sbr.rel (0) target = $region5
    $region4: #{hawk_forward.23} parent=1 // pred_region
      _
    $region5: #{hawk_forward.23} parent=1 // pred_fallthru
      _
    // Predicated region
    $region6: #{hawk_forward.23} parent=1 // pred_check
      _
    $region7: #{hawk_forward.23} parent=1 // pred_check_branch
      %12 = sbr.rel (0) target = $region9
    $region8: #{hawk_forward.23} parent=1 // pred_region
      _
    $region9: #{hawk_forward.23} parent=1 // pred_fallthru
      _
    // Predicated region
    $region10: #{hawk_forward.23} parent=1 // pred_check
      _
    $region11: #{hawk_forward.23} parent=1 // pred_check_branch
      %14 = sbr.rel (0) target = $region13
    $region12: #{hawk_forward.23} parent=1 // pred_region
      _
    $region13: #{hawk_forward.23} parent=1 // pred_fallthru
      _
    %p16 = scmp.eq.s32.totalorder 0, 0
    // Predicated region
    $region14: #{hawk_forward.23} parent=1 // pred_check
      %p17 = pneg %p16
    $region15: #{hawk_forward.23} parent=1 // pred_check_branch
      %19 = sbr.rel (%p17) target = $region17
    $region16: #{hawk_forward.23} parent=1 // pred_region
      %v20 = vld [vmem:[%s2] sm:$0xff]
      %v21 = vld [vmem:[%s2 + $0x8] sm:$0xff]
      %22 = vst [vmem:[#allocation2] sm:$0xff] %v20
      %23 = vst [vmem:[#allocation2 + $0x8] sm:$0xff] %v21
    $region17: #{hawk_forward.23} parent=1 // pred_fallthru
      _
    %v24 = vld [vmem:[#allocation2] sm:$0xff]
    %v25 = vld [vmem:[#allocation2 + $0x8] sm:$0xff]
    %v26 = vld [vmem:[%s0] sm:$0xff]
    %v27 = vld [vmem:[%s0 + $0x8] sm:$0xff]
    %v28 = vld [vmem:[%s0 + $0x10] sm:$0xff]
    %v29 = vld [vmem:[%s0 + $0x18] sm:$0xff]
    %v30 = vld [vmem:[%s0 + $0x20] sm:$0xff]
    %v31 = vld [vmem:[%s0 + $0x28] sm:$0xff]
    %v32 = vpack.c.bf16 %v29, %v26
    %v33 = vpack.c.bf16 %v30, %v27
    %v34 = vpack.c.bf16 %v31, %v28
    %v35 = vld [vmem:[%s1] sm:$0xf]
    %v36 = vld [vmem:[%s1 + $0x4] sm:$0xf]
    %v37 = vld [vmem:[%s1 + $0x8] sm:$0xf]
    %v38 = vld [vmem:[%s1 + $0xc] sm:$0xf]
    %v39 = vld [vmem:[%s1 + $0x10] sm:$0xf]
    %v40 = vld [vmem:[%s1 + $0x14] sm:$0xf]
    %v41 = vld [vmem:[%s1 + $0x18] sm:$0xf]
    %v42 = vld [vmem:[%s1 + $0x1c] sm:$0xf]
    %v43 = vld [vmem:[%s1 + $0x20] sm:$0xf]
    %v44 = vld [vmem:[%s1 + $0x24] sm:$0xf]
    %v45 = vld [vmem:[%s1 + $0x28] sm:$0xf]
    %v46 = vld [vmem:[%s1 + $0x2c] sm:$0xf]
    %v47 = vld [vmem:[%s1 + $0x30] sm:$0xf]
    %v48 = vld [vmem:[%s1 + $0x34] sm:$0xf]
    %v49 = vld [vmem:[%s1 + $0x38] sm:$0xf]
    %v50 = vld [vmem:[%s1 + $0x3c] sm:$0xf]
    %v51 = vld [vmem:[%s1 + $0x40] sm:$0xf]
    %v52 = vld [vmem:[%s1 + $0x44] sm:$0xf]
    %v53 = vld [vmem:[%s1 + $0x48] sm:$0xf]
    %v54 = vld [vmem:[%s1 + $0x4c] sm:$0xf]
    %v55 = vld [vmem:[%s1 + $0x50] sm:$0xf]
    %v56 = vld [vmem:[%s1 + $0x54] sm:$0xf]
    %v57 = vld [vmem:[%s1 + $0x58] sm:$0xf]
    %v58 = vld [vmem:[%s1 + $0x5c] sm:$0xf]
    %v59 = vld [vmem:[%s1 + $0x60] sm:$0xf]
    %v60 = vld [vmem:[%s1 + $0x64] sm:$0xf]
    %v61 = vld [vmem:[%s1 + $0x68] sm:$0xf]
    %v62 = vld [vmem:[%s1 + $0x6c] sm:$0xf]
    %v63 = vld [vmem:[%s1 + $0x70] sm:$0xf]
    %v64 = vld [vmem:[%s1 + $0x74] sm:$0xf]
    %v65 = vld [vmem:[%s1 + $0x78] sm:$0xf]
    %v66 = vld [vmem:[%s1 + $0x7c] sm:$0xf]
    %v67 = vld [vmem:[%s1 + $0x80] sm:$0xf]
    %v68 = vld [vmem:[%s1 + $0x84] sm:$0xf]
    %v69 = vld [vmem:[%s1 + $0x88] sm:$0xf]
    %v70 = vld [vmem:[%s1 + $0x8c] sm:$0xf]
    %v71 = vld [vmem:[%s1 + $0x90] sm:$0xf]
    %v72 = vld [vmem:[%s1 + $0x94] sm:$0xf]
    %v73 = vld [vmem:[%s1 + $0x98] sm:$0xf]
    %v74 = vld [vmem:[%s1 + $0x9c] sm:$0xf]
    %v75 = vld [vmem:[%s1 + $0xa0] sm:$0xf]
    %v76 = vld [vmem:[%s1 + $0xa4] sm:$0xf]
    %v77 = vld [vmem:[%s1 + $0xa8] sm:$0xf]
    %v78 = vld [vmem:[%s1 + $0xac] sm:$0xf]
    %v79 = vld [vmem:[%s1 + $0xb0] sm:$0xf]
    %v80 = vld [vmem:[%s1 + $0xb4] sm:$0xf]
    %v81 = vld [vmem:[%s1 + $0xb8] sm:$0xf]
    %v82 = vld [vmem:[%s1 + $0xbc] sm:$0xf]
    %v131 = vunpack.c.l.b16 %v35
    %v132 = vunpack.c.l.b16 %v36
    %v133 = vunpack.c.l.b16 %v37
    %v134 = vunpack.c.l.b16 %v38
    %v135 = vunpack.c.l.b16 %v39
    %v136 = vunpack.c.l.b16 %v40
    %v137 = vunpack.c.l.b16 %v41
    %v138 = vunpack.c.l.b16 %v42
    %v139 = vunpack.c.l.b16 %v43
    %v140 = vunpack.c.l.b16 %v44
    %v141 = vunpack.c.l.b16 %v45
    %v142 = vunpack.c.l.b16 %v46
    %v143 = vunpack.c.l.b16 %v47
    %v144 = vunpack.c.l.b16 %v48
    %v145 = vunpack.c.l.b16 %v49
    %v146 = vunpack.c.l.b16 %v50
    %v147 = vunpack.c.l.b16 %v51
    %v148 = vunpack.c.l.b16 %v52
    %v149 = vunpack.c.l.b16 %v53
    %v150 = vunpack.c.l.b16 %v54
    %v151 = vunpack.c.l.b16 %v55
    %v152 = vunpack.c.l.b16 %v56
    %v153 = vunpack.c.l.b16 %v57
    %v154 = vunpack.c.l.b16 %v58
    %v155 = vunpack.c.l.b16 %v59
    %v156 = vunpack.c.l.b16 %v60
    %v157 = vunpack.c.l.b16 %v61
    %v158 = vunpack.c.l.b16 %v62
    %v159 = vunpack.c.l.b16 %v63
    %v160 = vunpack.c.l.b16 %v64
    %v161 = vunpack.c.l.b16 %v65
    %v162 = vunpack.c.l.b16 %v66
    %v163 = vunpack.c.l.b16 %v67
    %v164 = vunpack.c.l.b16 %v68
    %v165 = vunpack.c.l.b16 %v69
    %v166 = vunpack.c.l.b16 %v70
    %v167 = vunpack.c.l.b16 %v71
    %v168 = vunpack.c.l.b16 %v72
    %v169 = vunpack.c.l.b16 %v73
    %v170 = vunpack.c.l.b16 %v74
    %v171 = vunpack.c.l.b16 %v75
    %v172 = vunpack.c.l.b16 %v76
    %v173 = vunpack.c.l.b16 %v77
    %v174 = vunpack.c.l.b16 %v78
    %v175 = vunpack.c.l.b16 %v79
    %v176 = vunpack.c.l.b16 %v80
    %v177 = vunpack.c.l.b16 %v81
    %v178 = vunpack.c.l.b16 %v82
    %v179 = vpack.c.b16 %v132, %v131
    %v180 = vpack.c.b16 %v134, %v133
    %v181 = vpack.c.b16 %v136, %v135
    %v182 = vpack.c.b16 %v138, %v137
    %v183 = vpack.c.b16 %v140, %v139
    %v184 = vpack.c.b16 %v142, %v141
    %v185 = vpack.c.b16 %v144, %v143
    %v186 = vpack.c.b16 %v146, %v145
    %v187 = vpack.c.b16 %v148, %v147
    %v188 = vpack.c.b16 %v150, %v149
    %v189 = vpack.c.b16 %v152, %v151
    %v190 = vpack.c.b16 %v154, %v153
    %v191 = vpack.c.b16 %v156, %v155
    %v192 = vpack.c.b16 %v158, %v157
    %v193 = vpack.c.b16 %v160, %v159
    %v194 = vpack.c.b16 %v162, %v161
    %v195 = vpack.c.b16 %v164, %v163
    %v196 = vpack.c.b16 %v166, %v165
    %v197 = vpack.c.b16 %v168, %v167
    %v198 = vpack.c.b16 %v170, %v169
    %v199 = vpack.c.b16 %v172, %v171
    %v200 = vpack.c.b16 %v174, %v173
    %v201 = vpack.c.b16 %v176, %v175
    %v202 = vpack.c.b16 %v178, %v177
    %227 = vmatprep.subr.bf16.mxu0 0
    %228 = vmatpush1.bf16.msra.mxu0 %v179
    %229 = vmatprep.subr.bf16.mxu0 0
    %230 = vmatpush1.bf16.msra.mxu0 %v180
    %231 = vmatprep.subr.bf16.mxu0 0
    %232 = vmatpush1.bf16.msra.mxu0 %v181
    %233 = vmatprep.subr.bf16.mxu0 0
    %234 = vmatpush1.bf16.msra.mxu0 %v182
    %235 = vmatprep.subr.bf16.mxu0 0
    %236 = vmatpush1.bf16.msra.mxu0 %v183
    %237 = vmatprep.subr.bf16.mxu0 0
    %238 = vmatpush1.bf16.msra.mxu0 %v184
    %239 = vmatprep.subr.bf16.mxu0 0
    %240 = vmatpush1.bf16.msra.mxu0 %v185
    %241 = vmatprep.subr.bf16.mxu0 0
    %242 = vmatpush1.bf16.msra.mxu0 %v186
    %243 = vmatprep.subr.bf16.mxu0 0
    %244 = vmatpush1.bf16.msra.mxu0 %v187
    %245 = vmatprep.subr.bf16.mxu0 0
    %246 = vmatpush1.bf16.msra.mxu0 %v188
    %247 = vmatprep.subr.bf16.mxu0 0
    %248 = vmatpush1.bf16.msra.mxu0 %v189
    %249 = vmatprep.subr.bf16.mxu0 0
    %250 = vmatpush1.bf16.msra.mxu0 %v190
    %251 = vmatprep.subr.bf16.mxu0 0
    %252 = vmatpush1.bf16.msra.mxu0 %v191
    %253 = vmatprep.subr.bf16.mxu0 0
    %254 = vmatpush1.bf16.msra.mxu0 %v192
    %255 = vmatprep.subr.bf16.mxu0 0
    %256 = vmatpush1.bf16.msra.mxu0 %v193
    %257 = vmatprep.subr.bf16.mxu0 0
    %258 = vmatpush1.bf16.msra.mxu0 %v194
    %259 = vmatprep.mubr.bf16.mxu0 %v33
    %260 = vmatmul.mubr.bf16.gmra.mrb[0].mxu0 %v32
    %v261 = vpop.f32.mrb[0].mxu0
    %v262 = vadd.f32 0.0, %v261
    %v263 = vpop.f32.mrb[0].mxu0
    %v264 = vpop.f32.mrb[0].mxu0
    %v265 = vadd.f32 0.0, %v264
    %v266 = vpop.f32.mrb[0].mxu0
    %267 = vdwg.mxu0
    %268 = vmatprep.subr.bf16.mxu0 0
    %269 = vmatpush1.bf16.msra.mxu0 %v195
    %270 = vmatprep.subr.bf16.mxu0 0
    %271 = vmatpush1.bf16.msra.mxu0 %v196
    %272 = vmatprep.subr.bf16.mxu0 0
    %273 = vmatpush1.bf16.msra.mxu0 %v197
    %274 = vmatprep.subr.bf16.mxu0 0
    %275 = vmatpush1.bf16.msra.mxu0 %v198
    %276 = vmatprep.subr.bf16.mxu0 0
    %277 = vmatpush1.bf16.msra.mxu0 %v199
    %278 = vmatprep.subr.bf16.mxu0 0
    %279 = vmatpush1.bf16.msra.mxu0 %v200
    %280 = vmatprep.subr.bf16.mxu0 0
    %281 = vmatpush1.bf16.msra.mxu0 %v201
    %282 = vmatprep.subr.bf16.mxu0 0
    %283 = vmatpush1.bf16.msra.mxu0 %v202
    %284 = vmatprep.subr.bf16.mxu0 0
    %285 = vmatpush1.bf16.msra.mxu0 0
    %286 = vmatprep.subr.bf16.mxu0 0
    %287 = vmatpush1.bf16.msra.mxu0 0
    %288 = vmatprep.subr.bf16.mxu0 0
    %289 = vmatpush1.bf16.msra.mxu0 0
    %290 = vmatprep.subr.bf16.mxu0 0
    %291 = vmatpush1.bf16.msra.mxu0 0
    %292 = vmatprep.subr.bf16.mxu0 0
    %293 = vmatpush1.bf16.msra.mxu0 0
    %294 = vmatprep.subr.bf16.mxu0 0
    %295 = vmatpush1.bf16.msra.mxu0 0
    %296 = vmatprep.subr.bf16.mxu0 0
    %297 = vmatpush1.bf16.msra.mxu0 0
    %298 = vmatprep.subr.bf16.mxu0 0
    %299 = vmatpush1.bf16.msra.mxu0 0
    %300 = vmatprep.mubr.bf16.mxu0 0
    %301 = vmatmul.mubr.bf16.gmra.mrb[0].mxu0 %v34
    %v302 = vpop.f32.mrb[0].mxu0
    %v303 = vadd.f32 %v262, %v302
    %v304 = vpop.f32.mrb[0].mxu0
    %v305 = vpop.f32.mrb[0].mxu0
    %v306 = vadd.f32 %v265, %v305
    %v307 = vpop.f32.mrb[0].mxu0
    %308 = vdwg.mxu0
    %v309 = vadd.f32 %v24, %v303
    %v310 = vadd.f32 %v25, %v306
    %311 = vst [vmem:[#allocation2] sm:$0xff] %v309
    %312 = vst [vmem:[#allocation2 + $0x8] sm:$0xff] %v310
    // Predicated region
    $region18: #{hawk_forward.23} parent=1 // pred_check
      _
    $region19: #{hawk_forward.23} parent=1 // pred_check_branch
      %314 = sbr.rel (0) target = $region21
    $region20: #{hawk_forward.23} parent=1 // pred_region
      %s316 = ssub.s32 256, 256
      %317 = vsyncadd [#allocation3], %s316
      %s318 = sshll.u32 [#allocation2], 4
      %s319 = int_to_ptr.vmem [resolvable:$true] %s318
      %324 = dma.vmem_to_hbm [thread:$0]  %s319, 256, %s3, [#allocation3], 128, 128, 8
    $region21: #{hawk_forward.23} parent=1 // pred_fallthru
      _
    // Predicated region
    $region22: #{hawk_forward.23} parent=1 // pred_check
      _
    $region23: #{hawk_forward.23} parent=1 // pred_check_branch
      %326 = sbr.rel (0) target = $region25
    $region24: #{hawk_forward.23} parent=1 // pred_region
      %327 = dma.done [#allocation3], 256
    $region25: #{hawk_forward.23} parent=1 // pred_fallthru
      _
    %328 = vsyncpa [#allocation3], 1

</llo_original>
